<compile_context>
chip_gen: v7x
topology: tpu7x:2x2x1
jax: 0.10.0
libtpu: 0.0.40
codegen_flags: <defaults>
</compile_context>

<pallas_src>
import math

import jax
import jax.numpy as jnp
from jax.experimental import pallas as pl
from jax.experimental.pallas import tpu as pltpu


def _round_up(a, b):
    return (a + b - 1) // b * b


def _make_downsample_kernel(TH, Wo, Cin):
    """Builds the kernel for TH output rows x Wo output cols x TN channels."""

    def kernel(xb_ref, xh_ref, w_ref, b_ref, o_ref):
        # xb_ref: (2*TH, Wo+1, 2*Cin)  padded input rows [2*i*TH, 2*(i+1)*TH)
        # xh_ref: (1,    Wo+1, 2*Cin)  halo row 2*(i+1)*TH
        # w_ref : (9, Cin, TN)         tap-major weights
        # b_ref : (1, TN)              f32 bias
        # o_ref : (TH, Wo, TN)
        bias = b_ref[...]                                     # (1, TN) f32
        for r in range(TH):                                   # static unroll
            acc = None
            for kh in range(3):
                ridx = 2 * r + kh
                # Last output row's kh=2 tap lives in the 1-row halo block.
                rowv = xh_ref[0] if ridx >= 2 * TH else xb_ref[ridx]  # (Wo+1, 2Cin)
                taps = (rowv[0:Wo, 0:Cin],            # kw=0 -> input col 2*wo
                        rowv[0:Wo, Cin:2 * Cin],      # kw=1 -> input col 2*wo+1
                        rowv[1:Wo + 1, 0:Cin])        # kw=2 -> input col 2*wo+2
                for kw in range(3):
                    c = jnp.dot(taps[kw], w_ref[kh * 3 + kw],
                                preferred_element_type=jnp.float32)
                    acc = c if acc is None else acc + c
            o_ref[r] = (acc + bias).astype(o_ref.dtype)

    return kernel


def _tile_bytes(lead, r, c, itemsize):
    # VMEM footprint of a block whose last two dims are (r, c).
    return lead * _round_up(max(r, 1), 8) * _round_up(max(c, 1), 128) * itemsize


def downsample(x_nchw, w_oihw, bias, *, compute_dtype=jnp.bfloat16):
    """Equivalent of Downsample.forward: nn.Conv2d(dim, dim, 3, stride=2, padding=1)."""
    N, C, H, W = x_nchw.shape
    Cout, Cin, KH, KW = w_oihw.shape
    assert (Cout, Cin, KH, KW) == (C, C, 3, 3)

    Ho = (H - 1) // 2 + 1
    Wo = (W - 1) // 2 + 1
    out_dtype = x_nchw.dtype

    # ---- output-channel padding: lane-dense (multiple-of-128) output stores ----
    Coutp = max(128, _round_up(Cout, 128))
    TN = Coutp if Coutp <= 256 else (256 if Coutp % 256 == 0 else 128)
    Jc = Coutp // TN

    # ---- output-row tiling (TH output rows <-> 2*TH input rows per step) ----
    TH = min(Ho, 16)
    if N == 1 and Jc == 1 and Ho >= 2:
        # v7x has 2 TensorCores: make sure there are >= 2 parallel grid blocks.
        TH = min(TH, -(-Ho // 2))
    Ih = -(-Ho // TH)
    Mh = Ih * TH

    # ---- input layout pass: NCHW -> NHWC (bf16), zero-pad, column-pair view ----
    Wp = W + 2 + ((W + 2) % 2)        # pad-1 conv width, rounded up to even
    Wv = Wp // 2                      # == Wo + 1
    C2 = 2 * C
    Hpad = 2 * Mh + 2                 # covers body tiles + last halo row
    x_nhwc = jnp.transpose(x_nchw, (0, 2, 3, 1)).astype(compute_dtype)
    xp = jnp.pad(x_nhwc, ((0, 0), (1, Hpad - H - 1), (1, Wp - W - 1), (0, 0)))
    xv = xp.reshape(N, Hpad, Wv, C2)  # pure (free) reshape: pairs adjacent columns

    # ---- weights / bias: OIHW -> (tap, cin, cout), Cout zero-padded ----
    w_k = jnp.transpose(w_oihw, (2, 3, 1, 0)).reshape(9, C, Cout).astype(compute_dtype)
    w_k = jnp.pad(w_k, ((0, 0), (0, 0), (0, Coutp - Cout)))
    b_k = jnp.pad(bias.astype(jnp.float32), (0, Coutp - Cout)).reshape(1, Coutp)

    # ---- grid & specs: all axes parallel, Cout innermost so input is read once ----
    grid = (N, Ih, Jc)
    in_specs = [
        pl.BlockSpec((None, 2 * TH, Wv, C2), lambda n, i, j: (n, i, 0, 0)),
        pl.BlockSpec((None, 1, Wv, C2), lambda n, i, j: (n, (i + 1) * 2 * TH, 0, 0)),
        pl.BlockSpec((9, C, TN), lambda n, i, j: (0, 0, j)),   # resident when Jc == 1
        pl.BlockSpec((1, TN), lambda n, i, j: (0, j)),
    ]
    out_specs = pl.BlockSpec((None, TH, Wo, TN), lambda n, i, j: (n, i, 0, j))

    # ---- VMEM budget: derived from device capacity (v7x 64 MiB vs 128 MiB) ----
    isz = jnp.dtype(compute_dtype).itemsize
    osz = jnp.dtype(out_dtype).itemsize
    per_step = (2 * _tile_bytes(2 * TH, Wv, C2, isz)
                + 2 * _tile_bytes(1, Wv, C2, isz)
                + 2 * _tile_bytes(9, C, TN, isz)
                + 2 * _tile_bytes(1, 1, TN, 4)
                + 2 * _tile_bytes(TH, Wo, TN, osz)
                + _round_up(Wo, 8) * TN * 4)
    try:
        vmem_cap = int(pltpu.get_tpu_info().vmem_capacity_bytes)
    except Exception:  # pragma: no cover - conservative fallback
        vmem_cap = 64 * 2 ** 20
    vmem_limit = int(min(max(4 * per_step, 16 * 2 ** 20),
                         0.6 * vmem_cap, 96 * 2 ** 20))

    cost = pl.CostEstimate(
        flops=2 * N * Mh * Wo * 9 * C * Coutp,
        transcendentals=0,
        bytes_accessed=int(xv.size * isz + w_k.size * isz + b_k.size * 4
                           + N * Mh * Wo * Coutp * osz),
    )

    out = pl.pallas_call(
        _make_downsample_kernel(TH, Wo, C),
        out_shape=jax.ShapeDtypeStruct((N, Mh, Wo, Coutp), out_dtype),
        grid=grid,
        in_specs=in_specs,
        out_specs=out_specs,
        compiler_params=pltpu.CompilerParams(
            dimension_semantics=("parallel", "parallel", "parallel"),
            vmem_limit_bytes=vmem_limit),
        cost_estimate=cost,
    )(xv, xv, w_k, b_k)

    out = out[:, :Ho, :, :Cout]                      # drop row / channel padding
    # TODO(synk): keep the model channels-last to avoid this final NHWC->NCHW pass.
    return jnp.transpose(out, (0, 3, 1, 2))


def init_params(dim, key):
    """Deterministic Conv2d(dim, dim, 3) params, PyTorch-style uniform init."""
    kw_key, kb_key = jax.random.split(key)
    fan_in = dim * 3 * 3
    bound = 1.0 / math.sqrt(fan_in)
    w = jax.random.uniform(kw_key, (dim, dim, 3, 3), jnp.float32, -bound, bound)  # OIHW
    b = jax.random.uniform(kb_key, (dim,), jnp.float32, -bound, bound)
    return w, b


def _check_case(key, N, dim, H, W):
    kx, kp = jax.random.split(key)
    x = jax.random.normal(kx, (N, dim, H, W), jnp.float32)   # NCHW, like PyTorch
    w, b = init_params(dim, kp)

    out = jax.block_until_ready(downsample(x, w, b))
    Ho = (H - 1) // 2 + 1
    Wo = (W - 1) // 2 + 1
    assert out.shape == (N, dim, Ho, Wo), out.shape

    # Reference on the same bf16-rounded operands (kernel accumulates in f32).
    xr = x.astype(jnp.bfloat16).astype(jnp.float32)
    wr = w.astype(jnp.bfloat16).astype(jnp.float32)
    ref = jax.lax.conv_general_dilated(
        xr, wr, window_strides=(2, 2), padding=((1, 1), (1, 1)),
        dimension_numbers=("NCHW", "OIHW", "NCHW"),
        precision=jax.lax.Precision.HIGHEST) + b[None, :, None, None]
    outf = out.astype(jnp.float32)
    err = float(jnp.max(jnp.abs(outf - ref)))
    assert jnp.allclose(outf, ref, atol=2e-2, rtol=2e-2), err


if __name__ == "__main__":
    key = jax.random.PRNGKey(0)
    keys = jax.random.split(key, 3)

    # Main case + odd-shape cases exercising spatial padding, the halo row,
    # multiple H-tiles and the padded-M / padded-Cout slicing paths.
    _check_case(keys[0], N=2, dim=4, H=16, W=16)
    _check_case(keys[1], N=1, dim=5, H=15, W=13)
    _check_case(keys[2], N=1, dim=3, H=18, W=10)

    print("KERNEL_OK")
</pallas_src>

<mosaic_0001>
module attributes {stable_mosaic.version = 11 : i64} {
  func.func @kernel(%arg0: i32, %arg1: i32, %arg2: i32, %arg3: memref<1x16x9x8xbf16, #tpu.memory_space<vmem>>, %arg4: memref<1x1x9x8xbf16, #tpu.memory_space<vmem>>, %arg5: memref<9x4x128xbf16, #tpu.memory_space<vmem>>, %arg6: memref<1x128xf32, #tpu.memory_space<vmem>>, %arg7: memref<1x8x8x128xf32, #tpu.memory_space<vmem>>) attributes {dimension_semantics = [#tpu.dimension_semantics<parallel>, #tpu.dimension_semantics<parallel>, #tpu.dimension_semantics<parallel>], iteration_bounds = array<i64: 2, 1, 1>, scalar_prefetch = 0 : i64, scratch_operands = 0 : i64, tpu.core_type = #tpu.core_type<tc>, window_params = [{transform_indices = @transform_0, window_bounds = array<i64: 1, 16, 9, 8>}, {transform_indices = @transform_1, window_bounds = array<i64: 1, 1, 9, 8>}, {transform_indices = @transform_2, window_bounds = array<i64: 9, 4, 128>}, {transform_indices = @transform_3, window_bounds = array<i64: 1, 128>}, {transform_indices = @transform_4, window_bounds = array<i64: 1, 8, 8, 128>}]} {
    %c0 = arith.constant 0 : index
    %c0_0 = arith.constant 0 : index
    %0 = vector.load %arg6[%c0, %c0_0] : memref<1x128xf32, #tpu.memory_space<vmem>>, vector<1x128xf32>
    %c0_1 = arith.constant 0 : index
    %c0_2 = arith.constant 0 : index
    %c0_3 = arith.constant 0 : index
    %c0_4 = arith.constant 0 : index
    %1 = vector.load %arg3[%c0_1, %c0_2, %c0_3, %c0_4] : memref<1x16x9x8xbf16, #tpu.memory_space<vmem>>, vector<1x1x9x8xbf16>
    %2 = vector.shape_cast %1 : vector<1x1x9x8xbf16> to vector<9x8xbf16>
    %3 = vector.extract_strided_slice %2 {offsets = [0, 0], sizes = [8, 4], strides = [1, 1]} : vector<9x8xbf16> to vector<8x4xbf16>
    %4 = vector.extract_strided_slice %2 {offsets = [0, 4], sizes = [8, 4], strides = [1, 1]} : vector<9x8xbf16> to vector<8x4xbf16>
    %5 = vector.extract_strided_slice %2 {offsets = [1, 0], sizes = [8, 4], strides = [1, 1]} : vector<9x8xbf16> to vector<8x4xbf16>
    %c0_5 = arith.constant 0 : index
    %c0_6 = arith.constant 0 : index
    %c0_7 = arith.constant 0 : index
    %6 = vector.load %arg5[%c0_5, %c0_6, %c0_7] : memref<9x4x128xbf16, #tpu.memory_space<vmem>>, vector<1x4x128xbf16>
    %7 = vector.shape_cast %6 : vector<1x4x128xbf16> to vector<4x128xbf16>
    %cst = arith.constant dense<0.000000e+00> : vector<8x128xf32>
    %8 = tpu.matmul %3, %7, %cst {dimension_numbers = #tpu.dot_dimension_numbers<[1], [0], [0], [1], [0, 0, 1, 1], [], []>} : vector<8x4xbf16>, vector<4x128xbf16>, vector<8x128xf32> -> vector<8x128xf32>
    %c1 = arith.constant 1 : index
    %c0_8 = arith.constant 0 : index
    %c0_9 = arith.constant 0 : index
    %9 = vector.load %arg5[%c1, %c0_8, %c0_9] : memref<9x4x128xbf16, #tpu.memory_space<vmem>>, vector<1x4x128xbf16>
    %10 = vector.shape_cast %9 : vector<1x4x128xbf16> to vector<4x128xbf16>
    %cst_10 = arith.constant dense<0.000000e+00> : vector<8x128xf32>
    %11 = tpu.matmul %4, %10, %cst_10 {dimension_numbers = #tpu.dot_dimension_numbers<[1], [0], [0], [1], [0, 0, 1, 1], [], []>} : vector<8x4xbf16>, vector<4x128xbf16>, vector<8x128xf32> -> vector<8x128xf32>
    %12 = arith.addf %8, %11 : vector<8x128xf32>
    %c2 = arith.constant 2 : index
    %c0_11 = arith.constant 0 : index
    %c0_12 = arith.constant 0 : index
    %13 = vector.load %arg5[%c2, %c0_11, %c0_12] : memref<9x4x128xbf16, #tpu.memory_space<vmem>>, vector<1x4x128xbf16>
    %14 = vector.shape_cast %13 : vector<1x4x128xbf16> to vector<4x128xbf16>
    %cst_13 = arith.constant dense<0.000000e+00> : vector<8x128xf32>
    %15 = tpu.matmul %5, %14, %cst_13 {dimension_numbers = #tpu.dot_dimension_numbers<[1], [0], [0], [1], [0, 0, 1, 1], [], []>} : vector<8x4xbf16>, vector<4x128xbf16>, vector<8x128xf32> -> vector<8x128xf32>
    %16 = arith.addf %12, %15 : vector<8x128xf32>
    %c0_14 = arith.constant 0 : index
    %c1_15 = arith.constant 1 : index
    %c0_16 = arith.constant 0 : index
    %c0_17 = arith.constant 0 : index
    %17 = vector.load %arg3[%c0_14, %c1_15, %c0_16, %c0_17] : memref<1x16x9x8xbf16, #tpu.memory_space<vmem>>, vector<1x1x9x8xbf16>
    %18 = vector.shape_cast %17 : vector<1x1x9x8xbf16> to vector<9x8xbf16>
    %19 = vector.extract_strided_slice %18 {offsets = [0, 0], sizes = [8, 4], strides = [1, 1]} : vector<9x8xbf16> to vector<8x4xbf16>
    %20 = vector.extract_strided_slice %18 {offsets = [0, 4], sizes = [8, 4], strides = [1, 1]} : vector<9x8xbf16> to vector<8x4xbf16>
    %21 = vector.extract_strided_slice %18 {offsets = [1, 0], sizes = [8, 4], strides = [1, 1]} : vector<9x8xbf16> to vector<8x4xbf16>
    %c3 = arith.constant 3 : index
    %c0_18 = arith.constant 0 : index
    %c0_19 = arith.constant 0 : index
    %22 = vector.load %arg5[%c3, %c0_18, %c0_19] : memref<9x4x128xbf16, #tpu.memory_space<vmem>>, vector<1x4x128xbf16>
    %23 = vector.shape_cast %22 : vector<1x4x128xbf16> to vector<4x128xbf16>
    %cst_20 = arith.constant dense<0.000000e+00> : vector<8x128xf32>
    %24 = tpu.matmul %19, %23, %cst_20 {dimension_numbers = #tpu.dot_dimension_numbers<[1], [0], [0], [1], [0, 0, 1, 1], [], []>} : vector<8x4xbf16>, vector<4x128xbf16>, vector<8x128xf32> -> vector<8x128xf32>
    %25 = arith.addf %16, %24 : vector<8x128xf32>
    %c4 = arith.constant 4 : index
    %c0_21 = arith.constant 0 : index
    %c0_22 = arith.constant 0 : index
    %26 = vector.load %arg5[%c4, %c0_21, %c0_22] : memref<9x4x128xbf16, #tpu.memory_space<vmem>>, vector<1x4x128xbf16>
    %27 = vector.shape_cast %26 : vector<1x4x128xbf16> to vector<4x128xbf16>
    %cst_23 = arith.constant dense<0.000000e+00> : vector<8x128xf32>
    %28 = tpu.matmul %20, %27, %cst_23 {dimension_numbers = #tpu.dot_dimension_numbers<[1], [0], [0], [1], [0, 0, 1, 1], [], []>} : vector<8x4xbf16>, vector<4x128xbf16>, vector<8x128xf32> -> vector<8x128xf32>
    %29 = arith.addf %25, %28 : vector<8x128xf32>
    %c5 = arith.constant 5 : index
    %c0_24 = arith.constant 0 : index
    %c0_25 = arith.constant 0 : index
    %30 = vector.load %arg5[%c5, %c0_24, %c0_25] : memref<9x4x128xbf16, #tpu.memory_space<vmem>>, vector<1x4x128xbf16>
    %31 = vector.shape_cast %30 : vector<1x4x128xbf16> to vector<4x128xbf16>
    %cst_26 = arith.constant dense<0.000000e+00> : vector<8x128xf32>
    %32 = tpu.matmul %21, %31, %cst_26 {dimension_numbers = #tpu.dot_dimension_numbers<[1], [0], [0], [1], [0, 0, 1, 1], [], []>} : vector<8x4xbf16>, vector<4x128xbf16>, vector<8x128xf32> -> vector<8x128xf32>
    %33 = arith.addf %29, %32 : vector<8x128xf32>
    %c0_27 = arith.constant 0 : index
    %c2_28 = arith.constant 2 : index
    %c0_29 = arith.constant 0 : index
    %c0_30 = arith.constant 0 : index
    %34 = vector.load %arg3[%c0_27, %c2_28, %c0_29, %c0_30] : memref<1x16x9x8xbf16, #tpu.memory_space<vmem>>, vector<1x1x9x8xbf16>
    %35 = vector.shape_cast %34 : vector<1x1x9x8xbf16> to vector<9x8xbf16>
    %36 = vector.extract_strided_slice %35 {offsets = [0, 0], sizes = [8, 4], strides = [1, 1]} : vector<9x8xbf16> to vector<8x4xbf16>
    %37 = vector.extract_strided_slice %35 {offsets = [0, 4], sizes = [8, 4], strides = [1, 1]} : vector<9x8xbf16> to vector<8x4xbf16>
    %38 = vector.extract_strided_slice %35 {offsets = [1, 0], sizes = [8, 4], strides = [1, 1]} : vector<9x8xbf16> to vector<8x4xbf16>
    %c6 = arith.constant 6 : index
    %c0_31 = arith.constant 0 : index
    %c0_32 = arith.constant 0 : index
    %39 = vector.load %arg5[%c6, %c0_31, %c0_32] : memref<9x4x128xbf16, #tpu.memory_space<vmem>>, vector<1x4x128xbf16>
    %40 = vector.shape_cast %39 : vector<1x4x128xbf16> to vector<4x128xbf16>
    %cst_33 = arith.constant dense<0.000000e+00> : vector<8x128xf32>
    %41 = tpu.matmul %36, %40, %cst_33 {dimension_numbers = #tpu.dot_dimension_numbers<[1], [0], [0], [1], [0, 0, 1, 1], [], []>} : vector<8x4xbf16>, vector<4x128xbf16>, vector<8x128xf32> -> vector<8x128xf32>
    %42 = arith.addf %33, %41 : vector<8x128xf32>
    %c7 = arith.constant 7 : index
    %c0_34 = arith.constant 0 : index
    %c0_35 = arith.constant 0 : index
    %43 = vector.load %arg5[%c7, %c0_34, %c0_35] : memref<9x4x128xbf16, #tpu.memory_space<vmem>>, vector<1x4x128xbf16>
    %44 = vector.shape_cast %43 : vector<1x4x128xbf16> to vector<4x128xbf16>
    %cst_36 = arith.constant dense<0.000000e+00> : vector<8x128xf32>
    %45 = tpu.matmul %37, %44, %cst_36 {dimension_numbers = #tpu.dot_dimension_numbers<[1], [0], [0], [1], [0, 0, 1, 1], [], []>} : vector<8x4xbf16>, vector<4x128xbf16>, vector<8x128xf32> -> vector<8x128xf32>
    %46 = arith.addf %42, %45 : vector<8x128xf32>
    %c8 = arith.constant 8 : index
    %c0_37 = arith.constant 0 : index
    %c0_38 = arith.constant 0 : index
    %47 = vector.load %arg5[%c8, %c0_37, %c0_38] : memref<9x4x128xbf16, #tpu.memory_space<vmem>>, vector<1x4x128xbf16>
    %48 = vector.shape_cast %47 : vector<1x4x128xbf16> to vector<4x128xbf16>
    %cst_39 = arith.constant dense<0.000000e+00> : vector<8x128xf32>
    %49 = tpu.matmul %38, %48, %cst_39 {dimension_numbers = #tpu.dot_dimension_numbers<[1], [0], [0], [1], [0, 0, 1, 1], [], []>} : vector<8x4xbf16>, vector<4x128xbf16>, vector<8x128xf32> -> vector<8x128xf32>
    %50 = arith.addf %46, %49 : vector<8x128xf32>
    %51 = vector.broadcast %0 : vector<1x128xf32> to vector<8x128xf32>
    %52 = arith.addf %50, %51 : vector<8x128xf32>
    %c0_40 = arith.constant 0 : index
    %c0_41 = arith.constant 0 : index
    %c0_42 = arith.constant 0 : index
    %c0_43 = arith.constant 0 : index
    %53 = vector.load %arg7[%c0_40, %c0_41, %c0_42, %c0_43] : memref<1x8x8x128xf32, #tpu.memory_space<vmem>>, vector<1x1x8x128xf32>
    %54 = vector.shape_cast %53 : vector<1x1x8x128xf32> to vector<8x128xf32>
    %55 = vector.shape_cast %52 : vector<8x128xf32> to vector<1x1x8x128xf32>
    tpu.vector_store %arg7[%c0_40, %c0_41, %c0_42, %c0_43], %55 {strides = array<i32>} : memref<1x8x8x128xf32, #tpu.memory_space<vmem>>, vector<1x1x8x128xf32>,
    %c0_44 = arith.constant 0 : index
    %c2_45 = arith.constant 2 : index
    %c0_46 = arith.constant 0 : index
    %c0_47 = arith.constant 0 : index
    %56 = vector.load %arg3[%c0_44, %c2_45, %c0_46, %c0_47] : memref<1x16x9x8xbf16, #tpu.memory_space<vmem>>, vector<1x1x9x8xbf16>
    %57 = vector.shape_cast %56 : vector<1x1x9x8xbf16> to vector<9x8xbf16>
    %58 = vector.extract_strided_slice %57 {offsets = [0, 0], sizes = [8, 4], strides = [1, 1]} : vector<9x8xbf16> to vector<8x4xbf16>
    %59 = vector.extract_strided_slice %57 {offsets = [0, 4], sizes = [8, 4], strides = [1, 1]} : vector<9x8xbf16> to vector<8x4xbf16>
    %60 = vector.extract_strided_slice %57 {offsets = [1, 0], sizes = [8, 4], strides = [1, 1]} : vector<9x8xbf16> to vector<8x4xbf16>
    %c0_48 = arith.constant 0 : index
    %c0_49 = arith.constant 0 : index
    %c0_50 = arith.constant 0 : index
    %61 = vector.load %arg5[%c0_48, %c0_49, %c0_50] : memref<9x4x128xbf16, #tpu.memory_space<vmem>>, vector<1x4x128xbf16>
    %62 = vector.shape_cast %61 : vector<1x4x128xbf16> to vector<4x128xbf16>
    %cst_51 = arith.constant dense<0.000000e+00> : vector<8x128xf32>
    %63 = tpu.matmul %58, %62, %cst_51 {dimension_numbers = #tpu.dot_dimension_numbers<[1], [0], [0], [1], [0, 0, 1, 1], [], []>} : vector<8x4xbf16>, vector<4x128xbf16>, vector<8x128xf32> -> vector<8x128xf32>
    %c1_52 = arith.constant 1 : index
    %c0_53 = arith.constant 0 : index
    %c0_54 = arith.constant 0 : index
    %64 = vector.load %arg5[%c1_52, %c0_53, %c0_54] : memref<9x4x128xbf16, #tpu.memory_space<vmem>>, vector<1x4x128xbf16>
    %65 = vector.shape_cast %64 : vector<1x4x128xbf16> to vector<4x128xbf16>
    %cst_55 = arith.constant dense<0.000000e+00> : vector<8x128xf32>
    %66 = tpu.matmul %59, %65, %cst_55 {dimension_numbers = #tpu.dot_dimension_numbers<[1], [0], [0], [1], [0, 0, 1, 1], [], []>} : vector<8x4xbf16>, vector<4x128xbf16>, vector<8x128xf32> -> vector<8x128xf32>
    %67 = arith.addf %63, %66 : vector<8x128xf32>
    %c2_56 = arith.constant 2 : index
    %c0_57 = arith.constant 0 : index
    %c0_58 = arith.constant 0 : index
    %68 = vector.load %arg5[%c2_56, %c0_57, %c0_58] : memref<9x4x128xbf16, #tpu.memory_space<vmem>>, vector<1x4x128xbf16>
    %69 = vector.shape_cast %68 : vector<1x4x128xbf16> to vector<4x128xbf16>
    %cst_59 = arith.constant dense<0.000000e+00> : vector<8x128xf32>
    %70 = tpu.matmul %60, %69, %cst_59 {dimension_numbers = #tpu.dot_dimension_numbers<[1], [0], [0], [1], [0, 0, 1, 1], [], []>} : vector<8x4xbf16>, vector<4x128xbf16>, vector<8x128xf32> -> vector<8x128xf32>
    %71 = arith.addf %67, %70 : vector<8x128xf32>
    %c0_60 = arith.constant 0 : index
    %c3_61 = arith.constant 3 : index
    %c0_62 = arith.constant 0 : index
    %c0_63 = arith.constant 0 : index
    %72 = vector.load %arg3[%c0_60, %c3_61, %c0_62, %c0_63] : memref<1x16x9x8xbf16, #tpu.memory_space<vmem>>, vector<1x1x9x8xbf16>
    %73 = vector.shape_cast %72 : vector<1x1x9x8xbf16> to vector<9x8xbf16>
    %74 = vector.extract_strided_slice %73 {offsets = [0, 0], sizes = [8, 4], strides = [1, 1]} : vector<9x8xbf16> to vector<8x4xbf16>
    %75 = vector.extract_strided_slice %73 {offsets = [0, 4], sizes = [8, 4], strides = [1, 1]} : vector<9x8xbf16> to vector<8x4xbf16>
    %76 = vector.extract_strided_slice %73 {offsets = [1, 0], sizes = [8, 4], strides = [1, 1]} : vector<9x8xbf16> to vector<8x4xbf16>
    %c3_64 = arith.constant 3 : index
    %c0_65 = arith.constant 0 : index
    %c0_66 = arith.constant 0 : index
    %77 = vector.load %arg5[%c3_64, %c0_65, %c0_66] : memref<9x4x128xbf16, #tpu.memory_space<vmem>>, vector<1x4x128xbf16>
    %78 = vector.shape_cast %77 : vector<1x4x128xbf16> to vector<4x128xbf16>
    %cst_67 = arith.constant dense<0.000000e+00> : vector<8x128xf32>
    %79 = tpu.matmul %74, %78, %cst_67 {dimension_numbers = #tpu.dot_dimension_numbers<[1], [0], [0], [1], [0, 0, 1, 1], [], []>} : vector<8x4xbf16>, vector<4x128xbf16>, vector<8x128xf32> -> vector<8x128xf32>
    %80 = arith.addf %71, %79 : vector<8x128xf32>
    %c4_68 = arith.constant 4 : index
    %c0_69 = arith.constant 0 : index
    %c0_70 = arith.constant 0 : index
    %81 = vector.load %arg5[%c4_68, %c0_69, %c0_70] : memref<9x4x128xbf16, #tpu.memory_space<vmem>>, vector<1x4x128xbf16>
    %82 = vector.shape_cast %81 : vector<1x4x128xbf16> to vector<4x128xbf16>
    %cst_71 = arith.constant dense<0.000000e+00> : vector<8x128xf32>
    %83 = tpu.matmul %75, %82, %cst_71 {dimension_numbers = #tpu.dot_dimension_numbers<[1], [0], [0], [1], [0, 0, 1, 1], [], []>} : vector<8x4xbf16>, vector<4x128xbf16>, vector<8x128xf32> -> vector<8x128xf32>
    %84 = arith.addf %80, %83 : vector<8x128xf32>
    %c5_72 = arith.constant 5 : index
    %c0_73 = arith.constant 0 : index
    %c0_74 = arith.constant 0 : index
    %85 = vector.load %arg5[%c5_72, %c0_73, %c0_74] : memref<9x4x128xbf16, #tpu.memory_space<vmem>>, vector<1x4x128xbf16>
    %86 = vector.shape_cast %85 : vector<1x4x128xbf16> to vector<4x128xbf16>
    %cst_75 = arith.constant dense<0.000000e+00> : vector<8x128xf32>
    %87 = tpu.matmul %76, %86, %cst_75 {dimension_numbers = #tpu.dot_dimension_numbers<[1], [0], [0], [1], [0, 0, 1, 1], [], []>} : vector<8x4xbf16>, vector<4x128xbf16>, vector<8x128xf32> -> vector<8x128xf32>
    %88 = arith.addf %84, %87 : vector<8x128xf32>
    %c0_76 = arith.constant 0 : index
    %c4_77 = arith.constant 4 : index
    %c0_78 = arith.constant 0 : index
    %c0_79 = arith.constant 0 : index
    %89 = vector.load %arg3[%c0_76, %c4_77, %c0_78, %c0_79] : memref<1x16x9x8xbf16, #tpu.memory_space<vmem>>, vector<1x1x9x8xbf16>
    %90 = vector.shape_cast %89 : vector<1x1x9x8xbf16> to vector<9x8xbf16>
    %91 = vector.extract_strided_slice %90 {offsets = [0, 0], sizes = [8, 4], strides = [1, 1]} : vector<9x8xbf16> to vector<8x4xbf16>
    %92 = vector.extract_strided_slice %90 {offsets = [0, 4], sizes = [8, 4], strides = [1, 1]} : vector<9x8xbf16> to vector<8x4xbf16>
    %93 = vector.extract_strided_slice %90 {offsets = [1, 0], sizes = [8, 4], strides = [1, 1]} : vector<9x8xbf16> to vector<8x4xbf16>
    %c6_80 = arith.constant 6 : index
    %c0_81 = arith.constant 0 : index
    %c0_82 = arith.constant 0 : index
    %94 = vector.load %arg5[%c6_80, %c0_81, %c0_82] : memref<9x4x128xbf16, #tpu.memory_space<vmem>>, vector<1x4x128xbf16>
    %95 = vector.shape_cast %94 : vector<1x4x128xbf16> to vector<4x128xbf16>
    %cst_83 = arith.constant dense<0.000000e+00> : vector<8x128xf32>
    %96 = tpu.matmul %91, %95, %cst_83 {dimension_numbers = #tpu.dot_dimension_numbers<[1], [0], [0], [1], [0, 0, 1, 1], [], []>} : vector<8x4xbf16>, vector<4x128xbf16>, vector<8x128xf32> -> vector<8x128xf32>
    %97 = arith.addf %88, %96 : vector<8x128xf32>
    %c7_84 = arith.constant 7 : index
    %c0_85 = arith.constant 0 : index
    %c0_86 = arith.constant 0 : index
    %98 = vector.load %arg5[%c7_84, %c0_85, %c0_86] : memref<9x4x128xbf16, #tpu.memory_space<vmem>>, vector<1x4x128xbf16>
    %99 = vector.shape_cast %98 : vector<1x4x128xbf16> to vector<4x128xbf16>
    %cst_87 = arith.constant dense<0.000000e+00> : vector<8x128xf32>
    %100 = tpu.matmul %92, %99, %cst_87 {dimension_numbers = #tpu.dot_dimension_numbers<[1], [0], [0], [1], [0, 0, 1, 1], [], []>} : vector<8x4xbf16>, vector<4x128xbf16>, vector<8x128xf32> -> vector<8x128xf32>
    %101 = arith.addf %97, %100 : vector<8x128xf32>
    %c8_88 = arith.constant 8 : index
    %c0_89 = arith.constant 0 : index
    %c0_90 = arith.constant 0 : index
    %102 = vector.load %arg5[%c8_88, %c0_89, %c0_90] : memref<9x4x128xbf16, #tpu.memory_space<vmem>>, vector<1x4x128xbf16>
    %103 = vector.shape_cast %102 : vector<1x4x128xbf16> to vector<4x128xbf16>
    %cst_91 = arith.constant dense<0.000000e+00> : vector<8x128xf32>
    %104 = tpu.matmul %93, %103, %cst_91 {dimension_numbers = #tpu.dot_dimension_numbers<[1], [0], [0], [1], [0, 0, 1, 1], [], []>} : vector<8x4xbf16>, vector<4x128xbf16>, vector<8x128xf32> -> vector<8x128xf32>
    %105 = arith.addf %101, %104 : vector<8x128xf32>
    %106 = vector.broadcast %0 : vector<1x128xf32> to vector<8x128xf32>
    %107 = arith.addf %105, %106 : vector<8x128xf32>
    %c0_92 = arith.constant 0 : index
    %c1_93 = arith.constant 1 : index
    %c0_94 = arith.constant 0 : index
    %c0_95 = arith.constant 0 : index
    %108 = vector.load %arg7[%c0_92, %c1_93, %c0_94, %c0_95] : memref<1x8x8x128xf32, #tpu.memory_space<vmem>>, vector<1x1x8x128xf32>
    %109 = vector.shape_cast %108 : vector<1x1x8x128xf32> to vector<8x128xf32>
    %110 = vector.shape_cast %107 : vector<8x128xf32> to vector<1x1x8x128xf32>
    tpu.vector_store %arg7[%c0_92, %c1_93, %c0_94, %c0_95], %110 {strides = array<i32>} : memref<1x8x8x128xf32, #tpu.memory_space<vmem>>, vector<1x1x8x128xf32>,
    %c0_96 = arith.constant 0 : index
    %c4_97 = arith.constant 4 : index
    %c0_98 = arith.constant 0 : index
    %c0_99 = arith.constant 0 : index
    %111 = vector.load %arg3[%c0_96, %c4_97, %c0_98, %c0_99] : memref<1x16x9x8xbf16, #tpu.memory_space<vmem>>, vector<1x1x9x8xbf16>
    %112 = vector.shape_cast %111 : vector<1x1x9x8xbf16> to vector<9x8xbf16>
    %113 = vector.extract_strided_slice %112 {offsets = [0, 0], sizes = [8, 4], strides = [1, 1]} : vector<9x8xbf16> to vector<8x4xbf16>
    %114 = vector.extract_strided_slice %112 {offsets = [0, 4], sizes = [8, 4], strides = [1, 1]} : vector<9x8xbf16> to vector<8x4xbf16>
    %115 = vector.extract_strided_slice %112 {offsets = [1, 0], sizes = [8, 4], strides = [1, 1]} : vector<9x8xbf16> to vector<8x4xbf16>
    %c0_100 = arith.constant 0 : index
    %c0_101 = arith.constant 0 : index
    %c0_102 = arith.constant 0 : index
    %116 = vector.load %arg5[%c0_100, %c0_101, %c0_102] : memref<9x4x128xbf16, #tpu.memory_space<vmem>>, vector<1x4x128xbf16>
    %117 = vector.shape_cast %116 : vector<1x4x128xbf16> to vector<4x128xbf16>
    %cst_103 = arith.constant dense<0.000000e+00> : vector<8x128xf32>
    %118 = tpu.matmul %113, %117, %cst_103 {dimension_numbers = #tpu.dot_dimension_numbers<[1], [0], [0], [1], [0, 0, 1, 1], [], []>} : vector<8x4xbf16>, vector<4x128xbf16>, vector<8x128xf32> -> vector<8x128xf32>
    %c1_104 = arith.constant 1 : index
    %c0_105 = arith.constant 0 : index
    %c0_106 = arith.constant 0 : index
    %119 = vector.load %arg5[%c1_104, %c0_105, %c0_106] : memref<9x4x128xbf16, #tpu.memory_space<vmem>>, vector<1x4x128xbf16>
    %120 = vector.shape_cast %119 : vector<1x4x128xbf16> to vector<4x128xbf16>
    %cst_107 = arith.constant dense<0.000000e+00> : vector<8x128xf32>
    %121 = tpu.matmul %114, %120, %cst_107 {dimension_numbers = #tpu.dot_dimension_numbers<[1], [0], [0], [1], [0, 0, 1, 1], [], []>} : vector<8x4xbf16>, vector<4x128xbf16>, vector<8x128xf32> -> vector<8x128xf32>
    %122 = arith.addf %118, %121 : vector<8x128xf32>
    %c2_108 = arith.constant 2 : index
    %c0_109 = arith.constant 0 : index
    %c0_110 = arith.constant 0 : index
    %123 = vector.load %arg5[%c2_108, %c0_109, %c0_110] : memref<9x4x128xbf16, #tpu.memory_space<vmem>>, vector<1x4x128xbf16>
    %124 = vector.shape_cast %123 : vector<1x4x128xbf16> to vector<4x128xbf16>
    %cst_111 = arith.constant dense<0.000000e+00> : vector<8x128xf32>
    %125 = tpu.matmul %115, %124, %cst_111 {dimension_numbers = #tpu.dot_dimension_numbers<[1], [0], [0], [1], [0, 0, 1, 1], [], []>} : vector<8x4xbf16>, vector<4x128xbf16>, vector<8x128xf32> -> vector<8x128xf32>
    %126 = arith.addf %122, %125 : vector<8x128xf32>
    %c0_112 = arith.constant 0 : index
    %c5_113 = arith.constant 5 : index
    %c0_114 = arith.constant 0 : index
    %c0_115 = arith.constant 0 : index
    %127 = vector.load %arg3[%c0_112, %c5_113, %c0_114, %c0_115] : memref<1x16x9x8xbf16, #tpu.memory_space<vmem>>, vector<1x1x9x8xbf16>
    %128 = vector.shape_cast %127 : vector<1x1x9x8xbf16> to vector<9x8xbf16>
    %129 = vector.extract_strided_slice %128 {offsets = [0, 0], sizes = [8, 4], strides = [1, 1]} : vector<9x8xbf16> to vector<8x4xbf16>
    %130 = vector.extract_strided_slice %128 {offsets = [0, 4], sizes = [8, 4], strides = [1, 1]} : vector<9x8xbf16> to vector<8x4xbf16>
    %131 = vector.extract_strided_slice %128 {offsets = [1, 0], sizes = [8, 4], strides = [1, 1]} : vector<9x8xbf16> to vector<8x4xbf16>
    %c3_116 = arith.constant 3 : index
    %c0_117 = arith.constant 0 : index
    %c0_118 = arith.constant 0 : index
    %132 = vector.load %arg5[%c3_116, %c0_117, %c0_118] : memref<9x4x128xbf16, #tpu.memory_space<vmem>>, vector<1x4x128xbf16>
    %133 = vector.shape_cast %132 : vector<1x4x128xbf16> to vector<4x128xbf16>
    %cst_119 = arith.constant dense<0.000000e+00> : vector<8x128xf32>
    %134 = tpu.matmul %129, %133, %cst_119 {dimension_numbers = #tpu.dot_dimension_numbers<[1], [0], [0], [1], [0, 0, 1, 1], [], []>} : vector<8x4xbf16>, vector<4x128xbf16>, vector<8x128xf32> -> vector<8x128xf32>
    %135 = arith.addf %126, %134 : vector<8x128xf32>
    %c4_120 = arith.constant 4 : index
    %c0_121 = arith.constant 0 : index
    %c0_122 = arith.constant 0 : index
    %136 = vector.load %arg5[%c4_120, %c0_121, %c0_122] : memref<9x4x128xbf16, #tpu.memory_space<vmem>>, vector<1x4x128xbf16>
    %137 = vector.shape_cast %136 : vector<1x4x128xbf16> to vector<4x128xbf16>
    %cst_123 = arith.constant dense<0.000000e+00> : vector<8x128xf32>
    %138 = tpu.matmul %130, %137, %cst_123 {dimension_numbers = #tpu.dot_dimension_numbers<[1], [0], [0], [1], [0, 0, 1, 1], [], []>} : vector<8x4xbf16>, vector<4x128xbf16>, vector<8x128xf32> -> vector<8x128xf32>
    %139 = arith.addf %135, %138 : vector<8x128xf32>
    %c5_124 = arith.constant 5 : index
    %c0_125 = arith.constant 0 : index
    %c0_126 = arith.constant 0 : index
    %140 = vector.load %arg5[%c5_124, %c0_125, %c0_126] : memref<9x4x128xbf16, #tpu.memory_space<vmem>>, vector<1x4x128xbf16>
    %141 = vector.shape_cast %140 : vector<1x4x128xbf16> to vector<4x128xbf16>
    %cst_127 = arith.constant dense<0.000000e+00> : vector<8x128xf32>
    %142 = tpu.matmul %131, %141, %cst_127 {dimension_numbers = #tpu.dot_dimension_numbers<[1], [0], [0], [1], [0, 0, 1, 1], [], []>} : vector<8x4xbf16>, vector<4x128xbf16>, vector<8x128xf32> -> vector<8x128xf32>
    %143 = arith.addf %139, %142 : vector<8x128xf32>
    %c0_128 = arith.constant 0 : index
    %c6_129 = arith.constant 6 : index
    %c0_130 = arith.constant 0 : index
    %c0_131 = arith.constant 0 : index
    %144 = vector.load %arg3[%c0_128, %c6_129, %c0_130, %c0_131] : memref<1x16x9x8xbf16, #tpu.memory_space<vmem>>, vector<1x1x9x8xbf16>
    %145 = vector.shape_cast %144 : vector<1x1x9x8xbf16> to vector<9x8xbf16>
    %146 = vector.extract_strided_slice %145 {offsets = [0, 0], sizes = [8, 4], strides = [1, 1]} : vector<9x8xbf16> to vector<8x4xbf16>
    %147 = vector.extract_strided_slice %145 {offsets = [0, 4], sizes = [8, 4], strides = [1, 1]} : vector<9x8xbf16> to vector<8x4xbf16>
    %148 = vector.extract_strided_slice %145 {offsets = [1, 0], sizes = [8, 4], strides = [1, 1]} : vector<9x8xbf16> to vector<8x4xbf16>
    %c6_132 = arith.constant 6 : index
    %c0_133 = arith.constant 0 : index
    %c0_134 = arith.constant 0 : index
    %149 = vector.load %arg5[%c6_132, %c0_133, %c0_134] : memref<9x4x128xbf16, #tpu.memory_space<vmem>>, vector<1x4x128xbf16>
    %150 = vector.shape_cast %149 : vector<1x4x128xbf16> to vector<4x128xbf16>
    %cst_135 = arith.constant dense<0.000000e+00> : vector<8x128xf32>
    %151 = tpu.matmul %146, %150, %cst_135 {dimension_numbers = #tpu.dot_dimension_numbers<[1], [0], [0], [1], [0, 0, 1, 1], [], []>} : vector<8x4xbf16>, vector<4x128xbf16>, vector<8x128xf32> -> vector<8x128xf32>
    %152 = arith.addf %143, %151 : vector<8x128xf32>
    %c7_136 = arith.constant 7 : index
    %c0_137 = arith.constant 0 : index
    %c0_138 = arith.constant 0 : index
    %153 = vector.load %arg5[%c7_136, %c0_137, %c0_138] : memref<9x4x128xbf16, #tpu.memory_space<vmem>>, vector<1x4x128xbf16>
    %154 = vector.shape_cast %153 : vector<1x4x128xbf16> to vector<4x128xbf16>
    %cst_139 = arith.constant dense<0.000000e+00> : vector<8x128xf32>
    %155 = tpu.matmul %147, %154, %cst_139 {dimension_numbers = #tpu.dot_dimension_numbers<[1], [0], [0], [1], [0, 0, 1, 1], [], []>} : vector<8x4xbf16>, vector<4x128xbf16>, vector<8x128xf32> -> vector<8x128xf32>
    %156 = arith.addf %152, %155 : vector<8x128xf32>
    %c8_140 = arith.constant 8 : index
    %c0_141 = arith.constant 0 : index
    %c0_142 = arith.constant 0 : index
    %157 = vector.load %arg5[%c8_140, %c0_141, %c0_142] : memref<9x4x128xbf16, #tpu.memory_space<vmem>>, vector<1x4x128xbf16>
    %158 = vector.shape_cast %157 : vector<1x4x128xbf16> to vector<4x128xbf16>
    %cst_143 = arith.constant dense<0.000000e+00> : vector<8x128xf32>
    %159 = tpu.matmul %148, %158, %cst_143 {dimension_numbers = #tpu.dot_dimension_numbers<[1], [0], [0], [1], [0, 0, 1, 1], [], []>} : vector<8x4xbf16>, vector<4x128xbf16>, vector<8x128xf32> -> vector<8x128xf32>
    %160 = arith.addf %156, %159 : vector<8x128xf32>
    %161 = vector.broadcast %0 : vector<1x128xf32> to vector<8x128xf32>
    %162 = arith.addf %160, %161 : vector<8x128xf32>
    %c0_144 = arith.constant 0 : index
    %c2_145 = arith.constant 2 : index
    %c0_146 = arith.constant 0 : index
    %c0_147 = arith.constant 0 : index
    %163 = vector.load %arg7[%c0_144, %c2_145, %c0_146, %c0_147] : memref<1x8x8x128xf32, #tpu.memory_space<vmem>>, vector<1x1x8x128xf32>
    %164 = vector.shape_cast %163 : vector<1x1x8x128xf32> to vector<8x128xf32>
    %165 = vector.shape_cast %162 : vector<8x128xf32> to vector<1x1x8x128xf32>
    tpu.vector_store %arg7[%c0_144, %c2_145, %c0_146, %c0_147], %165 {strides = array<i32>} : memref<1x8x8x128xf32, #tpu.memory_space<vmem>>, vector<1x1x8x128xf32>,
    %c0_148 = arith.constant 0 : index
    %c6_149 = arith.constant 6 : index
    %c0_150 = arith.constant 0 : index
    %c0_151 = arith.constant 0 : index
    %166 = vector.load %arg3[%c0_148, %c6_149, %c0_150, %c0_151] : memref<1x16x9x8xbf16, #tpu.memory_space<vmem>>, vector<1x1x9x8xbf16>
    %167 = vector.shape_cast %166 : vector<1x1x9x8xbf16> to vector<9x8xbf16>
    %168 = vector.extract_strided_slice %167 {offsets = [0, 0], sizes = [8, 4], strides = [1, 1]} : vector<9x8xbf16> to vector<8x4xbf16>
    %169 = vector.extract_strided_slice %167 {offsets = [0, 4], sizes = [8, 4], strides = [1, 1]} : vector<9x8xbf16> to vector<8x4xbf16>
    %170 = vector.extract_strided_slice %167 {offsets = [1, 0], sizes = [8, 4], strides = [1, 1]} : vector<9x8xbf16> to vector<8x4xbf16>
    %c0_152 = arith.constant 0 : index
    %c0_153 = arith.constant 0 : index
    %c0_154 = arith.constant 0 : index
    %171 = vector.load %arg5[%c0_152, %c0_153, %c0_154] : memref<9x4x128xbf16, #tpu.memory_space<vmem>>, vector<1x4x128xbf16>
    %172 = vector.shape_cast %171 : vector<1x4x128xbf16> to vector<4x128xbf16>
    %cst_155 = arith.constant dense<0.000000e+00> : vector<8x128xf32>
    %173 = tpu.matmul %168, %172, %cst_155 {dimension_numbers = #tpu.dot_dimension_numbers<[1], [0], [0], [1], [0, 0, 1, 1], [], []>} : vector<8x4xbf16>, vector<4x128xbf16>, vector<8x128xf32> -> vector<8x128xf32>
    %c1_156 = arith.constant 1 : index
    %c0_157 = arith.constant 0 : index
    %c0_158 = arith.constant 0 : index
    %174 = vector.load %arg5[%c1_156, %c0_157, %c0_158] : memref<9x4x128xbf16, #tpu.memory_space<vmem>>, vector<1x4x128xbf16>
    %175 = vector.shape_cast %174 : vector<1x4x128xbf16> to vector<4x128xbf16>
    %cst_159 = arith.constant dense<0.000000e+00> : vector<8x128xf32>
    %176 = tpu.matmul %169, %175, %cst_159 {dimension_numbers = #tpu.dot_dimension_numbers<[1], [0], [0], [1], [0, 0, 1, 1], [], []>} : vector<8x4xbf16>, vector<4x128xbf16>, vector<8x128xf32> -> vector<8x128xf32>
    %177 = arith.addf %173, %176 : vector<8x128xf32>
    %c2_160 = arith.constant 2 : index
    %c0_161 = arith.constant 0 : index
    %c0_162 = arith.constant 0 : index
    %178 = vector.load %arg5[%c2_160, %c0_161, %c0_162] : memref<9x4x128xbf16, #tpu.memory_space<vmem>>, vector<1x4x128xbf16>
    %179 = vector.shape_cast %178 : vector<1x4x128xbf16> to vector<4x128xbf16>
    %cst_163 = arith.constant dense<0.000000e+00> : vector<8x128xf32>
    %180 = tpu.matmul %170, %179, %cst_163 {dimension_numbers = #tpu.dot_dimension_numbers<[1], [0], [0], [1], [0, 0, 1, 1], [], []>} : vector<8x4xbf16>, vector<4x128xbf16>, vector<8x128xf32> -> vector<8x128xf32>
    %181 = arith.addf %177, %180 : vector<8x128xf32>
    %c0_164 = arith.constant 0 : index
    %c7_165 = arith.constant 7 : index
    %c0_166 = arith.constant 0 : index
    %c0_167 = arith.constant 0 : index
    %182 = vector.load %arg3[%c0_164, %c7_165, %c0_166, %c0_167] : memref<1x16x9x8xbf16, #tpu.memory_space<vmem>>, vector<1x1x9x8xbf16>
    %183 = vector.shape_cast %182 : vector<1x1x9x8xbf16> to vector<9x8xbf16>
    %184 = vector.extract_strided_slice %183 {offsets = [0, 0], sizes = [8, 4], strides = [1, 1]} : vector<9x8xbf16> to vector<8x4xbf16>
    %185 = vector.extract_strided_slice %183 {offsets = [0, 4], sizes = [8, 4], strides = [1, 1]} : vector<9x8xbf16> to vector<8x4xbf16>
    %186 = vector.extract_strided_slice %183 {offsets = [1, 0], sizes = [8, 4], strides = [1, 1]} : vector<9x8xbf16> to vector<8x4xbf16>
    %c3_168 = arith.constant 3 : index
    %c0_169 = arith.constant 0 : index
    %c0_170 = arith.constant 0 : index
    %187 = vector.load %arg5[%c3_168, %c0_169, %c0_170] : memref<9x4x128xbf16, #tpu.memory_space<vmem>>, vector<1x4x128xbf16>
    %188 = vector.shape_cast %187 : vector<1x4x128xbf16> to vector<4x128xbf16>
    %cst_171 = arith.constant dense<0.000000e+00> : vector<8x128xf32>
    %189 = tpu.matmul %184, %188, %cst_171 {dimension_numbers = #tpu.dot_dimension_numbers<[1], [0], [0], [1], [0, 0, 1, 1], [], []>} : vector<8x4xbf16>, vector<4x128xbf16>, vector<8x128xf32> -> vector<8x128xf32>
    %190 = arith.addf %181, %189 : vector<8x128xf32>
    %c4_172 = arith.constant 4 : index
    %c0_173 = arith.constant 0 : index
    %c0_174 = arith.constant 0 : index
    %191 = vector.load %arg5[%c4_172, %c0_173, %c0_174] : memref<9x4x128xbf16, #tpu.memory_space<vmem>>, vector<1x4x128xbf16>
    %192 = vector.shape_cast %191 : vector<1x4x128xbf16> to vector<4x128xbf16>
    %cst_175 = arith.constant dense<0.000000e+00> : vector<8x128xf32>
    %193 = tpu.matmul %185, %192, %cst_175 {dimension_numbers = #tpu.dot_dimension_numbers<[1], [0], [0], [1], [0, 0, 1, 1], [], []>} : vector<8x4xbf16>, vector<4x128xbf16>, vector<8x128xf32> -> vector<8x128xf32>
    %194 = arith.addf %190, %193 : vector<8x128xf32>
    %c5_176 = arith.constant 5 : index
    %c0_177 = arith.constant 0 : index
    %c0_178 = arith.constant 0 : index
    %195 = vector.load %arg5[%c5_176, %c0_177, %c0_178] : memref<9x4x128xbf16, #tpu.memory_space<vmem>>, vector<1x4x128xbf16>
    %196 = vector.shape_cast %195 : vector<1x4x128xbf16> to vector<4x128xbf16>
    %cst_179 = arith.constant dense<0.000000e+00> : vector<8x128xf32>
    %197 = tpu.matmul %186, %196, %cst_179 {dimension_numbers = #tpu.dot_dimension_numbers<[1], [0], [0], [1], [0, 0, 1, 1], [], []>} : vector<8x4xbf16>, vector<4x128xbf16>, vector<8x128xf32> -> vector<8x128xf32>
    %198 = arith.addf %194, %197 : vector<8x128xf32>
    %c0_180 = arith.constant 0 : index
    %c8_181 = arith.constant 8 : index
    %c0_182 = arith.constant 0 : index
    %c0_183 = arith.constant 0 : index
    %199 = vector.load %arg3[%c0_180, %c8_181, %c0_182, %c0_183] : memref<1x16x9x8xbf16, #tpu.memory_space<vmem>>, vector<1x1x9x8xbf16>
    %200 = vector.shape_cast %199 : vector<1x1x9x8xbf16> to vector<9x8xbf16>
    %201 = vector.extract_strided_slice %200 {offsets = [0, 0], sizes = [8, 4], strides = [1, 1]} : vector<9x8xbf16> to vector<8x4xbf16>
    %202 = vector.extract_strided_slice %200 {offsets = [0, 4], sizes = [8, 4], strides = [1, 1]} : vector<9x8xbf16> to vector<8x4xbf16>
    %203 = vector.extract_strided_slice %200 {offsets = [1, 0], sizes = [8, 4], strides = [1, 1]} : vector<9x8xbf16> to vector<8x4xbf16>
    %c6_184 = arith.constant 6 : index
    %c0_185 = arith.constant 0 : index
    %c0_186 = arith.constant 0 : index
    %204 = vector.load %arg5[%c6_184, %c0_185, %c0_186] : memref<9x4x128xbf16, #tpu.memory_space<vmem>>, vector<1x4x128xbf16>
    %205 = vector.shape_cast %204 : vector<1x4x128xbf16> to vector<4x128xbf16>
    %cst_187 = arith.constant dense<0.000000e+00> : vector<8x128xf32>
    %206 = tpu.matmul %201, %205, %cst_187 {dimension_numbers = #tpu.dot_dimension_numbers<[1], [0], [0], [1], [0, 0, 1, 1], [], []>} : vector<8x4xbf16>, vector<4x128xbf16>, vector<8x128xf32> -> vector<8x128xf32>
    %207 = arith.addf %198, %206 : vector<8x128xf32>
    %c7_188 = arith.constant 7 : index
    %c0_189 = arith.constant 0 : index
    %c0_190 = arith.constant 0 : index
    %208 = vector.load %arg5[%c7_188, %c0_189, %c0_190] : memref<9x4x128xbf16, #tpu.memory_space<vmem>>, vector<1x4x128xbf16>
    %209 = vector.shape_cast %208 : vector<1x4x128xbf16> to vector<4x128xbf16>
    %cst_191 = arith.constant dense<0.000000e+00> : vector<8x128xf32>
    %210 = tpu.matmul %202, %209, %cst_191 {dimension_numbers = #tpu.dot_dimension_numbers<[1], [0], [0], [1], [0, 0, 1, 1], [], []>} : vector<8x4xbf16>, vector<4x128xbf16>, vector<8x128xf32> -> vector<8x128xf32>
    %211 = arith.addf %207, %210 : vector<8x128xf32>
    %c8_192 = arith.constant 8 : index
    %c0_193 = arith.constant 0 : index
    %c0_194 = arith.constant 0 : index
    %212 = vector.load %arg5[%c8_192, %c0_193, %c0_194] : memref<9x4x128xbf16, #tpu.memory_space<vmem>>, vector<1x4x128xbf16>
    %213 = vector.shape_cast %212 : vector<1x4x128xbf16> to vector<4x128xbf16>
    %cst_195 = arith.constant dense<0.000000e+00> : vector<8x128xf32>
    %214 = tpu.matmul %203, %213, %cst_195 {dimension_numbers = #tpu.dot_dimension_numbers<[1], [0], [0], [1], [0, 0, 1, 1], [], []>} : vector<8x4xbf16>, vector<4x128xbf16>, vector<8x128xf32> -> vector<8x128xf32>
    %215 = arith.addf %211, %214 : vector<8x128xf32>
    %216 = vector.broadcast %0 : vector<1x128xf32> to vector<8x128xf32>
    %217 = arith.addf %215, %216 : vector<8x128xf32>
    %c0_196 = arith.constant 0 : index
    %c3_197 = arith.constant 3 : index
    %c0_198 = arith.constant 0 : index
    %c0_199 = arith.constant 0 : index
    %218 = vector.load %arg7[%c0_196, %c3_197, %c0_198, %c0_199] : memref<1x8x8x128xf32, #tpu.memory_space<vmem>>, vector<1x1x8x128xf32>
    %219 = vector.shape_cast %218 : vector<1x1x8x128xf32> to vector<8x128xf32>
    %220 = vector.shape_cast %217 : vector<8x128xf32> to vector<1x1x8x128xf32>
    tpu.vector_store %arg7[%c0_196, %c3_197, %c0_198, %c0_199], %220 {strides = array<i32>} : memref<1x8x8x128xf32, #tpu.memory_space<vmem>>, vector<1x1x8x128xf32>,
    %c0_200 = arith.constant 0 : index
    %c8_201 = arith.constant 8 : index
    %c0_202 = arith.constant 0 : index
    %c0_203 = arith.constant 0 : index
    %221 = vector.load %arg3[%c0_200, %c8_201, %c0_202, %c0_203] : memref<1x16x9x8xbf16, #tpu.memory_space<vmem>>, vector<1x1x9x8xbf16>
    %222 = vector.shape_cast %221 : vector<1x1x9x8xbf16> to vector<9x8xbf16>
    %223 = vector.extract_strided_slice %222 {offsets = [0, 0], sizes = [8, 4], strides = [1, 1]} : vector<9x8xbf16> to vector<8x4xbf16>
    %224 = vector.extract_strided_slice %222 {offsets = [0, 4], sizes = [8, 4], strides = [1, 1]} : vector<9x8xbf16> to vector<8x4xbf16>
    %225 = vector.extract_strided_slice %222 {offsets = [1, 0], sizes = [8, 4], strides = [1, 1]} : vector<9x8xbf16> to vector<8x4xbf16>
    %c0_204 = arith.constant 0 : index
    %c0_205 = arith.constant 0 : index
    %c0_206 = arith.constant 0 : index
    %226 = vector.load %arg5[%c0_204, %c0_205, %c0_206] : memref<9x4x128xbf16, #tpu.memory_space<vmem>>, vector<1x4x128xbf16>
    %227 = vector.shape_cast %226 : vector<1x4x128xbf16> to vector<4x128xbf16>
    %cst_207 = arith.constant dense<0.000000e+00> : vector<8x128xf32>
    %228 = tpu.matmul %223, %227, %cst_207 {dimension_numbers = #tpu.dot_dimension_numbers<[1], [0], [0], [1], [0, 0, 1, 1], [], []>} : vector<8x4xbf16>, vector<4x128xbf16>, vector<8x128xf32> -> vector<8x128xf32>
    %c1_208 = arith.constant 1 : index
    %c0_209 = arith.constant 0 : index
    %c0_210 = arith.constant 0 : index
    %229 = vector.load %arg5[%c1_208, %c0_209, %c0_210] : memref<9x4x128xbf16, #tpu.memory_space<vmem>>, vector<1x4x128xbf16>
    %230 = vector.shape_cast %229 : vector<1x4x128xbf16> to vector<4x128xbf16>
    %cst_211 = arith.constant dense<0.000000e+00> : vector<8x128xf32>
    %231 = tpu.matmul %224, %230, %cst_211 {dimension_numbers = #tpu.dot_dimension_numbers<[1], [0], [0], [1], [0, 0, 1, 1], [], []>} : vector<8x4xbf16>, vector<4x128xbf16>, vector<8x128xf32> -> vector<8x128xf32>
    %232 = arith.addf %228, %231 : vector<8x128xf32>
    %c2_212 = arith.constant 2 : index
    %c0_213 = arith.constant 0 : index
    %c0_214 = arith.constant 0 : index
    %233 = vector.load %arg5[%c2_212, %c0_213, %c0_214] : memref<9x4x128xbf16, #tpu.memory_space<vmem>>, vector<1x4x128xbf16>
    %234 = vector.shape_cast %233 : vector<1x4x128xbf16> to vector<4x128xbf16>
    %cst_215 = arith.constant dense<0.000000e+00> : vector<8x128xf32>
    %235 = tpu.matmul %225, %234, %cst_215 {dimension_numbers = #tpu.dot_dimension_numbers<[1], [0], [0], [1], [0, 0, 1, 1], [], []>} : vector<8x4xbf16>, vector<4x128xbf16>, vector<8x128xf32> -> vector<8x128xf32>
    %236 = arith.addf %232, %235 : vector<8x128xf32>
    %c0_216 = arith.constant 0 : index
    %c9 = arith.constant 9 : index
    %c0_217 = arith.constant 0 : index
    %c0_218 = arith.constant 0 : index
    %237 = vector.load %arg3[%c0_216, %c9, %c0_217, %c0_218] : memref<1x16x9x8xbf16, #tpu.memory_space<vmem>>, vector<1x1x9x8xbf16>
    %238 = vector.shape_cast %237 : vector<1x1x9x8xbf16> to vector<9x8xbf16>
    %239 = vector.extract_strided_slice %238 {offsets = [0, 0], sizes = [8, 4], strides = [1, 1]} : vector<9x8xbf16> to vector<8x4xbf16>
    %240 = vector.extract_strided_slice %238 {offsets = [0, 4], sizes = [8, 4], strides = [1, 1]} : vector<9x8xbf16> to vector<8x4xbf16>
    %241 = vector.extract_strided_slice %238 {offsets = [1, 0], sizes = [8, 4], strides = [1, 1]} : vector<9x8xbf16> to vector<8x4xbf16>
    %c3_219 = arith.constant 3 : index
    %c0_220 = arith.constant 0 : index
    %c0_221 = arith.constant 0 : index
    %242 = vector.load %arg5[%c3_219, %c0_220, %c0_221] : memref<9x4x128xbf16, #tpu.memory_space<vmem>>, vector<1x4x128xbf16>
    %243 = vector.shape_cast %242 : vector<1x4x128xbf16> to vector<4x128xbf16>
    %cst_222 = arith.constant dense<0.000000e+00> : vector<8x128xf32>
    %244 = tpu.matmul %239, %243, %cst_222 {dimension_numbers = #tpu.dot_dimension_numbers<[1], [0], [0], [1], [0, 0, 1, 1], [], []>} : vector<8x4xbf16>, vector<4x128xbf16>, vector<8x128xf32> -> vector<8x128xf32>
    %245 = arith.addf %236, %244 : vector<8x128xf32>
    %c4_223 = arith.constant 4 : index
    %c0_224 = arith.constant 0 : index
    %c0_225 = arith.constant 0 : index
    %246 = vector.load %arg5[%c4_223, %c0_224, %c0_225] : memref<9x4x128xbf16, #tpu.memory_space<vmem>>, vector<1x4x128xbf16>
    %247 = vector.shape_cast %246 : vector<1x4x128xbf16> to vector<4x128xbf16>
    %cst_226 = arith.constant dense<0.000000e+00> : vector<8x128xf32>
    %248 = tpu.matmul %240, %247, %cst_226 {dimension_numbers = #tpu.dot_dimension_numbers<[1], [0], [0], [1], [0, 0, 1, 1], [], []>} : vector<8x4xbf16>, vector<4x128xbf16>, vector<8x128xf32> -> vector<8x128xf32>
    %249 = arith.addf %245, %248 : vector<8x128xf32>
    %c5_227 = arith.constant 5 : index
    %c0_228 = arith.constant 0 : index
    %c0_229 = arith.constant 0 : index
    %250 = vector.load %arg5[%c5_227, %c0_228, %c0_229] : memref<9x4x128xbf16, #tpu.memory_space<vmem>>, vector<1x4x128xbf16>
    %251 = vector.shape_cast %250 : vector<1x4x128xbf16> to vector<4x128xbf16>
    %cst_230 = arith.constant dense<0.000000e+00> : vector<8x128xf32>
    %252 = tpu.matmul %241, %251, %cst_230 {dimension_numbers = #tpu.dot_dimension_numbers<[1], [0], [0], [1], [0, 0, 1, 1], [], []>} : vector<8x4xbf16>, vector<4x128xbf16>, vector<8x128xf32> -> vector<8x128xf32>
    %253 = arith.addf %249, %252 : vector<8x128xf32>
    %c0_231 = arith.constant 0 : index
    %c10 = arith.constant 10 : index
    %c0_232 = arith.constant 0 : index
    %c0_233 = arith.constant 0 : index
    %254 = vector.load %arg3[%c0_231, %c10, %c0_232, %c0_233] : memref<1x16x9x8xbf16, #tpu.memory_space<vmem>>, vector<1x1x9x8xbf16>
    %255 = vector.shape_cast %254 : vector<1x1x9x8xbf16> to vector<9x8xbf16>
    %256 = vector.extract_strided_slice %255 {offsets = [0, 0], sizes = [8, 4], strides = [1, 1]} : vector<9x8xbf16> to vector<8x4xbf16>
    %257 = vector.extract_strided_slice %255 {offsets = [0, 4], sizes = [8, 4], strides = [1, 1]} : vector<9x8xbf16> to vector<8x4xbf16>
    %258 = vector.extract_strided_slice %255 {offsets = [1, 0], sizes = [8, 4], strides = [1, 1]} : vector<9x8xbf16> to vector<8x4xbf16>
    %c6_234 = arith.constant 6 : index
    %c0_235 = arith.constant 0 : index
    %c0_236 = arith.constant 0 : index
    %259 = vector.load %arg5[%c6_234, %c0_235, %c0_236] : memref<9x4x128xbf16, #tpu.memory_space<vmem>>, vector<1x4x128xbf16>
    %260 = vector.shape_cast %259 : vector<1x4x128xbf16> to vector<4x128xbf16>
    %cst_237 = arith.constant dense<0.000000e+00> : vector<8x128xf32>
    %261 = tpu.matmul %256, %260, %cst_237 {dimension_numbers = #tpu.dot_dimension_numbers<[1], [0], [0], [1], [0, 0, 1, 1], [], []>} : vector<8x4xbf16>, vector<4x128xbf16>, vector<8x128xf32> -> vector<8x128xf32>
    %262 = arith.addf %253, %261 : vector<8x128xf32>
    %c7_238 = arith.constant 7 : index
    %c0_239 = arith.constant 0 : index
    %c0_240 = arith.constant 0 : index
    %263 = vector.load %arg5[%c7_238, %c0_239, %c0_240] : memref<9x4x128xbf16, #tpu.memory_space<vmem>>, vector<1x4x128xbf16>
    %264 = vector.shape_cast %263 : vector<1x4x128xbf16> to vector<4x128xbf16>
    %cst_241 = arith.constant dense<0.000000e+00> : vector<8x128xf32>
    %265 = tpu.matmul %257, %264, %cst_241 {dimension_numbers = #tpu.dot_dimension_numbers<[1], [0], [0], [1], [0, 0, 1, 1], [], []>} : vector<8x4xbf16>, vector<4x128xbf16>, vector<8x128xf32> -> vector<8x128xf32>
    %266 = arith.addf %262, %265 : vector<8x128xf32>
    %c8_242 = arith.constant 8 : index
    %c0_243 = arith.constant 0 : index
    %c0_244 = arith.constant 0 : index
    %267 = vector.load %arg5[%c8_242, %c0_243, %c0_244] : memref<9x4x128xbf16, #tpu.memory_space<vmem>>, vector<1x4x128xbf16>
    %268 = vector.shape_cast %267 : vector<1x4x128xbf16> to vector<4x128xbf16>
    %cst_245 = arith.constant dense<0.000000e+00> : vector<8x128xf32>
    %269 = tpu.matmul %258, %268, %cst_245 {dimension_numbers = #tpu.dot_dimension_numbers<[1], [0], [0], [1], [0, 0, 1, 1], [], []>} : vector<8x4xbf16>, vector<4x128xbf16>, vector<8x128xf32> -> vector<8x128xf32>
    %270 = arith.addf %266, %269 : vector<8x128xf32>
    %271 = vector.broadcast %0 : vector<1x128xf32> to vector<8x128xf32>
    %272 = arith.addf %270, %271 : vector<8x128xf32>
    %c0_246 = arith.constant 0 : index
    %c4_247 = arith.constant 4 : index
    %c0_248 = arith.constant 0 : index
    %c0_249 = arith.constant 0 : index
    %273 = vector.load %arg7[%c0_246, %c4_247, %c0_248, %c0_249] : memref<1x8x8x128xf32, #tpu.memory_space<vmem>>, vector<1x1x8x128xf32>
    %274 = vector.shape_cast %273 : vector<1x1x8x128xf32> to vector<8x128xf32>
    %275 = vector.shape_cast %272 : vector<8x128xf32> to vector<1x1x8x128xf32>
    tpu.vector_store %arg7[%c0_246, %c4_247, %c0_248, %c0_249], %275 {strides = array<i32>} : memref<1x8x8x128xf32, #tpu.memory_space<vmem>>, vector<1x1x8x128xf32>,
    %c0_250 = arith.constant 0 : index
    %c10_251 = arith.constant 10 : index
    %c0_252 = arith.constant 0 : index
    %c0_253 = arith.constant 0 : index
    %276 = vector.load %arg3[%c0_250, %c10_251, %c0_252, %c0_253] : memref<1x16x9x8xbf16, #tpu.memory_space<vmem>>, vector<1x1x9x8xbf16>
    %277 = vector.shape_cast %276 : vector<1x1x9x8xbf16> to vector<9x8xbf16>
    %278 = vector.extract_strided_slice %277 {offsets = [0, 0], sizes = [8, 4], strides = [1, 1]} : vector<9x8xbf16> to vector<8x4xbf16>
    %279 = vector.extract_strided_slice %277 {offsets = [0, 4], sizes = [8, 4], strides = [1, 1]} : vector<9x8xbf16> to vector<8x4xbf16>
    %280 = vector.extract_strided_slice %277 {offsets = [1, 0], sizes = [8, 4], strides = [1, 1]} : vector<9x8xbf16> to vector<8x4xbf16>
    %c0_254 = arith.constant 0 : index
    %c0_255 = arith.constant 0 : index
    %c0_256 = arith.constant 0 : index
    %281 = vector.load %arg5[%c0_254, %c0_255, %c0_256] : memref<9x4x128xbf16, #tpu.memory_space<vmem>>, vector<1x4x128xbf16>
    %282 = vector.shape_cast %281 : vector<1x4x128xbf16> to vector<4x128xbf16>
    %cst_257 = arith.constant dense<0.000000e+00> : vector<8x128xf32>
    %283 = tpu.matmul %278, %282, %cst_257 {dimension_numbers = #tpu.dot_dimension_numbers<[1], [0], [0], [1], [0, 0, 1, 1], [], []>} : vector<8x4xbf16>, vector<4x128xbf16>, vector<8x128xf32> -> vector<8x128xf32>
    %c1_258 = arith.constant 1 : index
    %c0_259 = arith.constant 0 : index
    %c0_260 = arith.constant 0 : index
    %284 = vector.load %arg5[%c1_258, %c0_259, %c0_260] : memref<9x4x128xbf16, #tpu.memory_space<vmem>>, vector<1x4x128xbf16>
    %285 = vector.shape_cast %284 : vector<1x4x128xbf16> to vector<4x128xbf16>
    %cst_261 = arith.constant dense<0.000000e+00> : vector<8x128xf32>
    %286 = tpu.matmul %279, %285, %cst_261 {dimension_numbers = #tpu.dot_dimension_numbers<[1], [0], [0], [1], [0, 0, 1, 1], [], []>} : vector<8x4xbf16>, vector<4x128xbf16>, vector<8x128xf32> -> vector<8x128xf32>
    %287 = arith.addf %283, %286 : vector<8x128xf32>
    %c2_262 = arith.constant 2 : index
    %c0_263 = arith.constant 0 : index
    %c0_264 = arith.constant 0 : index
    %288 = vector.load %arg5[%c2_262, %c0_263, %c0_264] : memref<9x4x128xbf16, #tpu.memory_space<vmem>>, vector<1x4x128xbf16>
    %289 = vector.shape_cast %288 : vector<1x4x128xbf16> to vector<4x128xbf16>
    %cst_265 = arith.constant dense<0.000000e+00> : vector<8x128xf32>
    %290 = tpu.matmul %280, %289, %cst_265 {dimension_numbers = #tpu.dot_dimension_numbers<[1], [0], [0], [1], [0, 0, 1, 1], [], []>} : vector<8x4xbf16>, vector<4x128xbf16>, vector<8x128xf32> -> vector<8x128xf32>
    %291 = arith.addf %287, %290 : vector<8x128xf32>
    %c0_266 = arith.constant 0 : index
    %c11 = arith.constant 11 : index
    %c0_267 = arith.constant 0 : index
    %c0_268 = arith.constant 0 : index
    %292 = vector.load %arg3[%c0_266, %c11, %c0_267, %c0_268] : memref<1x16x9x8xbf16, #tpu.memory_space<vmem>>, vector<1x1x9x8xbf16>
    %293 = vector.shape_cast %292 : vector<1x1x9x8xbf16> to vector<9x8xbf16>
    %294 = vector.extract_strided_slice %293 {offsets = [0, 0], sizes = [8, 4], strides = [1, 1]} : vector<9x8xbf16> to vector<8x4xbf16>
    %295 = vector.extract_strided_slice %293 {offsets = [0, 4], sizes = [8, 4], strides = [1, 1]} : vector<9x8xbf16> to vector<8x4xbf16>
    %296 = vector.extract_strided_slice %293 {offsets = [1, 0], sizes = [8, 4], strides = [1, 1]} : vector<9x8xbf16> to vector<8x4xbf16>
    %c3_269 = arith.constant 3 : index
    %c0_270 = arith.constant 0 : index
    %c0_271 = arith.constant 0 : index
    %297 = vector.load %arg5[%c3_269, %c0_270, %c0_271] : memref<9x4x128xbf16, #tpu.memory_space<vmem>>, vector<1x4x128xbf16>
    %298 = vector.shape_cast %297 : vector<1x4x128xbf16> to vector<4x128xbf16>
    %cst_272 = arith.constant dense<0.000000e+00> : vector<8x128xf32>
    %299 = tpu.matmul %294, %298, %cst_272 {dimension_numbers = #tpu.dot_dimension_numbers<[1], [0], [0], [1], [0, 0, 1, 1], [], []>} : vector<8x4xbf16>, vector<4x128xbf16>, vector<8x128xf32> -> vector<8x128xf32>
    %300 = arith.addf %291, %299 : vector<8x128xf32>
    %c4_273 = arith.constant 4 : index
    %c0_274 = arith.constant 0 : index
    %c0_275 = arith.constant 0 : index
    %301 = vector.load %arg5[%c4_273, %c0_274, %c0_275] : memref<9x4x128xbf16, #tpu.memory_space<vmem>>, vector<1x4x128xbf16>
    %302 = vector.shape_cast %301 : vector<1x4x128xbf16> to vector<4x128xbf16>
    %cst_276 = arith.constant dense<0.000000e+00> : vector<8x128xf32>
    %303 = tpu.matmul %295, %302, %cst_276 {dimension_numbers = #tpu.dot_dimension_numbers<[1], [0], [0], [1], [0, 0, 1, 1], [], []>} : vector<8x4xbf16>, vector<4x128xbf16>, vector<8x128xf32> -> vector<8x128xf32>
    %304 = arith.addf %300, %303 : vector<8x128xf32>
    %c5_277 = arith.constant 5 : index
    %c0_278 = arith.constant 0 : index
    %c0_279 = arith.constant 0 : index
    %305 = vector.load %arg5[%c5_277, %c0_278, %c0_279] : memref<9x4x128xbf16, #tpu.memory_space<vmem>>, vector<1x4x128xbf16>
    %306 = vector.shape_cast %305 : vector<1x4x128xbf16> to vector<4x128xbf16>
    %cst_280 = arith.constant dense<0.000000e+00> : vector<8x128xf32>
    %307 = tpu.matmul %296, %306, %cst_280 {dimension_numbers = #tpu.dot_dimension_numbers<[1], [0], [0], [1], [0, 0, 1, 1], [], []>} : vector<8x4xbf16>, vector<4x128xbf16>, vector<8x128xf32> -> vector<8x128xf32>
    %308 = arith.addf %304, %307 : vector<8x128xf32>
    %c0_281 = arith.constant 0 : index
    %c12 = arith.constant 12 : index
    %c0_282 = arith.constant 0 : index
    %c0_283 = arith.constant 0 : index
    %309 = vector.load %arg3[%c0_281, %c12, %c0_282, %c0_283] : memref<1x16x9x8xbf16, #tpu.memory_space<vmem>>, vector<1x1x9x8xbf16>
    %310 = vector.shape_cast %309 : vector<1x1x9x8xbf16> to vector<9x8xbf16>
    %311 = vector.extract_strided_slice %310 {offsets = [0, 0], sizes = [8, 4], strides = [1, 1]} : vector<9x8xbf16> to vector<8x4xbf16>
    %312 = vector.extract_strided_slice %310 {offsets = [0, 4], sizes = [8, 4], strides = [1, 1]} : vector<9x8xbf16> to vector<8x4xbf16>
    %313 = vector.extract_strided_slice %310 {offsets = [1, 0], sizes = [8, 4], strides = [1, 1]} : vector<9x8xbf16> to vector<8x4xbf16>
    %c6_284 = arith.constant 6 : index
    %c0_285 = arith.constant 0 : index
    %c0_286 = arith.constant 0 : index
    %314 = vector.load %arg5[%c6_284, %c0_285, %c0_286] : memref<9x4x128xbf16, #tpu.memory_space<vmem>>, vector<1x4x128xbf16>
    %315 = vector.shape_cast %314 : vector<1x4x128xbf16> to vector<4x128xbf16>
    %cst_287 = arith.constant dense<0.000000e+00> : vector<8x128xf32>
    %316 = tpu.matmul %311, %315, %cst_287 {dimension_numbers = #tpu.dot_dimension_numbers<[1], [0], [0], [1], [0, 0, 1, 1], [], []>} : vector<8x4xbf16>, vector<4x128xbf16>, vector<8x128xf32> -> vector<8x128xf32>
    %317 = arith.addf %308, %316 : vector<8x128xf32>
    %c7_288 = arith.constant 7 : index
    %c0_289 = arith.constant 0 : index
    %c0_290 = arith.constant 0 : index
    %318 = vector.load %arg5[%c7_288, %c0_289, %c0_290] : memref<9x4x128xbf16, #tpu.memory_space<vmem>>, vector<1x4x128xbf16>
    %319 = vector.shape_cast %318 : vector<1x4x128xbf16> to vector<4x128xbf16>
    %cst_291 = arith.constant dense<0.000000e+00> : vector<8x128xf32>
    %320 = tpu.matmul %312, %319, %cst_291 {dimension_numbers = #tpu.dot_dimension_numbers<[1], [0], [0], [1], [0, 0, 1, 1], [], []>} : vector<8x4xbf16>, vector<4x128xbf16>, vector<8x128xf32> -> vector<8x128xf32>
    %321 = arith.addf %317, %320 : vector<8x128xf32>
    %c8_292 = arith.constant 8 : index
    %c0_293 = arith.constant 0 : index
    %c0_294 = arith.constant 0 : index
    %322 = vector.load %arg5[%c8_292, %c0_293, %c0_294] : memref<9x4x128xbf16, #tpu.memory_space<vmem>>, vector<1x4x128xbf16>
    %323 = vector.shape_cast %322 : vector<1x4x128xbf16> to vector<4x128xbf16>
    %cst_295 = arith.constant dense<0.000000e+00> : vector<8x128xf32>
    %324 = tpu.matmul %313, %323, %cst_295 {dimension_numbers = #tpu.dot_dimension_numbers<[1], [0], [0], [1], [0, 0, 1, 1], [], []>} : vector<8x4xbf16>, vector<4x128xbf16>, vector<8x128xf32> -> vector<8x128xf32>
    %325 = arith.addf %321, %324 : vector<8x128xf32>
    %326 = vector.broadcast %0 : vector<1x128xf32> to vector<8x128xf32>
    %327 = arith.addf %325, %326 : vector<8x128xf32>
    %c0_296 = arith.constant 0 : index
    %c5_297 = arith.constant 5 : index
    %c0_298 = arith.constant 0 : index
    %c0_299 = arith.constant 0 : index
    %328 = vector.load %arg7[%c0_296, %c5_297, %c0_298, %c0_299] : memref<1x8x8x128xf32, #tpu.memory_space<vmem>>, vector<1x1x8x128xf32>
    %329 = vector.shape_cast %328 : vector<1x1x8x128xf32> to vector<8x128xf32>
    %330 = vector.shape_cast %327 : vector<8x128xf32> to vector<1x1x8x128xf32>
    tpu.vector_store %arg7[%c0_296, %c5_297, %c0_298, %c0_299], %330 {strides = array<i32>} : memref<1x8x8x128xf32, #tpu.memory_space<vmem>>, vector<1x1x8x128xf32>,
    %c0_300 = arith.constant 0 : index
    %c12_301 = arith.constant 12 : index
    %c0_302 = arith.constant 0 : index
    %c0_303 = arith.constant 0 : index
    %331 = vector.load %arg3[%c0_300, %c12_301, %c0_302, %c0_303] : memref<1x16x9x8xbf16, #tpu.memory_space<vmem>>, vector<1x1x9x8xbf16>
    %332 = vector.shape_cast %331 : vector<1x1x9x8xbf16> to vector<9x8xbf16>
    %333 = vector.extract_strided_slice %332 {offsets = [0, 0], sizes = [8, 4], strides = [1, 1]} : vector<9x8xbf16> to vector<8x4xbf16>
    %334 = vector.extract_strided_slice %332 {offsets = [0, 4], sizes = [8, 4], strides = [1, 1]} : vector<9x8xbf16> to vector<8x4xbf16>
    %335 = vector.extract_strided_slice %332 {offsets = [1, 0], sizes = [8, 4], strides = [1, 1]} : vector<9x8xbf16> to vector<8x4xbf16>
    %c0_304 = arith.constant 0 : index
    %c0_305 = arith.constant 0 : index
    %c0_306 = arith.constant 0 : index
    %336 = vector.load %arg5[%c0_304, %c0_305, %c0_306] : memref<9x4x128xbf16, #tpu.memory_space<vmem>>, vector<1x4x128xbf16>
    %337 = vector.shape_cast %336 : vector<1x4x128xbf16> to vector<4x128xbf16>
    %cst_307 = arith.constant dense<0.000000e+00> : vector<8x128xf32>
    %338 = tpu.matmul %333, %337, %cst_307 {dimension_numbers = #tpu.dot_dimension_numbers<[1], [0], [0], [1], [0, 0, 1, 1], [], []>} : vector<8x4xbf16>, vector<4x128xbf16>, vector<8x128xf32> -> vector<8x128xf32>
    %c1_308 = arith.constant 1 : index
    %c0_309 = arith.constant 0 : index
    %c0_310 = arith.constant 0 : index
    %339 = vector.load %arg5[%c1_308, %c0_309, %c0_310] : memref<9x4x128xbf16, #tpu.memory_space<vmem>>, vector<1x4x128xbf16>
    %340 = vector.shape_cast %339 : vector<1x4x128xbf16> to vector<4x128xbf16>
    %cst_311 = arith.constant dense<0.000000e+00> : vector<8x128xf32>
    %341 = tpu.matmul %334, %340, %cst_311 {dimension_numbers = #tpu.dot_dimension_numbers<[1], [0], [0], [1], [0, 0, 1, 1], [], []>} : vector<8x4xbf16>, vector<4x128xbf16>, vector<8x128xf32> -> vector<8x128xf32>
    %342 = arith.addf %338, %341 : vector<8x128xf32>
    %c2_312 = arith.constant 2 : index
    %c0_313 = arith.constant 0 : index
    %c0_314 = arith.constant 0 : index
    %343 = vector.load %arg5[%c2_312, %c0_313, %c0_314] : memref<9x4x128xbf16, #tpu.memory_space<vmem>>, vector<1x4x128xbf16>
    %344 = vector.shape_cast %343 : vector<1x4x128xbf16> to vector<4x128xbf16>
    %cst_315 = arith.constant dense<0.000000e+00> : vector<8x128xf32>
    %345 = tpu.matmul %335, %344, %cst_315 {dimension_numbers = #tpu.dot_dimension_numbers<[1], [0], [0], [1], [0, 0, 1, 1], [], []>} : vector<8x4xbf16>, vector<4x128xbf16>, vector<8x128xf32> -> vector<8x128xf32>
    %346 = arith.addf %342, %345 : vector<8x128xf32>
    %c0_316 = arith.constant 0 : index
    %c13 = arith.constant 13 : index
    %c0_317 = arith.constant 0 : index
    %c0_318 = arith.constant 0 : index
    %347 = vector.load %arg3[%c0_316, %c13, %c0_317, %c0_318] : memref<1x16x9x8xbf16, #tpu.memory_space<vmem>>, vector<1x1x9x8xbf16>
    %348 = vector.shape_cast %347 : vector<1x1x9x8xbf16> to vector<9x8xbf16>
    %349 = vector.extract_strided_slice %348 {offsets = [0, 0], sizes = [8, 4], strides = [1, 1]} : vector<9x8xbf16> to vector<8x4xbf16>
    %350 = vector.extract_strided_slice %348 {offsets = [0, 4], sizes = [8, 4], strides = [1, 1]} : vector<9x8xbf16> to vector<8x4xbf16>
    %351 = vector.extract_strided_slice %348 {offsets = [1, 0], sizes = [8, 4], strides = [1, 1]} : vector<9x8xbf16> to vector<8x4xbf16>
    %c3_319 = arith.constant 3 : index
    %c0_320 = arith.constant 0 : index
    %c0_321 = arith.constant 0 : index
    %352 = vector.load %arg5[%c3_319, %c0_320, %c0_321] : memref<9x4x128xbf16, #tpu.memory_space<vmem>>, vector<1x4x128xbf16>
    %353 = vector.shape_cast %352 : vector<1x4x128xbf16> to vector<4x128xbf16>
    %cst_322 = arith.constant dense<0.000000e+00> : vector<8x128xf32>
    %354 = tpu.matmul %349, %353, %cst_322 {dimension_numbers = #tpu.dot_dimension_numbers<[1], [0], [0], [1], [0, 0, 1, 1], [], []>} : vector<8x4xbf16>, vector<4x128xbf16>, vector<8x128xf32> -> vector<8x128xf32>
    %355 = arith.addf %346, %354 : vector<8x128xf32>
    %c4_323 = arith.constant 4 : index
    %c0_324 = arith.constant 0 : index
    %c0_325 = arith.constant 0 : index
    %356 = vector.load %arg5[%c4_323, %c0_324, %c0_325] : memref<9x4x128xbf16, #tpu.memory_space<vmem>>, vector<1x4x128xbf16>
    %357 = vector.shape_cast %356 : vector<1x4x128xbf16> to vector<4x128xbf16>
    %cst_326 = arith.constant dense<0.000000e+00> : vector<8x128xf32>
    %358 = tpu.matmul %350, %357, %cst_326 {dimension_numbers = #tpu.dot_dimension_numbers<[1], [0], [0], [1], [0, 0, 1, 1], [], []>} : vector<8x4xbf16>, vector<4x128xbf16>, vector<8x128xf32> -> vector<8x128xf32>
    %359 = arith.addf %355, %358 : vector<8x128xf32>
    %c5_327 = arith.constant 5 : index
    %c0_328 = arith.constant 0 : index
    %c0_329 = arith.constant 0 : index
    %360 = vector.load %arg5[%c5_327, %c0_328, %c0_329] : memref<9x4x128xbf16, #tpu.memory_space<vmem>>, vector<1x4x128xbf16>
    %361 = vector.shape_cast %360 : vector<1x4x128xbf16> to vector<4x128xbf16>
    %cst_330 = arith.constant dense<0.000000e+00> : vector<8x128xf32>
    %362 = tpu.matmul %351, %361, %cst_330 {dimension_numbers = #tpu.dot_dimension_numbers<[1], [0], [0], [1], [0, 0, 1, 1], [], []>} : vector<8x4xbf16>, vector<4x128xbf16>, vector<8x128xf32> -> vector<8x128xf32>
    %363 = arith.addf %359, %362 : vector<8x128xf32>
    %c0_331 = arith.constant 0 : index
    %c14 = arith.constant 14 : index
    %c0_332 = arith.constant 0 : index
    %c0_333 = arith.constant 0 : index
    %364 = vector.load %arg3[%c0_331, %c14, %c0_332, %c0_333] : memref<1x16x9x8xbf16, #tpu.memory_space<vmem>>, vector<1x1x9x8xbf16>
    %365 = vector.shape_cast %364 : vector<1x1x9x8xbf16> to vector<9x8xbf16>
    %366 = vector.extract_strided_slice %365 {offsets = [0, 0], sizes = [8, 4], strides = [1, 1]} : vector<9x8xbf16> to vector<8x4xbf16>
    %367 = vector.extract_strided_slice %365 {offsets = [0, 4], sizes = [8, 4], strides = [1, 1]} : vector<9x8xbf16> to vector<8x4xbf16>
    %368 = vector.extract_strided_slice %365 {offsets = [1, 0], sizes = [8, 4], strides = [1, 1]} : vector<9x8xbf16> to vector<8x4xbf16>
    %c6_334 = arith.constant 6 : index
    %c0_335 = arith.constant 0 : index
    %c0_336 = arith.constant 0 : index
    %369 = vector.load %arg5[%c6_334, %c0_335, %c0_336] : memref<9x4x128xbf16, #tpu.memory_space<vmem>>, vector<1x4x128xbf16>
    %370 = vector.shape_cast %369 : vector<1x4x128xbf16> to vector<4x128xbf16>
    %cst_337 = arith.constant dense<0.000000e+00> : vector<8x128xf32>
    %371 = tpu.matmul %366, %370, %cst_337 {dimension_numbers = #tpu.dot_dimension_numbers<[1], [0], [0], [1], [0, 0, 1, 1], [], []>} : vector<8x4xbf16>, vector<4x128xbf16>, vector<8x128xf32> -> vector<8x128xf32>
    %372 = arith.addf %363, %371 : vector<8x128xf32>
    %c7_338 = arith.constant 7 : index
    %c0_339 = arith.constant 0 : index
    %c0_340 = arith.constant 0 : index
    %373 = vector.load %arg5[%c7_338, %c0_339, %c0_340] : memref<9x4x128xbf16, #tpu.memory_space<vmem>>, vector<1x4x128xbf16>
    %374 = vector.shape_cast %373 : vector<1x4x128xbf16> to vector<4x128xbf16>
    %cst_341 = arith.constant dense<0.000000e+00> : vector<8x128xf32>
    %375 = tpu.matmul %367, %374, %cst_341 {dimension_numbers = #tpu.dot_dimension_numbers<[1], [0], [0], [1], [0, 0, 1, 1], [], []>} : vector<8x4xbf16>, vector<4x128xbf16>, vector<8x128xf32> -> vector<8x128xf32>
    %376 = arith.addf %372, %375 : vector<8x128xf32>
    %c8_342 = arith.constant 8 : index
    %c0_343 = arith.constant 0 : index
    %c0_344 = arith.constant 0 : index
    %377 = vector.load %arg5[%c8_342, %c0_343, %c0_344] : memref<9x4x128xbf16, #tpu.memory_space<vmem>>, vector<1x4x128xbf16>
    %378 = vector.shape_cast %377 : vector<1x4x128xbf16> to vector<4x128xbf16>
    %cst_345 = arith.constant dense<0.000000e+00> : vector<8x128xf32>
    %379 = tpu.matmul %368, %378, %cst_345 {dimension_numbers = #tpu.dot_dimension_numbers<[1], [0], [0], [1], [0, 0, 1, 1], [], []>} : vector<8x4xbf16>, vector<4x128xbf16>, vector<8x128xf32> -> vector<8x128xf32>
    %380 = arith.addf %376, %379 : vector<8x128xf32>
    %381 = vector.broadcast %0 : vector<1x128xf32> to vector<8x128xf32>
    %382 = arith.addf %380, %381 : vector<8x128xf32>
    %c0_346 = arith.constant 0 : index
    %c6_347 = arith.constant 6 : index
    %c0_348 = arith.constant 0 : index
    %c0_349 = arith.constant 0 : index
    %383 = vector.load %arg7[%c0_346, %c6_347, %c0_348, %c0_349] : memref<1x8x8x128xf32, #tpu.memory_space<vmem>>, vector<1x1x8x128xf32>
    %384 = vector.shape_cast %383 : vector<1x1x8x128xf32> to vector<8x128xf32>
    %385 = vector.shape_cast %382 : vector<8x128xf32> to vector<1x1x8x128xf32>
    tpu.vector_store %arg7[%c0_346, %c6_347, %c0_348, %c0_349], %385 {strides = array<i32>} : memref<1x8x8x128xf32, #tpu.memory_space<vmem>>, vector<1x1x8x128xf32>,
    %c0_350 = arith.constant 0 : index
    %c14_351 = arith.constant 14 : index
    %c0_352 = arith.constant 0 : index
    %c0_353 = arith.constant 0 : index
    %386 = vector.load %arg3[%c0_350, %c14_351, %c0_352, %c0_353] : memref<1x16x9x8xbf16, #tpu.memory_space<vmem>>, vector<1x1x9x8xbf16>
    %387 = vector.shape_cast %386 : vector<1x1x9x8xbf16> to vector<9x8xbf16>
    %388 = vector.extract_strided_slice %387 {offsets = [0, 0], sizes = [8, 4], strides = [1, 1]} : vector<9x8xbf16> to vector<8x4xbf16>
    %389 = vector.extract_strided_slice %387 {offsets = [0, 4], sizes = [8, 4], strides = [1, 1]} : vector<9x8xbf16> to vector<8x4xbf16>
    %390 = vector.extract_strided_slice %387 {offsets = [1, 0], sizes = [8, 4], strides = [1, 1]} : vector<9x8xbf16> to vector<8x4xbf16>
    %c0_354 = arith.constant 0 : index
    %c0_355 = arith.constant 0 : index
    %c0_356 = arith.constant 0 : index
    %391 = vector.load %arg5[%c0_354, %c0_355, %c0_356] : memref<9x4x128xbf16, #tpu.memory_space<vmem>>, vector<1x4x128xbf16>
    %392 = vector.shape_cast %391 : vector<1x4x128xbf16> to vector<4x128xbf16>
    %cst_357 = arith.constant dense<0.000000e+00> : vector<8x128xf32>
    %393 = tpu.matmul %388, %392, %cst_357 {dimension_numbers = #tpu.dot_dimension_numbers<[1], [0], [0], [1], [0, 0, 1, 1], [], []>} : vector<8x4xbf16>, vector<4x128xbf16>, vector<8x128xf32> -> vector<8x128xf32>
    %c1_358 = arith.constant 1 : index
    %c0_359 = arith.constant 0 : index
    %c0_360 = arith.constant 0 : index
    %394 = vector.load %arg5[%c1_358, %c0_359, %c0_360] : memref<9x4x128xbf16, #tpu.memory_space<vmem>>, vector<1x4x128xbf16>
    %395 = vector.shape_cast %394 : vector<1x4x128xbf16> to vector<4x128xbf16>
    %cst_361 = arith.constant dense<0.000000e+00> : vector<8x128xf32>
    %396 = tpu.matmul %389, %395, %cst_361 {dimension_numbers = #tpu.dot_dimension_numbers<[1], [0], [0], [1], [0, 0, 1, 1], [], []>} : vector<8x4xbf16>, vector<4x128xbf16>, vector<8x128xf32> -> vector<8x128xf32>
    %397 = arith.addf %393, %396 : vector<8x128xf32>
    %c2_362 = arith.constant 2 : index
    %c0_363 = arith.constant 0 : index
    %c0_364 = arith.constant 0 : index
    %398 = vector.load %arg5[%c2_362, %c0_363, %c0_364] : memref<9x4x128xbf16, #tpu.memory_space<vmem>>, vector<1x4x128xbf16>
    %399 = vector.shape_cast %398 : vector<1x4x128xbf16> to vector<4x128xbf16>
    %cst_365 = arith.constant dense<0.000000e+00> : vector<8x128xf32>
    %400 = tpu.matmul %390, %399, %cst_365 {dimension_numbers = #tpu.dot_dimension_numbers<[1], [0], [0], [1], [0, 0, 1, 1], [], []>} : vector<8x4xbf16>, vector<4x128xbf16>, vector<8x128xf32> -> vector<8x128xf32>
    %401 = arith.addf %397, %400 : vector<8x128xf32>
    %c0_366 = arith.constant 0 : index
    %c15 = arith.constant 15 : index
    %c0_367 = arith.constant 0 : index
    %c0_368 = arith.constant 0 : index
    %402 = vector.load %arg3[%c0_366, %c15, %c0_367, %c0_368] : memref<1x16x9x8xbf16, #tpu.memory_space<vmem>>, vector<1x1x9x8xbf16>
    %403 = vector.shape_cast %402 : vector<1x1x9x8xbf16> to vector<9x8xbf16>
    %404 = vector.extract_strided_slice %403 {offsets = [0, 0], sizes = [8, 4], strides = [1, 1]} : vector<9x8xbf16> to vector<8x4xbf16>
    %405 = vector.extract_strided_slice %403 {offsets = [0, 4], sizes = [8, 4], strides = [1, 1]} : vector<9x8xbf16> to vector<8x4xbf16>
    %406 = vector.extract_strided_slice %403 {offsets = [1, 0], sizes = [8, 4], strides = [1, 1]} : vector<9x8xbf16> to vector<8x4xbf16>
    %c3_369 = arith.constant 3 : index
    %c0_370 = arith.constant 0 : index
    %c0_371 = arith.constant 0 : index
    %407 = vector.load %arg5[%c3_369, %c0_370, %c0_371] : memref<9x4x128xbf16, #tpu.memory_space<vmem>>, vector<1x4x128xbf16>
    %408 = vector.shape_cast %407 : vector<1x4x128xbf16> to vector<4x128xbf16>
    %cst_372 = arith.constant dense<0.000000e+00> : vector<8x128xf32>
    %409 = tpu.matmul %404, %408, %cst_372 {dimension_numbers = #tpu.dot_dimension_numbers<[1], [0], [0], [1], [0, 0, 1, 1], [], []>} : vector<8x4xbf16>, vector<4x128xbf16>, vector<8x128xf32> -> vector<8x128xf32>
    %410 = arith.addf %401, %409 : vector<8x128xf32>
    %c4_373 = arith.constant 4 : index
    %c0_374 = arith.constant 0 : index
    %c0_375 = arith.constant 0 : index
    %411 = vector.load %arg5[%c4_373, %c0_374, %c0_375] : memref<9x4x128xbf16, #tpu.memory_space<vmem>>, vector<1x4x128xbf16>
    %412 = vector.shape_cast %411 : vector<1x4x128xbf16> to vector<4x128xbf16>
    %cst_376 = arith.constant dense<0.000000e+00> : vector<8x128xf32>
    %413 = tpu.matmul %405, %412, %cst_376 {dimension_numbers = #tpu.dot_dimension_numbers<[1], [0], [0], [1], [0, 0, 1, 1], [], []>} : vector<8x4xbf16>, vector<4x128xbf16>, vector<8x128xf32> -> vector<8x128xf32>
    %414 = arith.addf %410, %413 : vector<8x128xf32>
    %c5_377 = arith.constant 5 : index
    %c0_378 = arith.constant 0 : index
    %c0_379 = arith.constant 0 : index
    %415 = vector.load %arg5[%c5_377, %c0_378, %c0_379] : memref<9x4x128xbf16, #tpu.memory_space<vmem>>, vector<1x4x128xbf16>
    %416 = vector.shape_cast %415 : vector<1x4x128xbf16> to vector<4x128xbf16>
    %cst_380 = arith.constant dense<0.000000e+00> : vector<8x128xf32>
    %417 = tpu.matmul %406, %416, %cst_380 {dimension_numbers = #tpu.dot_dimension_numbers<[1], [0], [0], [1], [0, 0, 1, 1], [], []>} : vector<8x4xbf16>, vector<4x128xbf16>, vector<8x128xf32> -> vector<8x128xf32>
    %418 = arith.addf %414, %417 : vector<8x128xf32>
    %c0_381 = arith.constant 0 : index
    %c0_382 = arith.constant 0 : index
    %c0_383 = arith.constant 0 : index
    %c0_384 = arith.constant 0 : index
    %419 = vector.load %arg4[%c0_381, %c0_382, %c0_383, %c0_384] : memref<1x1x9x8xbf16, #tpu.memory_space<vmem>>, vector<1x1x9x8xbf16>
    %420 = vector.shape_cast %419 : vector<1x1x9x8xbf16> to vector<9x8xbf16>
    %421 = vector.extract_strided_slice %420 {offsets = [0, 0], sizes = [8, 4], strides = [1, 1]} : vector<9x8xbf16> to vector<8x4xbf16>
    %422 = vector.extract_strided_slice %420 {offsets = [0, 4], sizes = [8, 4], strides = [1, 1]} : vector<9x8xbf16> to vector<8x4xbf16>
    %423 = vector.extract_strided_slice %420 {offsets = [1, 0], sizes = [8, 4], strides = [1, 1]} : vector<9x8xbf16> to vector<8x4xbf16>
    %c6_385 = arith.constant 6 : index
    %c0_386 = arith.constant 0 : index
    %c0_387 = arith.constant 0 : index
    %424 = vector.load %arg5[%c6_385, %c0_386, %c0_387] : memref<9x4x128xbf16, #tpu.memory_space<vmem>>, vector<1x4x128xbf16>
    %425 = vector.shape_cast %424 : vector<1x4x128xbf16> to vector<4x128xbf16>
    %cst_388 = arith.constant dense<0.000000e+00> : vector<8x128xf32>
    %426 = tpu.matmul %421, %425, %cst_388 {dimension_numbers = #tpu.dot_dimension_numbers<[1], [0], [0], [1], [0, 0, 1, 1], [], []>} : vector<8x4xbf16>, vector<4x128xbf16>, vector<8x128xf32> -> vector<8x128xf32>
    %427 = arith.addf %418, %426 : vector<8x128xf32>
    %c7_389 = arith.constant 7 : index
    %c0_390 = arith.constant 0 : index
    %c0_391 = arith.constant 0 : index
    %428 = vector.load %arg5[%c7_389, %c0_390, %c0_391] : memref<9x4x128xbf16, #tpu.memory_space<vmem>>, vector<1x4x128xbf16>
    %429 = vector.shape_cast %428 : vector<1x4x128xbf16> to vector<4x128xbf16>
    %cst_392 = arith.constant dense<0.000000e+00> : vector<8x128xf32>
    %430 = tpu.matmul %422, %429, %cst_392 {dimension_numbers = #tpu.dot_dimension_numbers<[1], [0], [0], [1], [0, 0, 1, 1], [], []>} : vector<8x4xbf16>, vector<4x128xbf16>, vector<8x128xf32> -> vector<8x128xf32>
    %431 = arith.addf %427, %430 : vector<8x128xf32>
    %c8_393 = arith.constant 8 : index
    %c0_394 = arith.constant 0 : index
    %c0_395 = arith.constant 0 : index
    %432 = vector.load %arg5[%c8_393, %c0_394, %c0_395] : memref<9x4x128xbf16, #tpu.memory_space<vmem>>, vector<1x4x128xbf16>
    %433 = vector.shape_cast %432 : vector<1x4x128xbf16> to vector<4x128xbf16>
    %cst_396 = arith.constant dense<0.000000e+00> : vector<8x128xf32>
    %434 = tpu.matmul %423, %433, %cst_396 {dimension_numbers = #tpu.dot_dimension_numbers<[1], [0], [0], [1], [0, 0, 1, 1], [], []>} : vector<8x4xbf16>, vector<4x128xbf16>, vector<8x128xf32> -> vector<8x128xf32>
    %435 = arith.addf %431, %434 : vector<8x128xf32>
    %436 = vector.broadcast %0 : vector<1x128xf32> to vector<8x128xf32>
    %437 = arith.addf %435, %436 : vector<8x128xf32>
    %c0_397 = arith.constant 0 : index
    %c7_398 = arith.constant 7 : index
    %c0_399 = arith.constant 0 : index
    %c0_400 = arith.constant 0 : index
    %438 = vector.load %arg7[%c0_397, %c7_398, %c0_399, %c0_400] : memref<1x8x8x128xf32, #tpu.memory_space<vmem>>, vector<1x1x8x128xf32>
    %439 = vector.shape_cast %438 : vector<1x1x8x128xf32> to vector<8x128xf32>
    %440 = vector.shape_cast %437 : vector<8x128xf32> to vector<1x1x8x128xf32>
    tpu.vector_store %arg7[%c0_397, %c7_398, %c0_399, %c0_400], %440 {strides = array<i32>} : memref<1x8x8x128xf32, #tpu.memory_space<vmem>>, vector<1x1x8x128xf32>,
    return
  }
  func.func @transform_0(%arg0: i32, %arg1: i32, %arg2: i32) -> (i32, i32, i32, i32) {
    %c0_i32 = arith.constant 0 : i32
    %c0_i32_0 = arith.constant 0 : i32
    %c0_i32_1 = arith.constant 0 : i32
    return %arg0, %arg1, %c0_i32, %c0_i32_0 : i32, i32, i32, i32
  }
  func.func @transform_1(%arg0: i32, %arg1: i32, %arg2: i32) -> (i32, i32, i32, i32) {
    %c1_i32 = arith.constant 1 : i32
    %0 = arith.addi %arg1, %c1_i32 : i32
    %c2_i32 = arith.constant 2 : i32
    %1 = arith.muli %0, %c2_i32 : i32
    %c8_i32 = arith.constant 8 : i32
    %2 = arith.muli %1, %c8_i32 : i32
    %c0_i32 = arith.constant 0 : i32
    %c0_i32_0 = arith.constant 0 : i32
    %c0_i32_1 = arith.constant 0 : i32
    return %arg0, %2, %c0_i32, %c0_i32_0 : i32, i32, i32, i32
  }
  func.func @transform_2(%arg0: i32, %arg1: i32, %arg2: i32) -> (i32, i32, i32) {
    %c0_i32 = arith.constant 0 : i32
    %c0_i32_0 = arith.constant 0 : i32
    %c0_i32_1 = arith.constant 0 : i32
    return %c0_i32, %c0_i32_0, %arg2 : i32, i32, i32
  }
  func.func @transform_3(%arg0: i32, %arg1: i32, %arg2: i32) -> (i32, i32) {
    %c0_i32 = arith.constant 0 : i32
    %c0_i32_0 = arith.constant 0 : i32
    return %c0_i32, %arg2 : i32, i32
  }
  func.func @transform_4(%arg0: i32, %arg1: i32, %arg2: i32) -> (i32, i32, i32, i32) {
    %c0_i32 = arith.constant 0 : i32
    %c0_i32_0 = arith.constant 0 : i32
    return %arg0, %arg1, %c0_i32, %arg2 : i32, i32, i32, i32
  }
}

</mosaic_0001>

<llo_original>
// kernel: tpu_custom_call.1
$region0: #{tpu_custom_call.1}
  #allocation0 [shape = 'u32[]', space=smem, size = 0x4, offset = 0x4, fixed_abs, tag = 'smem constant byte address 0x4 - core index']
  #allocation1 [shape = 'u32[144,128]{1,0:T(1,128)}', space=vmem, size = 0x12000, scoped, tag = 'internal scratch']
  %s0 = inlined_call_operand.vmem [shape: bf16[2,18,9,8], index: 0, kind: input, shape index: {}]
  %s1 = inlined_call_operand.vmem [shape: bf16[2,18,9,8], index: 1, kind: input, shape index: {}]
  %s2 = inlined_call_operand.vmem [shape: bf16[9,4,128], index: 2, kind: input, shape index: {}]
  %s3 = inlined_call_operand.vmem [shape: f32[1,128], index: 3, kind: input, shape index: {}]
  %s4 = inlined_call_operand.hbm [shape: f32[2,8,8,128], index: 4, kind: output, shape index: {}]
  %s5 = sld [smem:[#allocation0]]
  $region49: #{tpu_custom_call.1} parent=0
    _
  %s7 = ssub.s32 1, %s5
  %s8 = scalar_select 0, %s7, %s5
  $region1: #{tpu_custom_call.1} parent=0
    #allocation2 [shape = 'u8[65536]{0}', space=vmem, size = 0x10000, scoped, tag = 'output window, operand 0']
    #allocation3 [shape = 's32[2]{0}', space=sflag, size = 0x8, scoped, tag = 'scoped memory for tpu_custom_call.1']
    %9 = vsyncpa [#allocation3], 0
    %s10 = scalar_lea.sflag [#allocation3], 1
    %11 = vsyncpa %s10, 0
    loop: start=0, step=1, limit=4
    $region2: #{tpu_custom_call.1} parent=1 // loop_pre_header
      _
    $region3: #{tpu_custom_call.1} parent=1 // loop_header
      %s13 = sphi 0, %s17
      %p14 = scmp.ge.s32.totalorder %s13, 4
      %s20 = sphi 0, %s39
      %s21 = sphi 0, %s35
      %s22 = sphi 0, %s31
      %s23 = sphi 0, %s20
      %s24 = sphi 0, %s21
      %s25 = sphi 0, %s22
      %s26 = sphi 0, %s23
      %s27 = sphi 0, %s24
      %s28 = sphi 0, %s25
      %s44 = sphi 0, %s46
      %s47 = sphi 0, %s44
      %s48 = sphi 0, %s47
      %s64 = sphi 0, %s48
      %s76 = sphi 0, %s78
      %s79 = sphi 0, %s76
      %s80 = sphi 0, %s79
      %s96 = sphi 0, %s80
      %s102 = sphi 0, %s104
      %s105 = sphi 0, %s102
      %s106 = sphi 0, %s105
      %s122 = sphi 0, %s106
      %s128 = sphi 0, %s130
      %s131 = sphi 0, %s128
      %s132 = sphi 0, %s131
      %s148 = sphi 0, %s132
      %s158 = sphi 0, %s160
      %s161 = sphi 0, %s158
      %s162 = sphi 0, %s161
      %s178 = sphi 0, %s162
    $region4: #{tpu_custom_call.1} parent=1 // loop_header_branch
      %16 = sbr.rel (%p14) target = $region8
    $region5: #{tpu_custom_call.1} parent=1 // loop_body
      %s18 = ssub.s32 %s13, 1
      %s19 = ssub.s32 %s13, 2
      %s29 = sadd.s32 1, %s22
      %p30 = scmp.ge.s32.totalorder %s29, 1
      %s31 = scalar_select %p30, 0, %s29
      %s32 = sadd.s32 1, %s21
      %s33 = scalar_select %p30, %s32, %s21
      %p34 = scmp.ge.s32.totalorder %s33, 1
      %s35 = scalar_select %p34, 0, %s33
      %s36 = sadd.s32 1, %s20
      %s37 = scalar_select %p34, %s36, %s20
      %p38 = scmp.ge.s32.totalorder %s37, 2
      %s39 = scalar_select %p38, 0, %s37
      %s40 = ssub.s32 %s20, %s39
      %s41 = ssub.s32 %s21, %s35
      %s42 = sor.u32 %s40, %s41
      %p43 = scmp.eq.s32.totalorder %s42, 0
      %s45 = sadd.s32 %s44, 1
      %s46 = scalar_select %p43, %s44, %s45
      %p49 = pneg %p43
      %p50 = scmp.eq.s32.totalorder %s13, 1
      %p51 = por %p49, %p50
      %p52 = scmp.ne.s32.totalorder %s44, %s47
      %p53 = scmp.eq.s32.totalorder %s13, 0
      %p54 = por %p52, %p53
      %p55 = scmp.ne.s32.totalorder %s44, %s47
      %p56 = scmp.eq.s32.totalorder %s18, 1
      %p57 = por %p55, %p56
      %p58 = scmp.ne.s32.totalorder %s47, %s48
      %p59 = scmp.eq.s32.totalorder %s18, 0
      %p60 = por %p58, %p59
      %p61 = scmp.ne.s32.totalorder %s47, %s48
      %p62 = scmp.eq.s32.totalorder %s19, 1
      %p63 = por %p61, %p62
      %p65 = scmp.ne.s32.totalorder %s48, %s64
      %p66 = scmp.eq.s32.totalorder %s19, 0
      %p67 = por %p65, %p66
      %s68 = sadd.s32 %s21, 1
      %s69 = smul.u32 %s68, 16
      %s70 = sadd.s32 %s35, 1
      %s71 = smul.u32 %s70, 16
      %s72 = ssub.s32 %s20, %s39
      %s73 = ssub.s32 %s69, %s71
      %s74 = sor.u32 %s72, %s73
      %p75 = scmp.eq.s32.totalorder %s74, 0
      %s77 = sadd.s32 %s76, 1
      %s78 = scalar_select %p75, %s76, %s77
      %p81 = pneg %p75
      %p82 = scmp.eq.s32.totalorder %s13, 1
      %p83 = por %p81, %p82
      %p84 = scmp.ne.s32.totalorder %s76, %s79
      %p85 = scmp.eq.s32.totalorder %s13, 0
      %p86 = por %p84, %p85
      %p87 = scmp.ne.s32.totalorder %s76, %s79
      %p88 = scmp.eq.s32.totalorder %s18, 1
      %p89 = por %p87, %p88
      %p90 = scmp.ne.s32.totalorder %s79, %s80
      %p91 = scmp.eq.s32.totalorder %s18, 0
      %p92 = por %p90, %p91
      %p93 = scmp.ne.s32.totalorder %s79, %s80
      %p94 = scmp.eq.s32.totalorder %s19, 1
      %p95 = por %p93, %p94
      %p97 = scmp.ne.s32.totalorder %s80, %s96
      %p98 = scmp.eq.s32.totalorder %s19, 0
      %p99 = por %p97, %p98
      %s100 = ssub.s32 %s22, %s31
      %p101 = scmp.eq.s32.totalorder %s100, 0
      %s103 = sadd.s32 %s102, 1
      %s104 = scalar_select %p101, %s102, %s103
      %p107 = pneg %p101
      %p108 = scmp.eq.s32.totalorder %s13, 1
      %p109 = por %p107, %p108
      %p110 = scmp.ne.s32.totalorder %s102, %s105
      %p111 = scmp.eq.s32.totalorder %s13, 0
      %p112 = por %p110, %p111
      %p113 = scmp.ne.s32.totalorder %s102, %s105
      %p114 = scmp.eq.s32.totalorder %s18, 1
      %p115 = por %p113, %p114
      %p116 = scmp.ne.s32.totalorder %s105, %s106
      %p117 = scmp.eq.s32.totalorder %s18, 0
      %p118 = por %p116, %p117
      %p119 = scmp.ne.s32.totalorder %s105, %s106
      %p120 = scmp.eq.s32.totalorder %s19, 1
      %p121 = por %p119, %p120
      %p123 = scmp.ne.s32.totalorder %s106, %s122
      %p124 = scmp.eq.s32.totalorder %s19, 0
      %p125 = por %p123, %p124
      %s126 = ssub.s32 %s22, %s31
      %p127 = scmp.eq.s32.totalorder %s126, 0
      %s129 = sadd.s32 %s128, 1
      %s130 = scalar_select %p127, %s128, %s129
      %p133 = pneg %p127
      %p134 = scmp.eq.s32.totalorder %s13, 1
      %p135 = por %p133, %p134
      %p136 = scmp.ne.s32.totalorder %s128, %s131
      %p137 = scmp.eq.s32.totalorder %s13, 0
      %p138 = por %p136, %p137
      %p139 = scmp.ne.s32.totalorder %s128, %s131
      %p140 = scmp.eq.s32.totalorder %s18, 1
      %p141 = por %p139, %p140
      %p142 = scmp.ne.s32.totalorder %s131, %s132
      %p143 = scmp.eq.s32.totalorder %s18, 0
      %p144 = por %p142, %p143
      %p145 = scmp.ne.s32.totalorder %s131, %s132
      %p146 = scmp.eq.s32.totalorder %s19, 1
      %p147 = por %p145, %p146
      %p149 = scmp.ne.s32.totalorder %s132, %s148
      %p150 = scmp.eq.s32.totalorder %s19, 0
      %p151 = por %p149, %p150
      %s152 = ssub.s32 %s20, %s39
      %s153 = ssub.s32 %s21, %s35
      %s154 = sor.u32 %s152, %s153
      %s155 = ssub.s32 %s22, %s31
      %s156 = sor.u32 %s154, %s155
      %p157 = scmp.eq.s32.totalorder %s156, 0
      %s159 = sadd.s32 %s158, 1
      %s160 = scalar_select %p157, %s158, %s159
      %p163 = pneg %p157
      %p164 = scmp.eq.s32.totalorder %s13, 1
      %p165 = por %p163, %p164
      %p166 = scmp.ne.s32.totalorder %s158, %s161
      %p167 = scmp.eq.s32.totalorder %s13, 0
      %p168 = por %p166, %p167
      %p169 = scmp.ne.s32.totalorder %s158, %s161
      %p170 = scmp.eq.s32.totalorder %s18, 1
      %p171 = por %p169, %p170
      %p172 = scmp.ne.s32.totalorder %s161, %s162
      %p173 = scmp.eq.s32.totalorder %s18, 0
      %p174 = por %p172, %p173
      %p175 = scmp.ne.s32.totalorder %s161, %s162
      %p176 = scmp.eq.s32.totalorder %s19, 1
      %p177 = por %p175, %p176
      %p179 = scmp.ne.s32.totalorder %s162, %s178
      %p180 = scmp.eq.s32.totalorder %s19, 0
      %p181 = por %p179, %p180
      %p182 = scmp.le.s32.totalorder 1, %s13
      %p183 = scmp.lt.s32.totalorder %s13, 3
      %p184 = pnand %p182, %p183
      %p185 = pneg %p184
      // Predicated region
      $region9: #{tpu_custom_call.1} parent=5 // pred_check
        _
      $region10: #{tpu_custom_call.1} parent=5 // pred_check_branch
        %187 = sbr.rel (%p184) target = $region12
      $region11: #{tpu_custom_call.1} parent=5 // pred_region
        %s188 = ssub.s32 %s13, 1
        // Predicated region
        $region13: #{tpu_custom_call.1} parent=11 // pred_check
          %p189 = pneg %p118
        $region14: #{tpu_custom_call.1} parent=11 // pred_check_branch
          %191 = sbr.rel (%p189) target = $region16
        $region15: #{tpu_custom_call.1} parent=11 // pred_region
          %p192 = scmp.lt.s32.totalorder %s25, 0
          %s193 = scalar_select %p192, %s25, 0
          %s194 = smul.addr %s193, 2
          %s195 = scalar_lea.vmem %s2, %s194
        $region16: #{tpu_custom_call.1} parent=11 // pred_fallthru
          _
        // Predicated region
        $region17: #{tpu_custom_call.1} parent=11 // pred_check
          %p196 = pneg %p144
        $region18: #{tpu_custom_call.1} parent=11 // pred_check_branch
          %198 = sbr.rel (%p196) target = $region20
        $region19: #{tpu_custom_call.1} parent=11 // pred_region
          %p199 = scmp.lt.s32.totalorder %s25, 0
          %s200 = scalar_select %p199, %s25, 0
          %s201 = scalar_lea.vmem %s3, %s200
        $region20: #{tpu_custom_call.1} parent=11 // pred_fallthru
          _
      $region12: #{tpu_custom_call.1} parent=5 // pred_fallthru
        _
      %p202 = scmp.lt.s32.totalorder %s13, 2
      // Predicated region
      $region21: #{tpu_custom_call.1} parent=5 // pred_check
        %p203 = pneg %p202
      $region22: #{tpu_custom_call.1} parent=5 // pred_check_branch
        %205 = sbr.rel (%p203) target = $region24
      $region23: #{tpu_custom_call.1} parent=5 // pred_region
        // Predicated region
        $region25: #{tpu_custom_call.1} parent=23 // pred_check
          %p206 = pneg %p54
        $region26: #{tpu_custom_call.1} parent=23 // pred_check_branch
          %208 = sbr.rel (%p206) target = $region28
        $region27: #{tpu_custom_call.1} parent=23 // pred_region
          %s209 = smul.u32 16, %s21
          %s210 = ssub.s32 18, %s209
          %p211 = scmp.lt.s32.totalorder %s210, 16
          %s212 = scalar_select %p211, %s210, 16
          %s213 = smul.u32 64, %s212
          %s214 = smul.u32 %s213, 2
          %p215 = scmp.lt.s32.totalorder %s20, 1
          %s216 = scalar_select %p215, %s20, 1
          %p217 = scmp.lt.s32.totalorder %s209, 17
          %s218 = scalar_select %p217, %s209, 17
          %s219 = smul.addr %s218, 2
          %s220 = smul.addr %s216, 36
          %s221 = sadd.s32 %s219, %s220
          %s222 = smul.addr %s221, 4
          %s223 = scalar_lea.vmem %s0, %s222
          %s224 = smul.u32 16, %s21
          %s225 = ssub.s32 18, %s224
          %p226 = scmp.lt.s32.totalorder %s225, 16
          %s227 = scalar_select %p226, %s225, 16
          %s228 = smul.u32 64, %s227
          %s229 = smul.u32 %s228, 2
        $region28: #{tpu_custom_call.1} parent=23 // pred_fallthru
          _
        // Predicated region
        $region29: #{tpu_custom_call.1} parent=23 // pred_check
          %p230 = pneg %p86
        $region30: #{tpu_custom_call.1} parent=23 // pred_check_branch
          %232 = sbr.rel (%p230) target = $region32
        $region31: #{tpu_custom_call.1} parent=23 // pred_region
          %s233 = sadd.s32 %s21, 1
          %s234 = smul.u32 %s233, 16
          %p235 = scmp.lt.s32.totalorder %s20, 1
          %s236 = scalar_select %p235, %s20, 1
          %p237 = scmp.lt.s32.totalorder %s234, 17
          %s238 = scalar_select %p237, %s234, 17
          %s239 = smul.addr %s238, 2
          %s240 = smul.addr %s236, 36
          %s241 = sadd.s32 %s239, %s240
          %s242 = smul.addr %s241, 4
          %s243 = scalar_lea.vmem %s1, %s242
          %s244 = sadd.s32 %s21, 1
          %s245 = smul.u32 %s244, 16
        $region32: #{tpu_custom_call.1} parent=23 // pred_fallthru
          _
      $region24: #{tpu_custom_call.1} parent=5 // pred_fallthru
        _
      %p246 = scmp.le.s32.totalorder 1, %s13
      %p247 = scmp.lt.s32.totalorder %s13, 3
      %p248 = pnand %p246, %p247
      %p249 = pneg %p248
      // Predicated region
      $region33: #{tpu_custom_call.1} parent=5 // pred_check
        _
      $region34: #{tpu_custom_call.1} parent=5 // pred_check_branch
        %251 = sbr.rel (%p248) target = $region36
      $region35: #{tpu_custom_call.1} parent=5 // pred_region
        %s252 = ssub.s32 %s13, 1
        %s253 = smul.u32 16, %s24
        %s254 = ssub.s32 18, %s253
        %p255 = scmp.lt.s32.totalorder %s254, 16
        %s256 = scalar_select %p255, %s254, 16
        %s257 = smul.u32 64, %s256
        %s258 = smul.u32 %s257, 2
        %p259 = scmp.lt.s32.totalorder %s23, 1
        %s260 = scalar_select %p259, %s23, 1
        %p261 = scmp.lt.s32.totalorder %s253, 17
        %s262 = scalar_select %p261, %s253, 17
        %s263 = smul.addr %s262, 2
        %s264 = smul.addr %s260, 36
        %s265 = sadd.s32 %s263, %s264
        %s266 = smul.addr %s265, 4
        %s267 = scalar_lea.vmem %s0, %s266
        %p268 = pneg %p60
        %p269 = pneg %p57
        %s270 = sadd.s32 %s24, 1
        %s271 = smul.u32 %s270, 16
        %p272 = scmp.lt.s32.totalorder %s23, 1
        %s273 = scalar_select %p272, %s23, 1
        %p274 = scmp.lt.s32.totalorder %s271, 17
        %s275 = scalar_select %p274, %s271, 17
        %s276 = smul.addr %s275, 2
        %s277 = smul.addr %s273, 36
        %s278 = sadd.s32 %s276, %s277
        %s279 = smul.addr %s278, 4
        %s280 = scalar_lea.vmem %s1, %s279
        %p281 = pneg %p92
        %p282 = pneg %p89
        %p283 = scmp.lt.s32.totalorder %s25, 0
        %s284 = scalar_select %p283, %s25, 0
        %s285 = smul.addr %s284, 2
        %s286 = scalar_lea.vmem %s2, %s285
        %p287 = pneg %p118
        %p288 = pneg %p115
        %p289 = scmp.lt.s32.totalorder %s25, 0
        %s290 = scalar_select %p289, %s25, 0
        %s291 = scalar_lea.vmem %s3, %s290
        %p292 = pneg %p144
        %p293 = pneg %p141
        %p294 = pneg %p174
        %p295 = pneg %p171
        %s296 = sand.u32 %s161, 1
        %s297 = scalar_lea.sflag [#allocation3], %s296
        %s298 = sand.u32 %s161, 1
        %s299 = smul.addr %s298, 64
        %s300 = scalar_lea.vmem [#allocation2], %s299
        %s301 = smul.u32 16, %s24
        %s302 = ssub.s32 18, %s301
        %p303 = scmp.lt.s32.totalorder %s302, 16
        %s304 = scalar_select %p303, %s302, 16
        %s305 = smul.u32 64, %s304
        %s306 = smul.u32 %s305, 2
        %p307 = scmp.lt.s32.totalorder %s23, 1
        %s308 = scalar_select %p307, %s23, 1
        %p309 = scmp.lt.s32.totalorder %s301, 17
        %s310 = scalar_select %p309, %s301, 17
        %s311 = smul.addr %s310, 2
        %s312 = smul.addr %s308, 36
        %s313 = sadd.s32 %s311, %s312
        %s314 = smul.addr %s313, 4
        %s315 = scalar_lea.vmem %s0, %s314
        %s316 = smul.u32 16, %s24
        %s317 = ssub.s32 18, %s316
        %p318 = scmp.lt.s32.totalorder %s317, 16
        %s319 = scalar_select %p318, %s317, 16
        %s320 = smul.u32 64, %s319
        %s321 = smul.u32 %s320, 2
        %s322 = sadd.s32 %s24, 1
        %s323 = smul.u32 %s322, 16
        %p324 = scmp.lt.s32.totalorder %s23, 1
        %s325 = scalar_select %p324, %s23, 1
        %p326 = scmp.lt.s32.totalorder %s323, 17
        %s327 = scalar_select %p326, %s323, 17
        %s328 = smul.addr %s327, 2
        %s329 = smul.addr %s325, 36
        %s330 = sadd.s32 %s328, %s329
        %s331 = smul.addr %s330, 4
        %s332 = scalar_lea.vmem %s1, %s331
        %s333 = sadd.s32 %s24, 1
        %s334 = smul.u32 %s333, 16
        %p335 = scmp.lt.s32.totalorder %s25, 0
        %s336 = scalar_select %p335, %s25, 0
        %s337 = smul.addr %s336, 2
        %s338 = scalar_lea.vmem %s2, %s337
        %p339 = scmp.lt.s32.totalorder %s25, 0
        %s340 = scalar_select %p339, %s25, 0
        %s341 = scalar_lea.vmem %s3, %s340
        %s342 = smul.u32 8, %s24
        %v344 = vld [vmem:[%s341] sm:$0x1]
        %v345 = vld [vmem:[%s315] sm:$0xf]
        %v346 = vld [vmem:[%s315 + $0x4] sm:$0x1]
        %v347 = vld [vmem:[%s338] sm:$0x3]
        %s348 = scalar_lea.vmem %s338, 2
        %v349 = vld [vmem:[%s348] sm:$0x3]
        %v351 = vunpack.c.l.b16 %v345
        %v352 = vpack.c.b16 %v351, %v351
        %353 = vrot.lane.b32.xlu0 %v352, 124
        %v354 = vpop.permute.xlu0 %353
        %vm355 = vcmask 31744
        %v357 = vsel %vm355, %v354, 0
        %vm359 = vcmask 1041408
        %v361 = vsel %vm359, %v349, 0
        %363 = vmatprep.subr.bf16.mxu0 0
        %364 = vmatpush1.bf16.msra.mxu0 %v361
        %365 = vmatprep.subr.bf16.mxu0 0
        %366 = vmatpush1.bf16.msra.mxu0 0
        %367 = vmatprep.subr.bf16.mxu0 0
        %368 = vmatpush1.bf16.msra.mxu0 0
        %369 = vmatprep.subr.bf16.mxu0 0
        %370 = vmatpush1.bf16.msra.mxu0 0
        %371 = vmatprep.subr.bf16.mxu0 0
        %372 = vmatpush1.bf16.msra.mxu0 0
        %373 = vmatprep.subr.bf16.mxu0 0
        %374 = vmatpush1.bf16.msra.mxu0 0
        %375 = vmatprep.subr.bf16.mxu0 0
        %376 = vmatpush1.bf16.msra.mxu0 0
        %377 = vmatprep.subr.bf16.mxu0 0
        %378 = vmatpush1.bf16.msra.mxu0 0
        %379 = vmatprep.subr.bf16.mxu0 0
        %380 = vmatpush1.bf16.msra.mxu0 0
        %381 = vmatprep.subr.bf16.mxu0 0
        %382 = vmatpush1.bf16.msra.mxu0 0
        %383 = vmatprep.subr.bf16.mxu0 0
        %384 = vmatpush1.bf16.msra.mxu0 0
        %385 = vmatprep.subr.bf16.mxu0 0
        %386 = vmatpush1.bf16.msra.mxu0 0
        %387 = vmatprep.subr.bf16.mxu0 0
        %388 = vmatpush1.bf16.msra.mxu0 0
        %389 = vmatprep.subr.bf16.mxu0 0
        %390 = vmatpush1.bf16.msra.mxu0 0
        %391 = vmatprep.subr.bf16.mxu0 0
        %392 = vmatpush1.bf16.msra.mxu0 0
        %393 = vmatprep.subr.bf16.mxu0 0
        %394 = vmatpush1.bf16.msra.mxu0 0
        %395 = vmatprep.mubr.bf16.mxu0 0
        %396 = vmatmul.mubr.bf16.gmra.mrb[0].mxu0 %v357
        %v397 = vpop.f32.mrb[0].mxu0
        %v398 = vadd.f32 0.0, %v397
        %v399 = vpop.f32.mrb[0].mxu0
        %v400 = vpop.f32.mrb[0].mxu0
        %v401 = vpop.f32.mrb[0].mxu0
        %402 = vdwg.mxu0
        %v404 = vsel %vm355, %v345, 0
        %v407 = vsel %vm359, %v347, 0
        %409 = vmatprep.subr.bf16.mxu0 0
        %410 = vmatpush1.bf16.msra.mxu0 %v407
        %411 = vmatprep.subr.bf16.mxu0 0
        %412 = vmatpush1.bf16.msra.mxu0 0
        %413 = vmatprep.subr.bf16.mxu0 0
        %414 = vmatpush1.bf16.msra.mxu0 0
        %415 = vmatprep.subr.bf16.mxu0 0
        %416 = vmatpush1.bf16.msra.mxu0 0
        %417 = vmatprep.subr.bf16.mxu0 0
        %418 = vmatpush1.bf16.msra.mxu0 0
        %419 = vmatprep.subr.bf16.mxu0 0
        %420 = vmatpush1.bf16.msra.mxu0 0
        %421 = vmatprep.subr.bf16.mxu0 0
        %422 = vmatpush1.bf16.msra.mxu0 0
        %423 = vmatprep.subr.bf16.mxu0 0
        %424 = vmatpush1.bf16.msra.mxu0 0
        %425 = vmatprep.subr.bf16.mxu0 0
        %426 = vmatpush1.bf16.msra.mxu0 0
        %427 = vmatprep.subr.bf16.mxu0 0
        %428 = vmatpush1.bf16.msra.mxu0 0
        %429 = vmatprep.subr.bf16.mxu0 0
        %430 = vmatpush1.bf16.msra.mxu0 0
        %431 = vmatprep.subr.bf16.mxu0 0
        %432 = vmatpush1.bf16.msra.mxu0 0
        %433 = vmatprep.subr.bf16.mxu0 0
        %434 = vmatpush1.bf16.msra.mxu0 0
        %435 = vmatprep.subr.bf16.mxu0 0
        %436 = vmatpush1.bf16.msra.mxu0 0
        %437 = vmatprep.subr.bf16.mxu0 0
        %438 = vmatpush1.bf16.msra.mxu0 0
        %439 = vmatprep.subr.bf16.mxu0 0
        %440 = vmatpush1.bf16.msra.mxu0 0
        %441 = vmatprep.mubr.bf16.mxu0 0
        %442 = vmatmul.mubr.bf16.gmra.mrb[0].mxu0 %v404
        %v443 = vpop.f32.mrb[0].mxu0
        %v444 = vadd.f32 %v398, %v443
        %v445 = vpop.f32.mrb[0].mxu0
        %v446 = vpop.f32.mrb[0].mxu0
        %v447 = vpop.f32.mrb[0].mxu0
        %448 = vdwg.mxu0
        %s449 = scalar_lea.vmem %s338, 4
        %v450 = vld [vmem:[%s449] sm:$0x3]
        %v452 = vunpack.c.l.b16 %v346
        %v453 = vpack.c.b16 %v452, %v351
        %v455 = vshrl.u32 %v453, 16
        %v457 = vshll.u32 %v453, 16
        %v459 = vrot.slane %v457, 1
        %v460 = vor.u32 %v455, %v459
        %v462 = vsel %vm355, %v460, 0
        %v465 = vsel %vm359, %v450, 0
        %467 = vmatprep.subr.bf16.mxu0 0
        %468 = vmatpush1.bf16.msra.mxu0 %v465
        %469 = vmatprep.subr.bf16.mxu0 0
        %470 = vmatpush1.bf16.msra.mxu0 0
        %471 = vmatprep.subr.bf16.mxu0 0
        %472 = vmatpush1.bf16.msra.mxu0 0
        %473 = vmatprep.subr.bf16.mxu0 0
        %474 = vmatpush1.bf16.msra.mxu0 0
        %475 = vmatprep.subr.bf16.mxu0 0
        %476 = vmatpush1.bf16.msra.mxu0 0
        %477 = vmatprep.subr.bf16.mxu0 0
        %478 = vmatpush1.bf16.msra.mxu0 0
        %479 = vmatprep.subr.bf16.mxu0 0
        %480 = vmatpush1.bf16.msra.mxu0 0
        %481 = vmatprep.subr.bf16.mxu0 0
        %482 = vmatpush1.bf16.msra.mxu0 0
        %483 = vmatprep.subr.bf16.mxu0 0
        %484 = vmatpush1.bf16.msra.mxu0 0
        %485 = vmatprep.subr.bf16.mxu0 0
        %486 = vmatpush1.bf16.msra.mxu0 0
        %487 = vmatprep.subr.bf16.mxu0 0
        %488 = vmatpush1.bf16.msra.mxu0 0
        %489 = vmatprep.subr.bf16.mxu0 0
        %490 = vmatpush1.bf16.msra.mxu0 0
        %491 = vmatprep.subr.bf16.mxu0 0
        %492 = vmatpush1.bf16.msra.mxu0 0
        %493 = vmatprep.subr.bf16.mxu0 0
        %494 = vmatpush1.bf16.msra.mxu0 0
        %495 = vmatprep.subr.bf16.mxu0 0
        %496 = vmatpush1.bf16.msra.mxu0 0
        %497 = vmatprep.subr.bf16.mxu0 0
        %498 = vmatpush1.bf16.msra.mxu0 0
        %499 = vmatprep.mubr.bf16.mxu0 0
        %500 = vmatmul.mubr.bf16.gmra.mrb[0].mxu0 %v462
        %v501 = vpop.f32.mrb[0].mxu0
        %v502 = vadd.f32 0.0, %v501
        %v503 = vpop.f32.mrb[0].mxu0
        %v504 = vpop.f32.mrb[0].mxu0
        %v505 = vpop.f32.mrb[0].mxu0
        %506 = vdwg.mxu0
        %v507 = vadd.f32 %v444, %v502
        %s508 = scalar_lea.vmem %s315, 8
        %v509 = vld [vmem:[%s508] sm:$0xf]
        %v510 = vld [vmem:[%s508 + $0x4] sm:$0x1]
        %s511 = scalar_lea.vmem %s338, 6
        %v512 = vld [vmem:[%s511] sm:$0x3]
        %v514 = vsel %vm355, %v509, 0
        %v517 = vsel %vm359, %v512, 0
        %519 = vmatprep.subr.bf16.mxu0 0
        %520 = vmatpush1.bf16.msra.mxu0 %v517
        %521 = vmatprep.subr.bf16.mxu0 0
        %522 = vmatpush1.bf16.msra.mxu0 0
        %523 = vmatprep.subr.bf16.mxu0 0
        %524 = vmatpush1.bf16.msra.mxu0 0
        %525 = vmatprep.subr.bf16.mxu0 0
        %526 = vmatpush1.bf16.msra.mxu0 0
        %527 = vmatprep.subr.bf16.mxu0 0
        %528 = vmatpush1.bf16.msra.mxu0 0
        %529 = vmatprep.subr.bf16.mxu0 0
        %530 = vmatpush1.bf16.msra.mxu0 0
        %531 = vmatprep.subr.bf16.mxu0 0
        %532 = vmatpush1.bf16.msra.mxu0 0
        %533 = vmatprep.subr.bf16.mxu0 0
        %534 = vmatpush1.bf16.msra.mxu0 0
        %535 = vmatprep.subr.bf16.mxu0 0
        %536 = vmatpush1.bf16.msra.mxu0 0
        %537 = vmatprep.subr.bf16.mxu0 0
        %538 = vmatpush1.bf16.msra.mxu0 0
        %539 = vmatprep.subr.bf16.mxu0 0
        %540 = vmatpush1.bf16.msra.mxu0 0
        %541 = vmatprep.subr.bf16.mxu0 0
        %542 = vmatpush1.bf16.msra.mxu0 0
        %543 = vmatprep.subr.bf16.mxu0 0
        %544 = vmatpush1.bf16.msra.mxu0 0
        %545 = vmatprep.subr.bf16.mxu0 0
        %546 = vmatpush1.bf16.msra.mxu0 0
        %547 = vmatprep.subr.bf16.mxu0 0
        %548 = vmatpush1.bf16.msra.mxu0 0
        %549 = vmatprep.subr.bf16.mxu0 0
        %550 = vmatpush1.bf16.msra.mxu0 0
        %551 = vmatprep.mubr.bf16.mxu0 0
        %552 = vmatmul.mubr.bf16.gmra.mrb[0].mxu0 %v514
        %v553 = vpop.f32.mrb[0].mxu0
        %v554 = vadd.f32 0.0, %v553
        %v555 = vpop.f32.mrb[0].mxu0
        %v556 = vpop.f32.mrb[0].mxu0
        %v557 = vpop.f32.mrb[0].mxu0
        %558 = vdwg.mxu0
        %v559 = vadd.f32 %v507, %v554
        %s560 = scalar_lea.vmem %s338, 8
        %v561 = vld [vmem:[%s560] sm:$0x3]
        %v563 = vunpack.c.l.b16 %v509
        %v564 = vpack.c.b16 %v563, %v563
        %565 = vrot.lane.b32.xlu0 %v564, 124
        %v566 = vpop.permute.xlu0 %565
        %v568 = vsel %vm355, %v566, 0
        %v571 = vsel %vm359, %v561, 0
        %573 = vmatprep.subr.bf16.mxu0 0
        %574 = vmatpush1.bf16.msra.mxu0 %v571
        %575 = vmatprep.subr.bf16.mxu0 0
        %576 = vmatpush1.bf16.msra.mxu0 0
        %577 = vmatprep.subr.bf16.mxu0 0
        %578 = vmatpush1.bf16.msra.mxu0 0
        %579 = vmatprep.subr.bf16.mxu0 0
        %580 = vmatpush1.bf16.msra.mxu0 0
        %581 = vmatprep.subr.bf16.mxu0 0
        %582 = vmatpush1.bf16.msra.mxu0 0
        %583 = vmatprep.subr.bf16.mxu0 0
        %584 = vmatpush1.bf16.msra.mxu0 0
        %585 = vmatprep.subr.bf16.mxu0 0
        %586 = vmatpush1.bf16.msra.mxu0 0
        %587 = vmatprep.subr.bf16.mxu0 0
        %588 = vmatpush1.bf16.msra.mxu0 0
        %589 = vmatprep.subr.bf16.mxu0 0
        %590 = vmatpush1.bf16.msra.mxu0 0
        %591 = vmatprep.subr.bf16.mxu0 0
        %592 = vmatpush1.bf16.msra.mxu0 0
        %593 = vmatprep.subr.bf16.mxu0 0
        %594 = vmatpush1.bf16.msra.mxu0 0
        %595 = vmatprep.subr.bf16.mxu0 0
        %596 = vmatpush1.bf16.msra.mxu0 0
        %597 = vmatprep.subr.bf16.mxu0 0
        %598 = vmatpush1.bf16.msra.mxu0 0
        %599 = vmatprep.subr.bf16.mxu0 0
        %600 = vmatpush1.bf16.msra.mxu0 0
        %601 = vmatprep.subr.bf16.mxu0 0
        %602 = vmatpush1.bf16.msra.mxu0 0
        %603 = vmatprep.subr.bf16.mxu0 0
        %604 = vmatpush1.bf16.msra.mxu0 0
        %605 = vmatprep.mubr.bf16.mxu0 0
        %606 = vmatmul.mubr.bf16.gmra.mrb[0].mxu0 %v568
        %v607 = vpop.f32.mrb[0].mxu0
        %v608 = vadd.f32 0.0, %v607
        %v609 = vpop.f32.mrb[0].mxu0
        %v610 = vpop.f32.mrb[0].mxu0
        %v611 = vpop.f32.mrb[0].mxu0
        %612 = vdwg.mxu0
        %v613 = vadd.f32 %v559, %v608
        %s614 = scalar_lea.vmem %s338, 10
        %v615 = vld [vmem:[%s614] sm:$0x3]
        %v617 = vunpack.c.l.b16 %v510
        %v618 = vpack.c.b16 %v617, %v563
        %v620 = vshrl.u32 %v618, 16
        %v622 = vshll.u32 %v618, 16
        %v624 = vrot.slane %v622, 1
        %v625 = vor.u32 %v620, %v624
        %v627 = vsel %vm355, %v625, 0
        %v630 = vsel %vm359, %v615, 0
        %632 = vmatprep.subr.bf16.mxu0 0
        %633 = vmatpush1.bf16.msra.mxu0 %v630
        %634 = vmatprep.subr.bf16.mxu0 0
        %635 = vmatpush1.bf16.msra.mxu0 0
        %636 = vmatprep.subr.bf16.mxu0 0
        %637 = vmatpush1.bf16.msra.mxu0 0
        %638 = vmatprep.subr.bf16.mxu0 0
        %639 = vmatpush1.bf16.msra.mxu0 0
        %640 = vmatprep.subr.bf16.mxu0 0
        %641 = vmatpush1.bf16.msra.mxu0 0
        %642 = vmatprep.subr.bf16.mxu0 0
        %643 = vmatpush1.bf16.msra.mxu0 0
        %644 = vmatprep.subr.bf16.mxu0 0
        %645 = vmatpush1.bf16.msra.mxu0 0
        %646 = vmatprep.subr.bf16.mxu0 0
        %647 = vmatpush1.bf16.msra.mxu0 0
        %648 = vmatprep.subr.bf16.mxu0 0
        %649 = vmatpush1.bf16.msra.mxu0 0
        %650 = vmatprep.subr.bf16.mxu0 0
        %651 = vmatpush1.bf16.msra.mxu0 0
        %652 = vmatprep.subr.bf16.mxu0 0
        %653 = vmatpush1.bf16.msra.mxu0 0
        %654 = vmatprep.subr.bf16.mxu0 0
        %655 = vmatpush1.bf16.msra.mxu0 0
        %656 = vmatprep.subr.bf16.mxu0 0
        %657 = vmatpush1.bf16.msra.mxu0 0
        %658 = vmatprep.subr.bf16.mxu0 0
        %659 = vmatpush1.bf16.msra.mxu0 0
        %660 = vmatprep.subr.bf16.mxu0 0
        %661 = vmatpush1.bf16.msra.mxu0 0
        %662 = vmatprep.subr.bf16.mxu0 0
        %663 = vmatpush1.bf16.msra.mxu0 0
        %664 = vmatprep.mubr.bf16.mxu0 0
        %665 = vmatmul.mubr.bf16.gmra.mrb[0].mxu0 %v627
        %v666 = vpop.f32.mrb[0].mxu0
        %v667 = vadd.f32 0.0, %v666
        %v668 = vpop.f32.mrb[0].mxu0
        %v669 = vpop.f32.mrb[0].mxu0
        %v670 = vpop.f32.mrb[0].mxu0
        %671 = vdwg.mxu0
        %v672 = vadd.f32 %v613, %v667
        %s673 = scalar_lea.vmem %s315, 16
        %v674 = vld [vmem:[%s673] sm:$0xf]
        %v675 = vld [vmem:[%s673 + $0x4] sm:$0x1]
        %s676 = scalar_lea.vmem %s338, 12
        %v677 = vld [vmem:[%s676] sm:$0x3]
        %v679 = vsel %vm355, %v674, 0
        %v682 = vsel %vm359, %v677, 0
        %684 = vmatprep.subr.bf16.mxu0 0
        %685 = vmatpush1.bf16.msra.mxu0 %v682
        %686 = vmatprep.subr.bf16.mxu0 0
        %687 = vmatpush1.bf16.msra.mxu0 0
        %688 = vmatprep.subr.bf16.mxu0 0
        %689 = vmatpush1.bf16.msra.mxu0 0
        %690 = vmatprep.subr.bf16.mxu0 0
        %691 = vmatpush1.bf16.msra.mxu0 0
        %692 = vmatprep.subr.bf16.mxu0 0
        %693 = vmatpush1.bf16.msra.mxu0 0
        %694 = vmatprep.subr.bf16.mxu0 0
        %695 = vmatpush1.bf16.msra.mxu0 0
        %696 = vmatprep.subr.bf16.mxu0 0
        %697 = vmatpush1.bf16.msra.mxu0 0
        %698 = vmatprep.subr.bf16.mxu0 0
        %699 = vmatpush1.bf16.msra.mxu0 0
        %700 = vmatprep.subr.bf16.mxu0 0
        %701 = vmatpush1.bf16.msra.mxu0 0
        %702 = vmatprep.subr.bf16.mxu0 0
        %703 = vmatpush1.bf16.msra.mxu0 0
        %704 = vmatprep.subr.bf16.mxu0 0
        %705 = vmatpush1.bf16.msra.mxu0 0
        %706 = vmatprep.subr.bf16.mxu0 0
        %707 = vmatpush1.bf16.msra.mxu0 0
        %708 = vmatprep.subr.bf16.mxu0 0
        %709 = vmatpush1.bf16.msra.mxu0 0
        %710 = vmatprep.subr.bf16.mxu0 0
        %711 = vmatpush1.bf16.msra.mxu0 0
        %712 = vmatprep.subr.bf16.mxu0 0
        %713 = vmatpush1.bf16.msra.mxu0 0
        %714 = vmatprep.subr.bf16.mxu0 0
        %715 = vmatpush1.bf16.msra.mxu0 0
        %716 = vmatprep.mubr.bf16.mxu0 0
        %717 = vmatmul.mubr.bf16.gmra.mrb[0].mxu0 %v679
        %v718 = vpop.f32.mrb[0].mxu0
        %v719 = vadd.f32 0.0, %v718
        %v720 = vpop.f32.mrb[0].mxu0
        %v721 = vpop.f32.mrb[0].mxu0
        %v722 = vpop.f32.mrb[0].mxu0
        %723 = vdwg.mxu0
        %v724 = vadd.f32 %v672, %v719
        %s725 = scalar_lea.vmem %s338, 14
        %v726 = vld [vmem:[%s725] sm:$0x3]
        %v728 = vunpack.c.l.b16 %v674
        %v729 = vpack.c.b16 %v728, %v728
        %730 = vrot.lane.b32.xlu0 %v729, 124
        %v731 = vpop.permute.xlu0 %730
        %v733 = vsel %vm355, %v731, 0
        %v736 = vsel %vm359, %v726, 0
        %738 = vmatprep.subr.bf16.mxu0 0
        %739 = vmatpush1.bf16.msra.mxu0 %v736
        %740 = vmatprep.subr.bf16.mxu0 0
        %741 = vmatpush1.bf16.msra.mxu0 0
        %742 = vmatprep.subr.bf16.mxu0 0
        %743 = vmatpush1.bf16.msra.mxu0 0
        %744 = vmatprep.subr.bf16.mxu0 0
        %745 = vmatpush1.bf16.msra.mxu0 0
        %746 = vmatprep.subr.bf16.mxu0 0
        %747 = vmatpush1.bf16.msra.mxu0 0
        %748 = vmatprep.subr.bf16.mxu0 0
        %749 = vmatpush1.bf16.msra.mxu0 0
        %750 = vmatprep.subr.bf16.mxu0 0
        %751 = vmatpush1.bf16.msra.mxu0 0
        %752 = vmatprep.subr.bf16.mxu0 0
        %753 = vmatpush1.bf16.msra.mxu0 0
        %754 = vmatprep.subr.bf16.mxu0 0
        %755 = vmatpush1.bf16.msra.mxu0 0
        %756 = vmatprep.subr.bf16.mxu0 0
        %757 = vmatpush1.bf16.msra.mxu0 0
        %758 = vmatprep.subr.bf16.mxu0 0
        %759 = vmatpush1.bf16.msra.mxu0 0
        %760 = vmatprep.subr.bf16.mxu0 0
        %761 = vmatpush1.bf16.msra.mxu0 0
        %762 = vmatprep.subr.bf16.mxu0 0
        %763 = vmatpush1.bf16.msra.mxu0 0
        %764 = vmatprep.subr.bf16.mxu0 0
        %765 = vmatpush1.bf16.msra.mxu0 0
        %766 = vmatprep.subr.bf16.mxu0 0
        %767 = vmatpush1.bf16.msra.mxu0 0
        %768 = vmatprep.subr.bf16.mxu0 0
        %769 = vmatpush1.bf16.msra.mxu0 0
        %770 = vmatprep.mubr.bf16.mxu0 0
        %771 = vmatmul.mubr.bf16.gmra.mrb[0].mxu0 %v733
        %v772 = vpop.f32.mrb[0].mxu0
        %v773 = vadd.f32 0.0, %v772
        %v774 = vpop.f32.mrb[0].mxu0
        %v775 = vpop.f32.mrb[0].mxu0
        %v776 = vpop.f32.mrb[0].mxu0
        %777 = vdwg.mxu0
        %v778 = vadd.f32 %v724, %v773
        %s779 = scalar_lea.vmem %s338, 16
        %v780 = vld [vmem:[%s779] sm:$0x3]
        %v782 = vunpack.c.l.b16 %v675
        %v783 = vpack.c.b16 %v782, %v728
        %v785 = vshrl.u32 %v783, 16
        %v787 = vshll.u32 %v783, 16
        %v789 = vrot.slane %v787, 1
        %v790 = vor.u32 %v785, %v789
        %v792 = vsel %vm355, %v790, 0
        %v795 = vsel %vm359, %v780, 0
        %797 = vmatprep.subr.bf16.mxu0 0
        %798 = vmatpush1.bf16.msra.mxu0 %v795
        %799 = vmatprep.subr.bf16.mxu0 0
        %800 = vmatpush1.bf16.msra.mxu0 0
        %801 = vmatprep.subr.bf16.mxu0 0
        %802 = vmatpush1.bf16.msra.mxu0 0
        %803 = vmatprep.subr.bf16.mxu0 0
        %804 = vmatpush1.bf16.msra.mxu0 0
        %805 = vmatprep.subr.bf16.mxu0 0
        %806 = vmatpush1.bf16.msra.mxu0 0
        %807 = vmatprep.subr.bf16.mxu0 0
        %808 = vmatpush1.bf16.msra.mxu0 0
        %809 = vmatprep.subr.bf16.mxu0 0
        %810 = vmatpush1.bf16.msra.mxu0 0
        %811 = vmatprep.subr.bf16.mxu0 0
        %812 = vmatpush1.bf16.msra.mxu0 0
        %813 = vmatprep.subr.bf16.mxu0 0
        %814 = vmatpush1.bf16.msra.mxu0 0
        %815 = vmatprep.subr.bf16.mxu0 0
        %816 = vmatpush1.bf16.msra.mxu0 0
        %817 = vmatprep.subr.bf16.mxu0 0
        %818 = vmatpush1.bf16.msra.mxu0 0
        %819 = vmatprep.subr.bf16.mxu0 0
        %820 = vmatpush1.bf16.msra.mxu0 0
        %821 = vmatprep.subr.bf16.mxu0 0
        %822 = vmatpush1.bf16.msra.mxu0 0
        %823 = vmatprep.subr.bf16.mxu0 0
        %824 = vmatpush1.bf16.msra.mxu0 0
        %825 = vmatprep.subr.bf16.mxu0 0
        %826 = vmatpush1.bf16.msra.mxu0 0
        %827 = vmatprep.subr.bf16.mxu0 0
        %828 = vmatpush1.bf16.msra.mxu0 0
        %829 = vmatprep.mubr.bf16.mxu0 0
        %830 = vmatmul.mubr.bf16.gmra.mrb[0].mxu0 %v792
        %v831 = vpop.f32.mrb[0].mxu0
        %v832 = vadd.f32 0.0, %v831
        %v833 = vpop.f32.mrb[0].mxu0
        %v834 = vpop.f32.mrb[0].mxu0
        %v835 = vpop.f32.mrb[0].mxu0
        %836 = vdwg.mxu0
        %v837 = vadd.f32 %v778, %v832
        %v839 = vlaneseq
        %v840 = vshrl.u32 %v839, 7
        %v841 = vsub.s32 0, %v840
        %v842 = vrot.slane %v344, %v841
        %v844 = vadd.f32 %v837, %v842
        %845 = vst [vmem:[%s300] sm:$0xff] %v844
        %v846 = vld [vmem:[%s673] sm:$0xf]
        %v847 = vld [vmem:[%s673 + $0x4] sm:$0x1]
        %v848 = vld [vmem:[%s338] sm:$0x3]
        %v849 = vld [vmem:[%s348] sm:$0x3]
        %v851 = vunpack.c.l.b16 %v846
        %v852 = vpack.c.b16 %v851, %v851
        %853 = vrot.lane.b32.xlu0 %v852, 124
        %v854 = vpop.permute.xlu0 %853
        %v856 = vsel %vm355, %v854, 0
        %v859 = vsel %vm359, %v849, 0
        %861 = vmatprep.subr.bf16.mxu0 0
        %862 = vmatpush1.bf16.msra.mxu0 %v859
        %863 = vmatprep.subr.bf16.mxu0 0
        %864 = vmatpush1.bf16.msra.mxu0 0
        %865 = vmatprep.subr.bf16.mxu0 0
        %866 = vmatpush1.bf16.msra.mxu0 0
        %867 = vmatprep.subr.bf16.mxu0 0
        %868 = vmatpush1.bf16.msra.mxu0 0
        %869 = vmatprep.subr.bf16.mxu0 0
        %870 = vmatpush1.bf16.msra.mxu0 0
        %871 = vmatprep.subr.bf16.mxu0 0
        %872 = vmatpush1.bf16.msra.mxu0 0
        %873 = vmatprep.subr.bf16.mxu0 0
        %874 = vmatpush1.bf16.msra.mxu0 0
        %875 = vmatprep.subr.bf16.mxu0 0
        %876 = vmatpush1.bf16.msra.mxu0 0
        %877 = vmatprep.subr.bf16.mxu0 0
        %878 = vmatpush1.bf16.msra.mxu0 0
        %879 = vmatprep.subr.bf16.mxu0 0
        %880 = vmatpush1.bf16.msra.mxu0 0
        %881 = vmatprep.subr.bf16.mxu0 0
        %882 = vmatpush1.bf16.msra.mxu0 0
        %883 = vmatprep.subr.bf16.mxu0 0
        %884 = vmatpush1.bf16.msra.mxu0 0
        %885 = vmatprep.subr.bf16.mxu0 0
        %886 = vmatpush1.bf16.msra.mxu0 0
        %887 = vmatprep.subr.bf16.mxu0 0
        %888 = vmatpush1.bf16.msra.mxu0 0
        %889 = vmatprep.subr.bf16.mxu0 0
        %890 = vmatpush1.bf16.msra.mxu0 0
        %891 = vmatprep.subr.bf16.mxu0 0
        %892 = vmatpush1.bf16.msra.mxu0 0
        %893 = vmatprep.mubr.bf16.mxu0 0
        %894 = vmatmul.mubr.bf16.gmra.mrb[0].mxu0 %v856
        %v895 = vpop.f32.mrb[0].mxu0
        %v896 = vadd.f32 0.0, %v895
        %v897 = vpop.f32.mrb[0].mxu0
        %v898 = vpop.f32.mrb[0].mxu0
        %v899 = vpop.f32.mrb[0].mxu0
        %900 = vdwg.mxu0
        %v902 = vsel %vm355, %v846, 0
        %v905 = vsel %vm359, %v848, 0
        %907 = vmatprep.subr.bf16.mxu0 0
        %908 = vmatpush1.bf16.msra.mxu0 %v905
        %909 = vmatprep.subr.bf16.mxu0 0
        %910 = vmatpush1.bf16.msra.mxu0 0
        %911 = vmatprep.subr.bf16.mxu0 0
        %912 = vmatpush1.bf16.msra.mxu0 0
        %913 = vmatprep.subr.bf16.mxu0 0
        %914 = vmatpush1.bf16.msra.mxu0 0
        %915 = vmatprep.subr.bf16.mxu0 0
        %916 = vmatpush1.bf16.msra.mxu0 0
        %917 = vmatprep.subr.bf16.mxu0 0
        %918 = vmatpush1.bf16.msra.mxu0 0
        %919 = vmatprep.subr.bf16.mxu0 0
        %920 = vmatpush1.bf16.msra.mxu0 0
        %921 = vmatprep.subr.bf16.mxu0 0
        %922 = vmatpush1.bf16.msra.mxu0 0
        %923 = vmatprep.subr.bf16.mxu0 0
        %924 = vmatpush1.bf16.msra.mxu0 0
        %925 = vmatprep.subr.bf16.mxu0 0
        %926 = vmatpush1.bf16.msra.mxu0 0
        %927 = vmatprep.subr.bf16.mxu0 0
        %928 = vmatpush1.bf16.msra.mxu0 0
        %929 = vmatprep.subr.bf16.mxu0 0
        %930 = vmatpush1.bf16.msra.mxu0 0
        %931 = vmatprep.subr.bf16.mxu0 0
        %932 = vmatpush1.bf16.msra.mxu0 0
        %933 = vmatprep.subr.bf16.mxu0 0
        %934 = vmatpush1.bf16.msra.mxu0 0
        %935 = vmatprep.subr.bf16.mxu0 0
        %936 = vmatpush1.bf16.msra.mxu0 0
        %937 = vmatprep.subr.bf16.mxu0 0
        %938 = vmatpush1.bf16.msra.mxu0 0
        %939 = vmatprep.mubr.bf16.mxu0 0
        %940 = vmatmul.mubr.bf16.gmra.mrb[0].mxu0 %v902
        %v941 = vpop.f32.mrb[0].mxu0
        %v942 = vadd.f32 %v896, %v941
        %v943 = vpop.f32.mrb[0].mxu0
        %v944 = vpop.f32.mrb[0].mxu0
        %v945 = vpop.f32.mrb[0].mxu0
        %946 = vdwg.mxu0
        %v947 = vld [vmem:[%s449] sm:$0x3]
        %v949 = vunpack.c.l.b16 %v847
        %v950 = vpack.c.b16 %v949, %v851
        %v952 = vshrl.u32 %v950, 16
        %v954 = vshll.u32 %v950, 16
        %v956 = vrot.slane %v954, 1
        %v957 = vor.u32 %v952, %v956
        %v959 = vsel %vm355, %v957, 0
        %v962 = vsel %vm359, %v947, 0
        %964 = vmatprep.subr.bf16.mxu0 0
        %965 = vmatpush1.bf16.msra.mxu0 %v962
        %966 = vmatprep.subr.bf16.mxu0 0
        %967 = vmatpush1.bf16.msra.mxu0 0
        %968 = vmatprep.subr.bf16.mxu0 0
        %969 = vmatpush1.bf16.msra.mxu0 0
        %970 = vmatprep.subr.bf16.mxu0 0
        %971 = vmatpush1.bf16.msra.mxu0 0
        %972 = vmatprep.subr.bf16.mxu0 0
        %973 = vmatpush1.bf16.msra.mxu0 0
        %974 = vmatprep.subr.bf16.mxu0 0
        %975 = vmatpush1.bf16.msra.mxu0 0
        %976 = vmatprep.subr.bf16.mxu0 0
        %977 = vmatpush1.bf16.msra.mxu0 0
        %978 = vmatprep.subr.bf16.mxu0 0
        %979 = vmatpush1.bf16.msra.mxu0 0
        %980 = vmatprep.subr.bf16.mxu0 0
        %981 = vmatpush1.bf16.msra.mxu0 0
        %982 = vmatprep.subr.bf16.mxu0 0
        %983 = vmatpush1.bf16.msra.mxu0 0
        %984 = vmatprep.subr.bf16.mxu0 0
        %985 = vmatpush1.bf16.msra.mxu0 0
        %986 = vmatprep.subr.bf16.mxu0 0
        %987 = vmatpush1.bf16.msra.mxu0 0
        %988 = vmatprep.subr.bf16.mxu0 0
        %989 = vmatpush1.bf16.msra.mxu0 0
        %990 = vmatprep.subr.bf16.mxu0 0
        %991 = vmatpush1.bf16.msra.mxu0 0
        %992 = vmatprep.subr.bf16.mxu0 0
        %993 = vmatpush1.bf16.msra.mxu0 0
        %994 = vmatprep.subr.bf16.mxu0 0
        %995 = vmatpush1.bf16.msra.mxu0 0
        %996 = vmatprep.mubr.bf16.mxu0 0
        %997 = vmatmul.mubr.bf16.gmra.mrb[0].mxu0 %v959
        %v998 = vpop.f32.mrb[0].mxu0
        %v999 = vadd.f32 0.0, %v998
        %v1000 = vpop.f32.mrb[0].mxu0
        %v1001 = vpop.f32.mrb[0].mxu0
        %v1002 = vpop.f32.mrb[0].mxu0
        %1003 = vdwg.mxu0
        %v1004 = vadd.f32 %v942, %v999
        %s1005 = scalar_lea.vmem %s315, 24
        %v1006 = vld [vmem:[%s1005] sm:$0xf]
        %v1007 = vld [vmem:[%s1005 + $0x4] sm:$0x1]
        %v1008 = vld [vmem:[%s511] sm:$0x3]
        %v1010 = vsel %vm355, %v1006, 0
        %v1013 = vsel %vm359, %v1008, 0
        %1015 = vmatprep.subr.bf16.mxu0 0
        %1016 = vmatpush1.bf16.msra.mxu0 %v1013
        %1017 = vmatprep.subr.bf16.mxu0 0
        %1018 = vmatpush1.bf16.msra.mxu0 0
        %1019 = vmatprep.subr.bf16.mxu0 0
        %1020 = vmatpush1.bf16.msra.mxu0 0
        %1021 = vmatprep.subr.bf16.mxu0 0
        %1022 = vmatpush1.bf16.msra.mxu0 0
        %1023 = vmatprep.subr.bf16.mxu0 0
        %1024 = vmatpush1.bf16.msra.mxu0 0
        %1025 = vmatprep.subr.bf16.mxu0 0
        %1026 = vmatpush1.bf16.msra.mxu0 0
        %1027 = vmatprep.subr.bf16.mxu0 0
        %1028 = vmatpush1.bf16.msra.mxu0 0
        %1029 = vmatprep.subr.bf16.mxu0 0
        %1030 = vmatpush1.bf16.msra.mxu0 0
        %1031 = vmatprep.subr.bf16.mxu0 0
        %1032 = vmatpush1.bf16.msra.mxu0 0
        %1033 = vmatprep.subr.bf16.mxu0 0
        %1034 = vmatpush1.bf16.msra.mxu0 0
        %1035 = vmatprep.subr.bf16.mxu0 0
        %1036 = vmatpush1.bf16.msra.mxu0 0
        %1037 = vmatprep.subr.bf16.mxu0 0
        %1038 = vmatpush1.bf16.msra.mxu0 0
        %1039 = vmatprep.subr.bf16.mxu0 0
        %1040 = vmatpush1.bf16.msra.mxu0 0
        %1041 = vmatprep.subr.bf16.mxu0 0
        %1042 = vmatpush1.bf16.msra.mxu0 0
        %1043 = vmatprep.subr.bf16.mxu0 0
        %1044 = vmatpush1.bf16.msra.mxu0 0
        %1045 = vmatprep.subr.bf16.mxu0 0
        %1046 = vmatpush1.bf16.msra.mxu0 0
        %1047 = vmatprep.mubr.bf16.mxu0 0
        %1048 = vmatmul.mubr.bf16.gmra.mrb[0].mxu0 %v1010
        %v1049 = vpop.f32.mrb[0].mxu0
        %v1050 = vadd.f32 0.0, %v1049
        %v1051 = vpop.f32.mrb[0].mxu0
        %v1052 = vpop.f32.mrb[0].mxu0
        %v1053 = vpop.f32.mrb[0].mxu0
        %1054 = vdwg.mxu0
        %v1055 = vadd.f32 %v1004, %v1050
        %v1056 = vld [vmem:[%s560] sm:$0x3]
        %v1058 = vunpack.c.l.b16 %v1006
        %v1059 = vpack.c.b16 %v1058, %v1058
        %1060 = vrot.lane.b32.xlu0 %v1059, 124
        %v1061 = vpop.permute.xlu0 %1060
        %v1063 = vsel %vm355, %v1061, 0
        %v1066 = vsel %vm359, %v1056, 0
        %1068 = vmatprep.subr.bf16.mxu0 0
        %1069 = vmatpush1.bf16.msra.mxu0 %v1066
        %1070 = vmatprep.subr.bf16.mxu0 0
        %1071 = vmatpush1.bf16.msra.mxu0 0
        %1072 = vmatprep.subr.bf16.mxu0 0
        %1073 = vmatpush1.bf16.msra.mxu0 0
        %1074 = vmatprep.subr.bf16.mxu0 0
        %1075 = vmatpush1.bf16.msra.mxu0 0
        %1076 = vmatprep.subr.bf16.mxu0 0
        %1077 = vmatpush1.bf16.msra.mxu0 0
        %1078 = vmatprep.subr.bf16.mxu0 0
        %1079 = vmatpush1.bf16.msra.mxu0 0
        %1080 = vmatprep.subr.bf16.mxu0 0
        %1081 = vmatpush1.bf16.msra.mxu0 0
        %1082 = vmatprep.subr.bf16.mxu0 0
        %1083 = vmatpush1.bf16.msra.mxu0 0
        %1084 = vmatprep.subr.bf16.mxu0 0
        %1085 = vmatpush1.bf16.msra.mxu0 0
        %1086 = vmatprep.subr.bf16.mxu0 0
        %1087 = vmatpush1.bf16.msra.mxu0 0
        %1088 = vmatprep.subr.bf16.mxu0 0
        %1089 = vmatpush1.bf16.msra.mxu0 0
        %1090 = vmatprep.subr.bf16.mxu0 0
        %1091 = vmatpush1.bf16.msra.mxu0 0
        %1092 = vmatprep.subr.bf16.mxu0 0
        %1093 = vmatpush1.bf16.msra.mxu0 0
        %1094 = vmatprep.subr.bf16.mxu0 0
        %1095 = vmatpush1.bf16.msra.mxu0 0
        %1096 = vmatprep.subr.bf16.mxu0 0
        %1097 = vmatpush1.bf16.msra.mxu0 0
        %1098 = vmatprep.subr.bf16.mxu0 0
        %1099 = vmatpush1.bf16.msra.mxu0 0
        %1100 = vmatprep.mubr.bf16.mxu0 0
        %1101 = vmatmul.mubr.bf16.gmra.mrb[0].mxu0 %v1063
        %v1102 = vpop.f32.mrb[0].mxu0
        %v1103 = vadd.f32 0.0, %v1102
        %v1104 = vpop.f32.mrb[0].mxu0
        %v1105 = vpop.f32.mrb[0].mxu0
        %v1106 = vpop.f32.mrb[0].mxu0
        %1107 = vdwg.mxu0
        %v1108 = vadd.f32 %v1055, %v1103
        %v1109 = vld [vmem:[%s614] sm:$0x3]
        %v1111 = vunpack.c.l.b16 %v1007
        %v1112 = vpack.c.b16 %v1111, %v1058
        %v1114 = vshrl.u32 %v1112, 16
        %v1116 = vshll.u32 %v1112, 16
        %v1118 = vrot.slane %v1116, 1
        %v1119 = vor.u32 %v1114, %v1118
        %v1121 = vsel %vm355, %v1119, 0
        %v1124 = vsel %vm359, %v1109, 0
        %1126 = vmatprep.subr.bf16.mxu0 0
        %1127 = vmatpush1.bf16.msra.mxu0 %v1124
        %1128 = vmatprep.subr.bf16.mxu0 0
        %1129 = vmatpush1.bf16.msra.mxu0 0
        %1130 = vmatprep.subr.bf16.mxu0 0
        %1131 = vmatpush1.bf16.msra.mxu0 0
        %1132 = vmatprep.subr.bf16.mxu0 0
        %1133 = vmatpush1.bf16.msra.mxu0 0
        %1134 = vmatprep.subr.bf16.mxu0 0
        %1135 = vmatpush1.bf16.msra.mxu0 0
        %1136 = vmatprep.subr.bf16.mxu0 0
        %1137 = vmatpush1.bf16.msra.mxu0 0
        %1138 = vmatprep.subr.bf16.mxu0 0
        %1139 = vmatpush1.bf16.msra.mxu0 0
        %1140 = vmatprep.subr.bf16.mxu0 0
        %1141 = vmatpush1.bf16.msra.mxu0 0
        %1142 = vmatprep.subr.bf16.mxu0 0
        %1143 = vmatpush1.bf16.msra.mxu0 0
        %1144 = vmatprep.subr.bf16.mxu0 0
        %1145 = vmatpush1.bf16.msra.mxu0 0
        %1146 = vmatprep.subr.bf16.mxu0 0
        %1147 = vmatpush1.bf16.msra.mxu0 0
        %1148 = vmatprep.subr.bf16.mxu0 0
        %1149 = vmatpush1.bf16.msra.mxu0 0
        %1150 = vmatprep.subr.bf16.mxu0 0
        %1151 = vmatpush1.bf16.msra.mxu0 0
        %1152 = vmatprep.subr.bf16.mxu0 0
        %1153 = vmatpush1.bf16.msra.mxu0 0
        %1154 = vmatprep.subr.bf16.mxu0 0
        %1155 = vmatpush1.bf16.msra.mxu0 0
        %1156 = vmatprep.subr.bf16.mxu0 0
        %1157 = vmatpush1.bf16.msra.mxu0 0
        %1158 = vmatprep.mubr.bf16.mxu0 0
        %1159 = vmatmul.mubr.bf16.gmra.mrb[0].mxu0 %v1121
        %v1160 = vpop.f32.mrb[0].mxu0
        %v1161 = vadd.f32 0.0, %v1160
        %v1162 = vpop.f32.mrb[0].mxu0
        %v1163 = vpop.f32.mrb[0].mxu0
        %v1164 = vpop.f32.mrb[0].mxu0
        %1165 = vdwg.mxu0
        %v1166 = vadd.f32 %v1108, %v1161
        %s1167 = scalar_lea.vmem %s315, 32
        %v1168 = vld [vmem:[%s1167] sm:$0xf]
        %v1169 = vld [vmem:[%s1167 + $0x4] sm:$0x1]
        %v1170 = vld [vmem:[%s676] sm:$0x3]
        %v1172 = vsel %vm355, %v1168, 0
        %v1175 = vsel %vm359, %v1170, 0
        %1177 = vmatprep.subr.bf16.mxu0 0
        %1178 = vmatpush1.bf16.msra.mxu0 %v1175
        %1179 = vmatprep.subr.bf16.mxu0 0
        %1180 = vmatpush1.bf16.msra.mxu0 0
        %1181 = vmatprep.subr.bf16.mxu0 0
        %1182 = vmatpush1.bf16.msra.mxu0 0
        %1183 = vmatprep.subr.bf16.mxu0 0
        %1184 = vmatpush1.bf16.msra.mxu0 0
        %1185 = vmatprep.subr.bf16.mxu0 0
        %1186 = vmatpush1.bf16.msra.mxu0 0
        %1187 = vmatprep.subr.bf16.mxu0 0
        %1188 = vmatpush1.bf16.msra.mxu0 0
        %1189 = vmatprep.subr.bf16.mxu0 0
        %1190 = vmatpush1.bf16.msra.mxu0 0
        %1191 = vmatprep.subr.bf16.mxu0 0
        %1192 = vmatpush1.bf16.msra.mxu0 0
        %1193 = vmatprep.subr.bf16.mxu0 0
        %1194 = vmatpush1.bf16.msra.mxu0 0
        %1195 = vmatprep.subr.bf16.mxu0 0
        %1196 = vmatpush1.bf16.msra.mxu0 0
        %1197 = vmatprep.subr.bf16.mxu0 0
        %1198 = vmatpush1.bf16.msra.mxu0 0
        %1199 = vmatprep.subr.bf16.mxu0 0
        %1200 = vmatpush1.bf16.msra.mxu0 0
        %1201 = vmatprep.subr.bf16.mxu0 0
        %1202 = vmatpush1.bf16.msra.mxu0 0
        %1203 = vmatprep.subr.bf16.mxu0 0
        %1204 = vmatpush1.bf16.msra.mxu0 0
        %1205 = vmatprep.subr.bf16.mxu0 0
        %1206 = vmatpush1.bf16.msra.mxu0 0
        %1207 = vmatprep.subr.bf16.mxu0 0
        %1208 = vmatpush1.bf16.msra.mxu0 0
        %1209 = vmatprep.mubr.bf16.mxu0 0
        %1210 = vmatmul.mubr.bf16.gmra.mrb[0].mxu0 %v1172
        %v1211 = vpop.f32.mrb[0].mxu0
        %v1212 = vadd.f32 0.0, %v1211
        %v1213 = vpop.f32.mrb[0].mxu0
        %v1214 = vpop.f32.mrb[0].mxu0
        %v1215 = vpop.f32.mrb[0].mxu0
        %1216 = vdwg.mxu0
        %v1217 = vadd.f32 %v1166, %v1212
        %v1218 = vld [vmem:[%s725] sm:$0x3]
        %v1220 = vunpack.c.l.b16 %v1168
        %v1221 = vpack.c.b16 %v1220, %v1220
        %1222 = vrot.lane.b32.xlu0 %v1221, 124
        %v1223 = vpop.permute.xlu0 %1222
        %v1225 = vsel %vm355, %v1223, 0
        %v1228 = vsel %vm359, %v1218, 0
        %1230 = vmatprep.subr.bf16.mxu0 0
        %1231 = vmatpush1.bf16.msra.mxu0 %v1228
        %1232 = vmatprep.subr.bf16.mxu0 0
        %1233 = vmatpush1.bf16.msra.mxu0 0
        %1234 = vmatprep.subr.bf16.mxu0 0
        %1235 = vmatpush1.bf16.msra.mxu0 0
        %1236 = vmatprep.subr.bf16.mxu0 0
        %1237 = vmatpush1.bf16.msra.mxu0 0
        %1238 = vmatprep.subr.bf16.mxu0 0
        %1239 = vmatpush1.bf16.msra.mxu0 0
        %1240 = vmatprep.subr.bf16.mxu0 0
        %1241 = vmatpush1.bf16.msra.mxu0 0
        %1242 = vmatprep.subr.bf16.mxu0 0
        %1243 = vmatpush1.bf16.msra.mxu0 0
        %1244 = vmatprep.subr.bf16.mxu0 0
        %1245 = vmatpush1.bf16.msra.mxu0 0
        %1246 = vmatprep.subr.bf16.mxu0 0
        %1247 = vmatpush1.bf16.msra.mxu0 0
        %1248 = vmatprep.subr.bf16.mxu0 0
        %1249 = vmatpush1.bf16.msra.mxu0 0
        %1250 = vmatprep.subr.bf16.mxu0 0
        %1251 = vmatpush1.bf16.msra.mxu0 0
        %1252 = vmatprep.subr.bf16.mxu0 0
        %1253 = vmatpush1.bf16.msra.mxu0 0
        %1254 = vmatprep.subr.bf16.mxu0 0
        %1255 = vmatpush1.bf16.msra.mxu0 0
        %1256 = vmatprep.subr.bf16.mxu0 0
        %1257 = vmatpush1.bf16.msra.mxu0 0
        %1258 = vmatprep.subr.bf16.mxu0 0
        %1259 = vmatpush1.bf16.msra.mxu0 0
        %1260 = vmatprep.subr.bf16.mxu0 0
        %1261 = vmatpush1.bf16.msra.mxu0 0
        %1262 = vmatprep.mubr.bf16.mxu0 0
        %1263 = vmatmul.mubr.bf16.gmra.mrb[0].mxu0 %v1225
        %v1264 = vpop.f32.mrb[0].mxu0
        %v1265 = vadd.f32 0.0, %v1264
        %v1266 = vpop.f32.mrb[0].mxu0
        %v1267 = vpop.f32.mrb[0].mxu0
        %v1268 = vpop.f32.mrb[0].mxu0
        %1269 = vdwg.mxu0
        %v1270 = vadd.f32 %v1217, %v1265
        %v1271 = vld [vmem:[%s779] sm:$0x3]
        %v1273 = vunpack.c.l.b16 %v1169
        %v1274 = vpack.c.b16 %v1273, %v1220
        %v1276 = vshrl.u32 %v1274, 16
        %v1278 = vshll.u32 %v1274, 16
        %v1280 = vrot.slane %v1278, 1
        %v1281 = vor.u32 %v1276, %v1280
        %v1283 = vsel %vm355, %v1281, 0
        %v1286 = vsel %vm359, %v1271, 0
        %1288 = vmatprep.subr.bf16.mxu0 0
        %1289 = vmatpush1.bf16.msra.mxu0 %v1286
        %1290 = vmatprep.subr.bf16.mxu0 0
        %1291 = vmatpush1.bf16.msra.mxu0 0
        %1292 = vmatprep.subr.bf16.mxu0 0
        %1293 = vmatpush1.bf16.msra.mxu0 0
        %1294 = vmatprep.subr.bf16.mxu0 0
        %1295 = vmatpush1.bf16.msra.mxu0 0
        %1296 = vmatprep.subr.bf16.mxu0 0
        %1297 = vmatpush1.bf16.msra.mxu0 0
        %1298 = vmatprep.subr.bf16.mxu0 0
        %1299 = vmatpush1.bf16.msra.mxu0 0
        %1300 = vmatprep.subr.bf16.mxu0 0
        %1301 = vmatpush1.bf16.msra.mxu0 0
        %1302 = vmatprep.subr.bf16.mxu0 0
        %1303 = vmatpush1.bf16.msra.mxu0 0
        %1304 = vmatprep.subr.bf16.mxu0 0
        %1305 = vmatpush1.bf16.msra.mxu0 0
        %1306 = vmatprep.subr.bf16.mxu0 0
        %1307 = vmatpush1.bf16.msra.mxu0 0
        %1308 = vmatprep.subr.bf16.mxu0 0
        %1309 = vmatpush1.bf16.msra.mxu0 0
        %1310 = vmatprep.subr.bf16.mxu0 0
        %1311 = vmatpush1.bf16.msra.mxu0 0
        %1312 = vmatprep.subr.bf16.mxu0 0
        %1313 = vmatpush1.bf16.msra.mxu0 0
        %1314 = vmatprep.subr.bf16.mxu0 0
        %1315 = vmatpush1.bf16.msra.mxu0 0
        %1316 = vmatprep.subr.bf16.mxu0 0
        %1317 = vmatpush1.bf16.msra.mxu0 0
        %1318 = vmatprep.subr.bf16.mxu0 0
        %1319 = vmatpush1.bf16.msra.mxu0 0
        %1320 = vmatprep.mubr.bf16.mxu0 0
        %1321 = vmatmul.mubr.bf16.gmra.mrb[0].mxu0 %v1283
        %v1322 = vpop.f32.mrb[0].mxu0
        %v1323 = vadd.f32 0.0, %v1322
        %v1324 = vpop.f32.mrb[0].mxu0
        %v1325 = vpop.f32.mrb[0].mxu0
        %v1326 = vpop.f32.mrb[0].mxu0
        %1327 = vdwg.mxu0
        %v1328 = vadd.f32 %v1270, %v1323
        %v1329 = vadd.f32 %v1328, %v842
        %s1330 = scalar_lea.vmem %s300, 8 [#allocation2]
        %1331 = vst [vmem:[%s1330] sm:$0xff] %v1329
        %v1332 = vld [vmem:[%s1167] sm:$0xf]
        %v1333 = vld [vmem:[%s1167 + $0x4] sm:$0x1]
        %v1334 = vld [vmem:[%s338] sm:$0x3]
        %v1335 = vld [vmem:[%s348] sm:$0x3]
        %v1337 = vunpack.c.l.b16 %v1332
        %v1338 = vpack.c.b16 %v1337, %v1337
        %1339 = vrot.lane.b32.xlu0 %v1338, 124
        %v1340 = vpop.permute.xlu0 %1339
        %v1342 = vsel %vm355, %v1340, 0
        %v1345 = vsel %vm359, %v1335, 0
        %1347 = vmatprep.subr.bf16.mxu0 0
        %1348 = vmatpush1.bf16.msra.mxu0 %v1345
        %1349 = vmatprep.subr.bf16.mxu0 0
        %1350 = vmatpush1.bf16.msra.mxu0 0
        %1351 = vmatprep.subr.bf16.mxu0 0
        %1352 = vmatpush1.bf16.msra.mxu0 0
        %1353 = vmatprep.subr.bf16.mxu0 0
        %1354 = vmatpush1.bf16.msra.mxu0 0
        %1355 = vmatprep.subr.bf16.mxu0 0
        %1356 = vmatpush1.bf16.msra.mxu0 0
        %1357 = vmatprep.subr.bf16.mxu0 0
        %1358 = vmatpush1.bf16.msra.mxu0 0
        %1359 = vmatprep.subr.bf16.mxu0 0
        %1360 = vmatpush1.bf16.msra.mxu0 0
        %1361 = vmatprep.subr.bf16.mxu0 0
        %1362 = vmatpush1.bf16.msra.mxu0 0
        %1363 = vmatprep.subr.bf16.mxu0 0
        %1364 = vmatpush1.bf16.msra.mxu0 0
        %1365 = vmatprep.subr.bf16.mxu0 0
        %1366 = vmatpush1.bf16.msra.mxu0 0
        %1367 = vmatprep.subr.bf16.mxu0 0
        %1368 = vmatpush1.bf16.msra.mxu0 0
        %1369 = vmatprep.subr.bf16.mxu0 0
        %1370 = vmatpush1.bf16.msra.mxu0 0
        %1371 = vmatprep.subr.bf16.mxu0 0
        %1372 = vmatpush1.bf16.msra.mxu0 0
        %1373 = vmatprep.subr.bf16.mxu0 0
        %1374 = vmatpush1.bf16.msra.mxu0 0
        %1375 = vmatprep.subr.bf16.mxu0 0
        %1376 = vmatpush1.bf16.msra.mxu0 0
        %1377 = vmatprep.subr.bf16.mxu0 0
        %1378 = vmatpush1.bf16.msra.mxu0 0
        %1379 = vmatprep.mubr.bf16.mxu0 0
        %1380 = vmatmul.mubr.bf16.gmra.mrb[0].mxu0 %v1342
        %v1381 = vpop.f32.mrb[0].mxu0
        %v1382 = vadd.f32 0.0, %v1381
        %v1383 = vpop.f32.mrb[0].mxu0
        %v1384 = vpop.f32.mrb[0].mxu0
        %v1385 = vpop.f32.mrb[0].mxu0
        %1386 = vdwg.mxu0
        %v1388 = vsel %vm355, %v1332, 0
        %v1391 = vsel %vm359, %v1334, 0
        %1393 = vmatprep.subr.bf16.mxu0 0
        %1394 = vmatpush1.bf16.msra.mxu0 %v1391
        %1395 = vmatprep.subr.bf16.mxu0 0
        %1396 = vmatpush1.bf16.msra.mxu0 0
        %1397 = vmatprep.subr.bf16.mxu0 0
        %1398 = vmatpush1.bf16.msra.mxu0 0
        %1399 = vmatprep.subr.bf16.mxu0 0
        %1400 = vmatpush1.bf16.msra.mxu0 0
        %1401 = vmatprep.subr.bf16.mxu0 0
        %1402 = vmatpush1.bf16.msra.mxu0 0
        %1403 = vmatprep.subr.bf16.mxu0 0
        %1404 = vmatpush1.bf16.msra.mxu0 0
        %1405 = vmatprep.subr.bf16.mxu0 0
        %1406 = vmatpush1.bf16.msra.mxu0 0
        %1407 = vmatprep.subr.bf16.mxu0 0
        %1408 = vmatpush1.bf16.msra.mxu0 0
        %1409 = vmatprep.subr.bf16.mxu0 0
        %1410 = vmatpush1.bf16.msra.mxu0 0
        %1411 = vmatprep.subr.bf16.mxu0 0
        %1412 = vmatpush1.bf16.msra.mxu0 0
        %1413 = vmatprep.subr.bf16.mxu0 0
        %1414 = vmatpush1.bf16.msra.mxu0 0
        %1415 = vmatprep.subr.bf16.mxu0 0
        %1416 = vmatpush1.bf16.msra.mxu0 0
        %1417 = vmatprep.subr.bf16.mxu0 0
        %1418 = vmatpush1.bf16.msra.mxu0 0
        %1419 = vmatprep.subr.bf16.mxu0 0
        %1420 = vmatpush1.bf16.msra.mxu0 0
        %1421 = vmatprep.subr.bf16.mxu0 0
        %1422 = vmatpush1.bf16.msra.mxu0 0
        %1423 = vmatprep.subr.bf16.mxu0 0
        %1424 = vmatpush1.bf16.msra.mxu0 0
        %1425 = vmatprep.mubr.bf16.mxu0 0
        %1426 = vmatmul.mubr.bf16.gmra.mrb[0].mxu0 %v1388
        %v1427 = vpop.f32.mrb[0].mxu0
        %v1428 = vadd.f32 %v1382, %v1427
        %v1429 = vpop.f32.mrb[0].mxu0
        %v1430 = vpop.f32.mrb[0].mxu0
        %v1431 = vpop.f32.mrb[0].mxu0
        %1432 = vdwg.mxu0
        %v1433 = vld [vmem:[%s449] sm:$0x3]
        %v1435 = vunpack.c.l.b16 %v1333
        %v1436 = vpack.c.b16 %v1435, %v1337
        %v1438 = vshrl.u32 %v1436, 16
        %v1440 = vshll.u32 %v1436, 16
        %v1442 = vrot.slane %v1440, 1
        %v1443 = vor.u32 %v1438, %v1442
        %v1445 = vsel %vm355, %v1443, 0
        %v1448 = vsel %vm359, %v1433, 0
        %1450 = vmatprep.subr.bf16.mxu0 0
        %1451 = vmatpush1.bf16.msra.mxu0 %v1448
        %1452 = vmatprep.subr.bf16.mxu0 0
        %1453 = vmatpush1.bf16.msra.mxu0 0
        %1454 = vmatprep.subr.bf16.mxu0 0
        %1455 = vmatpush1.bf16.msra.mxu0 0
        %1456 = vmatprep.subr.bf16.mxu0 0
        %1457 = vmatpush1.bf16.msra.mxu0 0
        %1458 = vmatprep.subr.bf16.mxu0 0
        %1459 = vmatpush1.bf16.msra.mxu0 0
        %1460 = vmatprep.subr.bf16.mxu0 0
        %1461 = vmatpush1.bf16.msra.mxu0 0
        %1462 = vmatprep.subr.bf16.mxu0 0
        %1463 = vmatpush1.bf16.msra.mxu0 0
        %1464 = vmatprep.subr.bf16.mxu0 0
        %1465 = vmatpush1.bf16.msra.mxu0 0
        %1466 = vmatprep.subr.bf16.mxu0 0
        %1467 = vmatpush1.bf16.msra.mxu0 0
        %1468 = vmatprep.subr.bf16.mxu0 0
        %1469 = vmatpush1.bf16.msra.mxu0 0
        %1470 = vmatprep.subr.bf16.mxu0 0
        %1471 = vmatpush1.bf16.msra.mxu0 0
        %1472 = vmatprep.subr.bf16.mxu0 0
        %1473 = vmatpush1.bf16.msra.mxu0 0
        %1474 = vmatprep.subr.bf16.mxu0 0
        %1475 = vmatpush1.bf16.msra.mxu0 0
        %1476 = vmatprep.subr.bf16.mxu0 0
        %1477 = vmatpush1.bf16.msra.mxu0 0
        %1478 = vmatprep.subr.bf16.mxu0 0
        %1479 = vmatpush1.bf16.msra.mxu0 0
        %1480 = vmatprep.subr.bf16.mxu0 0
        %1481 = vmatpush1.bf16.msra.mxu0 0
        %1482 = vmatprep.mubr.bf16.mxu0 0
        %1483 = vmatmul.mubr.bf16.gmra.mrb[0].mxu0 %v1445
        %v1484 = vpop.f32.mrb[0].mxu0
        %v1485 = vadd.f32 0.0, %v1484
        %v1486 = vpop.f32.mrb[0].mxu0
        %v1487 = vpop.f32.mrb[0].mxu0
        %v1488 = vpop.f32.mrb[0].mxu0
        %1489 = vdwg.mxu0
        %v1490 = vadd.f32 %v1428, %v1485
        %s1491 = scalar_lea.vmem %s315, 40
        %v1492 = vld [vmem:[%s1491] sm:$0xf]
        %v1493 = vld [vmem:[%s1491 + $0x4] sm:$0x1]
        %v1494 = vld [vmem:[%s511] sm:$0x3]
        %v1496 = vsel %vm355, %v1492, 0
        %v1499 = vsel %vm359, %v1494, 0
        %1501 = vmatprep.subr.bf16.mxu0 0
        %1502 = vmatpush1.bf16.msra.mxu0 %v1499
        %1503 = vmatprep.subr.bf16.mxu0 0
        %1504 = vmatpush1.bf16.msra.mxu0 0
        %1505 = vmatprep.subr.bf16.mxu0 0
        %1506 = vmatpush1.bf16.msra.mxu0 0
        %1507 = vmatprep.subr.bf16.mxu0 0
        %1508 = vmatpush1.bf16.msra.mxu0 0
        %1509 = vmatprep.subr.bf16.mxu0 0
        %1510 = vmatpush1.bf16.msra.mxu0 0
        %1511 = vmatprep.subr.bf16.mxu0 0
        %1512 = vmatpush1.bf16.msra.mxu0 0
        %1513 = vmatprep.subr.bf16.mxu0 0
        %1514 = vmatpush1.bf16.msra.mxu0 0
        %1515 = vmatprep.subr.bf16.mxu0 0
        %1516 = vmatpush1.bf16.msra.mxu0 0
        %1517 = vmatprep.subr.bf16.mxu0 0
        %1518 = vmatpush1.bf16.msra.mxu0 0
        %1519 = vmatprep.subr.bf16.mxu0 0
        %1520 = vmatpush1.bf16.msra.mxu0 0
        %1521 = vmatprep.subr.bf16.mxu0 0
        %1522 = vmatpush1.bf16.msra.mxu0 0
        %1523 = vmatprep.subr.bf16.mxu0 0
        %1524 = vmatpush1.bf16.msra.mxu0 0
        %1525 = vmatprep.subr.bf16.mxu0 0
        %1526 = vmatpush1.bf16.msra.mxu0 0
        %1527 = vmatprep.subr.bf16.mxu0 0
        %1528 = vmatpush1.bf16.msra.mxu0 0
        %1529 = vmatprep.subr.bf16.mxu0 0
        %1530 = vmatpush1.bf16.msra.mxu0 0
        %1531 = vmatprep.subr.bf16.mxu0 0
        %1532 = vmatpush1.bf16.msra.mxu0 0
        %1533 = vmatprep.mubr.bf16.mxu0 0
        %1534 = vmatmul.mubr.bf16.gmra.mrb[0].mxu0 %v1496
        %v1535 = vpop.f32.mrb[0].mxu0
        %v1536 = vadd.f32 0.0, %v1535
        %v1537 = vpop.f32.mrb[0].mxu0
        %v1538 = vpop.f32.mrb[0].mxu0
        %v1539 = vpop.f32.mrb[0].mxu0
        %1540 = vdwg.mxu0
        %v1541 = vadd.f32 %v1490, %v1536
        %v1542 = vld [vmem:[%s560] sm:$0x3]
        %v1544 = vunpack.c.l.b16 %v1492
        %v1545 = vpack.c.b16 %v1544, %v1544
        %1546 = vrot.lane.b32.xlu0 %v1545, 124
        %v1547 = vpop.permute.xlu0 %1546
        %v1549 = vsel %vm355, %v1547, 0
        %v1552 = vsel %vm359, %v1542, 0
        %1554 = vmatprep.subr.bf16.mxu0 0
        %1555 = vmatpush1.bf16.msra.mxu0 %v1552
        %1556 = vmatprep.subr.bf16.mxu0 0
        %1557 = vmatpush1.bf16.msra.mxu0 0
        %1558 = vmatprep.subr.bf16.mxu0 0
        %1559 = vmatpush1.bf16.msra.mxu0 0
        %1560 = vmatprep.subr.bf16.mxu0 0
        %1561 = vmatpush1.bf16.msra.mxu0 0
        %1562 = vmatprep.subr.bf16.mxu0 0
        %1563 = vmatpush1.bf16.msra.mxu0 0
        %1564 = vmatprep.subr.bf16.mxu0 0
        %1565 = vmatpush1.bf16.msra.mxu0 0
        %1566 = vmatprep.subr.bf16.mxu0 0
        %1567 = vmatpush1.bf16.msra.mxu0 0
        %1568 = vmatprep.subr.bf16.mxu0 0
        %1569 = vmatpush1.bf16.msra.mxu0 0
        %1570 = vmatprep.subr.bf16.mxu0 0
        %1571 = vmatpush1.bf16.msra.mxu0 0
        %1572 = vmatprep.subr.bf16.mxu0 0
        %1573 = vmatpush1.bf16.msra.mxu0 0
        %1574 = vmatprep.subr.bf16.mxu0 0
        %1575 = vmatpush1.bf16.msra.mxu0 0
        %1576 = vmatprep.subr.bf16.mxu0 0
        %1577 = vmatpush1.bf16.msra.mxu0 0
        %1578 = vmatprep.subr.bf16.mxu0 0
        %1579 = vmatpush1.bf16.msra.mxu0 0
        %1580 = vmatprep.subr.bf16.mxu0 0
        %1581 = vmatpush1.bf16.msra.mxu0 0
        %1582 = vmatprep.subr.bf16.mxu0 0
        %1583 = vmatpush1.bf16.msra.mxu0 0
        %1584 = vmatprep.subr.bf16.mxu0 0
        %1585 = vmatpush1.bf16.msra.mxu0 0
        %1586 = vmatprep.mubr.bf16.mxu0 0
        %1587 = vmatmul.mubr.bf16.gmra.mrb[0].mxu0 %v1549
        %v1588 = vpop.f32.mrb[0].mxu0
        %v1589 = vadd.f32 0.0, %v1588
        %v1590 = vpop.f32.mrb[0].mxu0
        %v1591 = vpop.f32.mrb[0].mxu0
        %v1592 = vpop.f32.mrb[0].mxu0
        %1593 = vdwg.mxu0
        %v1594 = vadd.f32 %v1541, %v1589
        %v1595 = vld [vmem:[%s614] sm:$0x3]
        %v1597 = vunpack.c.l.b16 %v1493
        %v1598 = vpack.c.b16 %v1597, %v1544
        %v1600 = vshrl.u32 %v1598, 16
        %v1602 = vshll.u32 %v1598, 16
        %v1604 = vrot.slane %v1602, 1
        %v1605 = vor.u32 %v1600, %v1604
        %v1607 = vsel %vm355, %v1605, 0
        %v1610 = vsel %vm359, %v1595, 0
        %1612 = vmatprep.subr.bf16.mxu0 0
        %1613 = vmatpush1.bf16.msra.mxu0 %v1610
        %1614 = vmatprep.subr.bf16.mxu0 0
        %1615 = vmatpush1.bf16.msra.mxu0 0
        %1616 = vmatprep.subr.bf16.mxu0 0
        %1617 = vmatpush1.bf16.msra.mxu0 0
        %1618 = vmatprep.subr.bf16.mxu0 0
        %1619 = vmatpush1.bf16.msra.mxu0 0
        %1620 = vmatprep.subr.bf16.mxu0 0
        %1621 = vmatpush1.bf16.msra.mxu0 0
        %1622 = vmatprep.subr.bf16.mxu0 0
        %1623 = vmatpush1.bf16.msra.mxu0 0
        %1624 = vmatprep.subr.bf16.mxu0 0
        %1625 = vmatpush1.bf16.msra.mxu0 0
        %1626 = vmatprep.subr.bf16.mxu0 0
        %1627 = vmatpush1.bf16.msra.mxu0 0
        %1628 = vmatprep.subr.bf16.mxu0 0
        %1629 = vmatpush1.bf16.msra.mxu0 0
        %1630 = vmatprep.subr.bf16.mxu0 0
        %1631 = vmatpush1.bf16.msra.mxu0 0
        %1632 = vmatprep.subr.bf16.mxu0 0
        %1633 = vmatpush1.bf16.msra.mxu0 0
        %1634 = vmatprep.subr.bf16.mxu0 0
        %1635 = vmatpush1.bf16.msra.mxu0 0
        %1636 = vmatprep.subr.bf16.mxu0 0
        %1637 = vmatpush1.bf16.msra.mxu0 0
        %1638 = vmatprep.subr.bf16.mxu0 0
        %1639 = vmatpush1.bf16.msra.mxu0 0
        %1640 = vmatprep.subr.bf16.mxu0 0
        %1641 = vmatpush1.bf16.msra.mxu0 0
        %1642 = vmatprep.subr.bf16.mxu0 0
        %1643 = vmatpush1.bf16.msra.mxu0 0
        %1644 = vmatprep.mubr.bf16.mxu0 0
        %1645 = vmatmul.mubr.bf16.gmra.mrb[0].mxu0 %v1607
        %v1646 = vpop.f32.mrb[0].mxu0
        %v1647 = vadd.f32 0.0, %v1646
        %v1648 = vpop.f32.mrb[0].mxu0
        %v1649 = vpop.f32.mrb[0].mxu0
        %v1650 = vpop.f32.mrb[0].mxu0
        %1651 = vdwg.mxu0
        %v1652 = vadd.f32 %v1594, %v1647
        %s1653 = scalar_lea.vmem %s315, 48
        %v1654 = vld [vmem:[%s1653] sm:$0xf]
        %v1655 = vld [vmem:[%s1653 + $0x4] sm:$0x1]
        %v1656 = vld [vmem:[%s676] sm:$0x3]
        %v1658 = vsel %vm355, %v1654, 0
        %v1661 = vsel %vm359, %v1656, 0
        %1663 = vmatprep.subr.bf16.mxu0 0
        %1664 = vmatpush1.bf16.msra.mxu0 %v1661
        %1665 = vmatprep.subr.bf16.mxu0 0
        %1666 = vmatpush1.bf16.msra.mxu0 0
        %1667 = vmatprep.subr.bf16.mxu0 0
        %1668 = vmatpush1.bf16.msra.mxu0 0
        %1669 = vmatprep.subr.bf16.mxu0 0
        %1670 = vmatpush1.bf16.msra.mxu0 0
        %1671 = vmatprep.subr.bf16.mxu0 0
        %1672 = vmatpush1.bf16.msra.mxu0 0
        %1673 = vmatprep.subr.bf16.mxu0 0
        %1674 = vmatpush1.bf16.msra.mxu0 0
        %1675 = vmatprep.subr.bf16.mxu0 0
        %1676 = vmatpush1.bf16.msra.mxu0 0
        %1677 = vmatprep.subr.bf16.mxu0 0
        %1678 = vmatpush1.bf16.msra.mxu0 0
        %1679 = vmatprep.subr.bf16.mxu0 0
        %1680 = vmatpush1.bf16.msra.mxu0 0
        %1681 = vmatprep.subr.bf16.mxu0 0
        %1682 = vmatpush1.bf16.msra.mxu0 0
        %1683 = vmatprep.subr.bf16.mxu0 0
        %1684 = vmatpush1.bf16.msra.mxu0 0
        %1685 = vmatprep.subr.bf16.mxu0 0
        %1686 = vmatpush1.bf16.msra.mxu0 0
        %1687 = vmatprep.subr.bf16.mxu0 0
        %1688 = vmatpush1.bf16.msra.mxu0 0
        %1689 = vmatprep.subr.bf16.mxu0 0
        %1690 = vmatpush1.bf16.msra.mxu0 0
        %1691 = vmatprep.subr.bf16.mxu0 0
        %1692 = vmatpush1.bf16.msra.mxu0 0
        %1693 = vmatprep.subr.bf16.mxu0 0
        %1694 = vmatpush1.bf16.msra.mxu0 0
        %1695 = vmatprep.mubr.bf16.mxu0 0
        %1696 = vmatmul.mubr.bf16.gmra.mrb[0].mxu0 %v1658
        %v1697 = vpop.f32.mrb[0].mxu0
        %v1698 = vadd.f32 0.0, %v1697
        %v1699 = vpop.f32.mrb[0].mxu0
        %v1700 = vpop.f32.mrb[0].mxu0
        %v1701 = vpop.f32.mrb[0].mxu0
        %1702 = vdwg.mxu0
        %v1703 = vadd.f32 %v1652, %v1698
        %v1704 = vld [vmem:[%s725] sm:$0x3]
        %v1706 = vunpack.c.l.b16 %v1654
        %v1707 = vpack.c.b16 %v1706, %v1706
        %1708 = vrot.lane.b32.xlu0 %v1707, 124
        %v1709 = vpop.permute.xlu0 %1708
        %v1711 = vsel %vm355, %v1709, 0
        %v1714 = vsel %vm359, %v1704, 0
        %1716 = vmatprep.subr.bf16.mxu0 0
        %1717 = vmatpush1.bf16.msra.mxu0 %v1714
        %1718 = vmatprep.subr.bf16.mxu0 0
        %1719 = vmatpush1.bf16.msra.mxu0 0
        %1720 = vmatprep.subr.bf16.mxu0 0
        %1721 = vmatpush1.bf16.msra.mxu0 0
        %1722 = vmatprep.subr.bf16.mxu0 0
        %1723 = vmatpush1.bf16.msra.mxu0 0
        %1724 = vmatprep.subr.bf16.mxu0 0
        %1725 = vmatpush1.bf16.msra.mxu0 0
        %1726 = vmatprep.subr.bf16.mxu0 0
        %1727 = vmatpush1.bf16.msra.mxu0 0
        %1728 = vmatprep.subr.bf16.mxu0 0
        %1729 = vmatpush1.bf16.msra.mxu0 0
        %1730 = vmatprep.subr.bf16.mxu0 0
        %1731 = vmatpush1.bf16.msra.mxu0 0
        %1732 = vmatprep.subr.bf16.mxu0 0
        %1733 = vmatpush1.bf16.msra.mxu0 0
        %1734 = vmatprep.subr.bf16.mxu0 0
        %1735 = vmatpush1.bf16.msra.mxu0 0
        %1736 = vmatprep.subr.bf16.mxu0 0
        %1737 = vmatpush1.bf16.msra.mxu0 0
        %1738 = vmatprep.subr.bf16.mxu0 0
        %1739 = vmatpush1.bf16.msra.mxu0 0
        %1740 = vmatprep.subr.bf16.mxu0 0
        %1741 = vmatpush1.bf16.msra.mxu0 0
        %1742 = vmatprep.subr.bf16.mxu0 0
        %1743 = vmatpush1.bf16.msra.mxu0 0
        %1744 = vmatprep.subr.bf16.mxu0 0
        %1745 = vmatpush1.bf16.msra.mxu0 0
        %1746 = vmatprep.subr.bf16.mxu0 0
        %1747 = vmatpush1.bf16.msra.mxu0 0
        %1748 = vmatprep.mubr.bf16.mxu0 0
        %1749 = vmatmul.mubr.bf16.gmra.mrb[0].mxu0 %v1711
        %v1750 = vpop.f32.mrb[0].mxu0
        %v1751 = vadd.f32 0.0, %v1750
        %v1752 = vpop.f32.mrb[0].mxu0
        %v1753 = vpop.f32.mrb[0].mxu0
        %v1754 = vpop.f32.mrb[0].mxu0
        %1755 = vdwg.mxu0
        %v1756 = vadd.f32 %v1703, %v1751
        %v1757 = vld [vmem:[%s779] sm:$0x3]
        %v1759 = vunpack.c.l.b16 %v1655
        %v1760 = vpack.c.b16 %v1759, %v1706
        %v1762 = vshrl.u32 %v1760, 16
        %v1764 = vshll.u32 %v1760, 16
        %v1766 = vrot.slane %v1764, 1
        %v1767 = vor.u32 %v1762, %v1766
        %v1769 = vsel %vm355, %v1767, 0
        %v1772 = vsel %vm359, %v1757, 0
        %1774 = vmatprep.subr.bf16.mxu0 0
        %1775 = vmatpush1.bf16.msra.mxu0 %v1772
        %1776 = vmatprep.subr.bf16.mxu0 0
        %1777 = vmatpush1.bf16.msra.mxu0 0
        %1778 = vmatprep.subr.bf16.mxu0 0
        %1779 = vmatpush1.bf16.msra.mxu0 0
        %1780 = vmatprep.subr.bf16.mxu0 0
        %1781 = vmatpush1.bf16.msra.mxu0 0
        %1782 = vmatprep.subr.bf16.mxu0 0
        %1783 = vmatpush1.bf16.msra.mxu0 0
        %1784 = vmatprep.subr.bf16.mxu0 0
        %1785 = vmatpush1.bf16.msra.mxu0 0
        %1786 = vmatprep.subr.bf16.mxu0 0
        %1787 = vmatpush1.bf16.msra.mxu0 0
        %1788 = vmatprep.subr.bf16.mxu0 0
        %1789 = vmatpush1.bf16.msra.mxu0 0
        %1790 = vmatprep.subr.bf16.mxu0 0
        %1791 = vmatpush1.bf16.msra.mxu0 0
        %1792 = vmatprep.subr.bf16.mxu0 0
        %1793 = vmatpush1.bf16.msra.mxu0 0
        %1794 = vmatprep.subr.bf16.mxu0 0
        %1795 = vmatpush1.bf16.msra.mxu0 0
        %1796 = vmatprep.subr.bf16.mxu0 0
        %1797 = vmatpush1.bf16.msra.mxu0 0
        %1798 = vmatprep.subr.bf16.mxu0 0
        %1799 = vmatpush1.bf16.msra.mxu0 0
        %1800 = vmatprep.subr.bf16.mxu0 0
        %1801 = vmatpush1.bf16.msra.mxu0 0
        %1802 = vmatprep.subr.bf16.mxu0 0
        %1803 = vmatpush1.bf16.msra.mxu0 0
        %1804 = vmatprep.subr.bf16.mxu0 0
        %1805 = vmatpush1.bf16.msra.mxu0 0
        %1806 = vmatprep.mubr.bf16.mxu0 0
        %1807 = vmatmul.mubr.bf16.gmra.mrb[0].mxu0 %v1769
        %v1808 = vpop.f32.mrb[0].mxu0
        %v1809 = vadd.f32 0.0, %v1808
        %v1810 = vpop.f32.mrb[0].mxu0
        %v1811 = vpop.f32.mrb[0].mxu0
        %v1812 = vpop.f32.mrb[0].mxu0
        %1813 = vdwg.mxu0
        %v1814 = vadd.f32 %v1756, %v1809
        %v1815 = vadd.f32 %v1814, %v842
        %s1816 = scalar_lea.vmem %s300, 16 [#allocation2]
        %1817 = vst [vmem:[%s1816] sm:$0xff] %v1815
        %v1818 = vld [vmem:[%s1653] sm:$0xf]
        %v1819 = vld [vmem:[%s1653 + $0x4] sm:$0x1]
        %v1820 = vld [vmem:[%s338] sm:$0x3]
        %v1821 = vld [vmem:[%s348] sm:$0x3]
        %v1823 = vunpack.c.l.b16 %v1818
        %v1824 = vpack.c.b16 %v1823, %v1823
        %1825 = vrot.lane.b32.xlu0 %v1824, 124
        %v1826 = vpop.permute.xlu0 %1825
        %v1828 = vsel %vm355, %v1826, 0
        %v1831 = vsel %vm359, %v1821, 0
        %1833 = vmatprep.subr.bf16.mxu0 0
        %1834 = vmatpush1.bf16.msra.mxu0 %v1831
        %1835 = vmatprep.subr.bf16.mxu0 0
        %1836 = vmatpush1.bf16.msra.mxu0 0
        %1837 = vmatprep.subr.bf16.mxu0 0
        %1838 = vmatpush1.bf16.msra.mxu0 0
        %1839 = vmatprep.subr.bf16.mxu0 0
        %1840 = vmatpush1.bf16.msra.mxu0 0
        %1841 = vmatprep.subr.bf16.mxu0 0
        %1842 = vmatpush1.bf16.msra.mxu0 0
        %1843 = vmatprep.subr.bf16.mxu0 0
        %1844 = vmatpush1.bf16.msra.mxu0 0
        %1845 = vmatprep.subr.bf16.mxu0 0
        %1846 = vmatpush1.bf16.msra.mxu0 0
        %1847 = vmatprep.subr.bf16.mxu0 0
        %1848 = vmatpush1.bf16.msra.mxu0 0
        %1849 = vmatprep.subr.bf16.mxu0 0
        %1850 = vmatpush1.bf16.msra.mxu0 0
        %1851 = vmatprep.subr.bf16.mxu0 0
        %1852 = vmatpush1.bf16.msra.mxu0 0
        %1853 = vmatprep.subr.bf16.mxu0 0
        %1854 = vmatpush1.bf16.msra.mxu0 0
        %1855 = vmatprep.subr.bf16.mxu0 0
        %1856 = vmatpush1.bf16.msra.mxu0 0
        %1857 = vmatprep.subr.bf16.mxu0 0
        %1858 = vmatpush1.bf16.msra.mxu0 0
        %1859 = vmatprep.subr.bf16.mxu0 0
        %1860 = vmatpush1.bf16.msra.mxu0 0
        %1861 = vmatprep.subr.bf16.mxu0 0
        %1862 = vmatpush1.bf16.msra.mxu0 0
        %1863 = vmatprep.subr.bf16.mxu0 0
        %1864 = vmatpush1.bf16.msra.mxu0 0
        %1865 = vmatprep.mubr.bf16.mxu0 0
        %1866 = vmatmul.mubr.bf16.gmra.mrb[0].mxu0 %v1828
        %v1867 = vpop.f32.mrb[0].mxu0
        %v1868 = vadd.f32 0.0, %v1867
        %v1869 = vpop.f32.mrb[0].mxu0
        %v1870 = vpop.f32.mrb[0].mxu0
        %v1871 = vpop.f32.mrb[0].mxu0
        %1872 = vdwg.mxu0
        %v1874 = vsel %vm355, %v1818, 0
        %v1877 = vsel %vm359, %v1820, 0
        %1879 = vmatprep.subr.bf16.mxu0 0
        %1880 = vmatpush1.bf16.msra.mxu0 %v1877
        %1881 = vmatprep.subr.bf16.mxu0 0
        %1882 = vmatpush1.bf16.msra.mxu0 0
        %1883 = vmatprep.subr.bf16.mxu0 0
        %1884 = vmatpush1.bf16.msra.mxu0 0
        %1885 = vmatprep.subr.bf16.mxu0 0
        %1886 = vmatpush1.bf16.msra.mxu0 0
        %1887 = vmatprep.subr.bf16.mxu0 0
        %1888 = vmatpush1.bf16.msra.mxu0 0
        %1889 = vmatprep.subr.bf16.mxu0 0
        %1890 = vmatpush1.bf16.msra.mxu0 0
        %1891 = vmatprep.subr.bf16.mxu0 0
        %1892 = vmatpush1.bf16.msra.mxu0 0
        %1893 = vmatprep.subr.bf16.mxu0 0
        %1894 = vmatpush1.bf16.msra.mxu0 0
        %1895 = vmatprep.subr.bf16.mxu0 0
        %1896 = vmatpush1.bf16.msra.mxu0 0
        %1897 = vmatprep.subr.bf16.mxu0 0
        %1898 = vmatpush1.bf16.msra.mxu0 0
        %1899 = vmatprep.subr.bf16.mxu0 0
        %1900 = vmatpush1.bf16.msra.mxu0 0
        %1901 = vmatprep.subr.bf16.mxu0 0
        %1902 = vmatpush1.bf16.msra.mxu0 0
        %1903 = vmatprep.subr.bf16.mxu0 0
        %1904 = vmatpush1.bf16.msra.mxu0 0
        %1905 = vmatprep.subr.bf16.mxu0 0
        %1906 = vmatpush1.bf16.msra.mxu0 0
        %1907 = vmatprep.subr.bf16.mxu0 0
        %1908 = vmatpush1.bf16.msra.mxu0 0
        %1909 = vmatprep.subr.bf16.mxu0 0
        %1910 = vmatpush1.bf16.msra.mxu0 0
        %1911 = vmatprep.mubr.bf16.mxu0 0
        %1912 = vmatmul.mubr.bf16.gmra.mrb[0].mxu0 %v1874
        %v1913 = vpop.f32.mrb[0].mxu0
        %v1914 = vadd.f32 %v1868, %v1913
        %v1915 = vpop.f32.mrb[0].mxu0
        %v1916 = vpop.f32.mrb[0].mxu0
        %v1917 = vpop.f32.mrb[0].mxu0
        %1918 = vdwg.mxu0
        %v1919 = vld [vmem:[%s449] sm:$0x3]
        %v1921 = vunpack.c.l.b16 %v1819
        %v1922 = vpack.c.b16 %v1921, %v1823
        %v1924 = vshrl.u32 %v1922, 16
        %v1926 = vshll.u32 %v1922, 16
        %v1928 = vrot.slane %v1926, 1
        %v1929 = vor.u32 %v1924, %v1928
        %v1931 = vsel %vm355, %v1929, 0
        %v1934 = vsel %vm359, %v1919, 0
        %1936 = vmatprep.subr.bf16.mxu0 0
        %1937 = vmatpush1.bf16.msra.mxu0 %v1934
        %1938 = vmatprep.subr.bf16.mxu0 0
        %1939 = vmatpush1.bf16.msra.mxu0 0
        %1940 = vmatprep.subr.bf16.mxu0 0
        %1941 = vmatpush1.bf16.msra.mxu0 0
        %1942 = vmatprep.subr.bf16.mxu0 0
        %1943 = vmatpush1.bf16.msra.mxu0 0
        %1944 = vmatprep.subr.bf16.mxu0 0
        %1945 = vmatpush1.bf16.msra.mxu0 0
        %1946 = vmatprep.subr.bf16.mxu0 0
        %1947 = vmatpush1.bf16.msra.mxu0 0
        %1948 = vmatprep.subr.bf16.mxu0 0
        %1949 = vmatpush1.bf16.msra.mxu0 0
        %1950 = vmatprep.subr.bf16.mxu0 0
        %1951 = vmatpush1.bf16.msra.mxu0 0
        %1952 = vmatprep.subr.bf16.mxu0 0
        %1953 = vmatpush1.bf16.msra.mxu0 0
        %1954 = vmatprep.subr.bf16.mxu0 0
        %1955 = vmatpush1.bf16.msra.mxu0 0
        %1956 = vmatprep.subr.bf16.mxu0 0
        %1957 = vmatpush1.bf16.msra.mxu0 0
        %1958 = vmatprep.subr.bf16.mxu0 0
        %1959 = vmatpush1.bf16.msra.mxu0 0
        %1960 = vmatprep.subr.bf16.mxu0 0
        %1961 = vmatpush1.bf16.msra.mxu0 0
        %1962 = vmatprep.subr.bf16.mxu0 0
        %1963 = vmatpush1.bf16.msra.mxu0 0
        %1964 = vmatprep.subr.bf16.mxu0 0
        %1965 = vmatpush1.bf16.msra.mxu0 0
        %1966 = vmatprep.subr.bf16.mxu0 0
        %1967 = vmatpush1.bf16.msra.mxu0 0
        %1968 = vmatprep.mubr.bf16.mxu0 0
        %1969 = vmatmul.mubr.bf16.gmra.mrb[0].mxu0 %v1931
        %v1970 = vpop.f32.mrb[0].mxu0
        %v1971 = vadd.f32 0.0, %v1970
        %v1972 = vpop.f32.mrb[0].mxu0
        %v1973 = vpop.f32.mrb[0].mxu0
        %v1974 = vpop.f32.mrb[0].mxu0
        %1975 = vdwg.mxu0
        %v1976 = vadd.f32 %v1914, %v1971
        %s1977 = scalar_lea.vmem %s315, 56
        %v1978 = vld [vmem:[%s1977] sm:$0xf]
        %v1979 = vld [vmem:[%s1977 + $0x4] sm:$0x1]
        %v1980 = vld [vmem:[%s511] sm:$0x3]
        %v1982 = vsel %vm355, %v1978, 0
        %v1985 = vsel %vm359, %v1980, 0
        %1987 = vmatprep.subr.bf16.mxu0 0
        %1988 = vmatpush1.bf16.msra.mxu0 %v1985
        %1989 = vmatprep.subr.bf16.mxu0 0
        %1990 = vmatpush1.bf16.msra.mxu0 0
        %1991 = vmatprep.subr.bf16.mxu0 0
        %1992 = vmatpush1.bf16.msra.mxu0 0
        %1993 = vmatprep.subr.bf16.mxu0 0
        %1994 = vmatpush1.bf16.msra.mxu0 0
        %1995 = vmatprep.subr.bf16.mxu0 0
        %1996 = vmatpush1.bf16.msra.mxu0 0
        %1997 = vmatprep.subr.bf16.mxu0 0
        %1998 = vmatpush1.bf16.msra.mxu0 0
        %1999 = vmatprep.subr.bf16.mxu0 0
        %2000 = vmatpush1.bf16.msra.mxu0 0
        %2001 = vmatprep.subr.bf16.mxu0 0
        %2002 = vmatpush1.bf16.msra.mxu0 0
        %2003 = vmatprep.subr.bf16.mxu0 0
        %2004 = vmatpush1.bf16.msra.mxu0 0
        %2005 = vmatprep.subr.bf16.mxu0 0
        %2006 = vmatpush1.bf16.msra.mxu0 0
        %2007 = vmatprep.subr.bf16.mxu0 0
        %2008 = vmatpush1.bf16.msra.mxu0 0
        %2009 = vmatprep.subr.bf16.mxu0 0
        %2010 = vmatpush1.bf16.msra.mxu0 0
        %2011 = vmatprep.subr.bf16.mxu0 0
        %2012 = vmatpush1.bf16.msra.mxu0 0
        %2013 = vmatprep.subr.bf16.mxu0 0
        %2014 = vmatpush1.bf16.msra.mxu0 0
        %2015 = vmatprep.subr.bf16.mxu0 0
        %2016 = vmatpush1.bf16.msra.mxu0 0
        %2017 = vmatprep.subr.bf16.mxu0 0
        %2018 = vmatpush1.bf16.msra.mxu0 0
        %2019 = vmatprep.mubr.bf16.mxu0 0
        %2020 = vmatmul.mubr.bf16.gmra.mrb[0].mxu0 %v1982
        %v2021 = vpop.f32.mrb[0].mxu0
        %v2022 = vadd.f32 0.0, %v2021
        %v2023 = vpop.f32.mrb[0].mxu0
        %v2024 = vpop.f32.mrb[0].mxu0
        %v2025 = vpop.f32.mrb[0].mxu0
        %2026 = vdwg.mxu0
        %v2027 = vadd.f32 %v1976, %v2022
        %v2028 = vld [vmem:[%s560] sm:$0x3]
        %v2030 = vunpack.c.l.b16 %v1978
        %v2031 = vpack.c.b16 %v2030, %v2030
        %2032 = vrot.lane.b32.xlu0 %v2031, 124
        %v2033 = vpop.permute.xlu0 %2032
        %v2035 = vsel %vm355, %v2033, 0
        %v2038 = vsel %vm359, %v2028, 0
        %2040 = vmatprep.subr.bf16.mxu0 0
        %2041 = vmatpush1.bf16.msra.mxu0 %v2038
        %2042 = vmatprep.subr.bf16.mxu0 0
        %2043 = vmatpush1.bf16.msra.mxu0 0
        %2044 = vmatprep.subr.bf16.mxu0 0
        %2045 = vmatpush1.bf16.msra.mxu0 0
        %2046 = vmatprep.subr.bf16.mxu0 0
        %2047 = vmatpush1.bf16.msra.mxu0 0
        %2048 = vmatprep.subr.bf16.mxu0 0
        %2049 = vmatpush1.bf16.msra.mxu0 0
        %2050 = vmatprep.subr.bf16.mxu0 0
        %2051 = vmatpush1.bf16.msra.mxu0 0
        %2052 = vmatprep.subr.bf16.mxu0 0
        %2053 = vmatpush1.bf16.msra.mxu0 0
        %2054 = vmatprep.subr.bf16.mxu0 0
        %2055 = vmatpush1.bf16.msra.mxu0 0
        %2056 = vmatprep.subr.bf16.mxu0 0
        %2057 = vmatpush1.bf16.msra.mxu0 0
        %2058 = vmatprep.subr.bf16.mxu0 0
        %2059 = vmatpush1.bf16.msra.mxu0 0
        %2060 = vmatprep.subr.bf16.mxu0 0
        %2061 = vmatpush1.bf16.msra.mxu0 0
        %2062 = vmatprep.subr.bf16.mxu0 0
        %2063 = vmatpush1.bf16.msra.mxu0 0
        %2064 = vmatprep.subr.bf16.mxu0 0
        %2065 = vmatpush1.bf16.msra.mxu0 0
        %2066 = vmatprep.subr.bf16.mxu0 0
        %2067 = vmatpush1.bf16.msra.mxu0 0
        %2068 = vmatprep.subr.bf16.mxu0 0
        %2069 = vmatpush1.bf16.msra.mxu0 0
        %2070 = vmatprep.subr.bf16.mxu0 0
        %2071 = vmatpush1.bf16.msra.mxu0 0
        %2072 = vmatprep.mubr.bf16.mxu0 0
        %2073 = vmatmul.mubr.bf16.gmra.mrb[0].mxu0 %v2035
        %v2074 = vpop.f32.mrb[0].mxu0
        %v2075 = vadd.f32 0.0, %v2074
        %v2076 = vpop.f32.mrb[0].mxu0
        %v2077 = vpop.f32.mrb[0].mxu0
        %v2078 = vpop.f32.mrb[0].mxu0
        %2079 = vdwg.mxu0
        %v2080 = vadd.f32 %v2027, %v2075
        %v2081 = vld [vmem:[%s614] sm:$0x3]
        %v2083 = vunpack.c.l.b16 %v1979
        %v2084 = vpack.c.b16 %v2083, %v2030
        %v2086 = vshrl.u32 %v2084, 16
        %v2088 = vshll.u32 %v2084, 16
        %v2090 = vrot.slane %v2088, 1
        %v2091 = vor.u32 %v2086, %v2090
        %v2093 = vsel %vm355, %v2091, 0
        %v2096 = vsel %vm359, %v2081, 0
        %2098 = vmatprep.subr.bf16.mxu0 0
        %2099 = vmatpush1.bf16.msra.mxu0 %v2096
        %2100 = vmatprep.subr.bf16.mxu0 0
        %2101 = vmatpush1.bf16.msra.mxu0 0
        %2102 = vmatprep.subr.bf16.mxu0 0
        %2103 = vmatpush1.bf16.msra.mxu0 0
        %2104 = vmatprep.subr.bf16.mxu0 0
        %2105 = vmatpush1.bf16.msra.mxu0 0
        %2106 = vmatprep.subr.bf16.mxu0 0
        %2107 = vmatpush1.bf16.msra.mxu0 0
        %2108 = vmatprep.subr.bf16.mxu0 0
        %2109 = vmatpush1.bf16.msra.mxu0 0
        %2110 = vmatprep.subr.bf16.mxu0 0
        %2111 = vmatpush1.bf16.msra.mxu0 0
        %2112 = vmatprep.subr.bf16.mxu0 0
        %2113 = vmatpush1.bf16.msra.mxu0 0
        %2114 = vmatprep.subr.bf16.mxu0 0
        %2115 = vmatpush1.bf16.msra.mxu0 0
        %2116 = vmatprep.subr.bf16.mxu0 0
        %2117 = vmatpush1.bf16.msra.mxu0 0
        %2118 = vmatprep.subr.bf16.mxu0 0
        %2119 = vmatpush1.bf16.msra.mxu0 0
        %2120 = vmatprep.subr.bf16.mxu0 0
        %2121 = vmatpush1.bf16.msra.mxu0 0
        %2122 = vmatprep.subr.bf16.mxu0 0
        %2123 = vmatpush1.bf16.msra.mxu0 0
        %2124 = vmatprep.subr.bf16.mxu0 0
        %2125 = vmatpush1.bf16.msra.mxu0 0
        %2126 = vmatprep.subr.bf16.mxu0 0
        %2127 = vmatpush1.bf16.msra.mxu0 0
        %2128 = vmatprep.subr.bf16.mxu0 0
        %2129 = vmatpush1.bf16.msra.mxu0 0
        %2130 = vmatprep.mubr.bf16.mxu0 0
        %2131 = vmatmul.mubr.bf16.gmra.mrb[0].mxu0 %v2093
        %v2132 = vpop.f32.mrb[0].mxu0
        %v2133 = vadd.f32 0.0, %v2132
        %v2134 = vpop.f32.mrb[0].mxu0
        %v2135 = vpop.f32.mrb[0].mxu0
        %v2136 = vpop.f32.mrb[0].mxu0
        %2137 = vdwg.mxu0
        %v2138 = vadd.f32 %v2080, %v2133
        %s2139 = scalar_lea.vmem %s315, 64
        %v2140 = vld [vmem:[%s2139] sm:$0xf]
        %v2141 = vld [vmem:[%s2139 + $0x4] sm:$0x1]
        %v2142 = vld [vmem:[%s676] sm:$0x3]
        %v2144 = vsel %vm355, %v2140, 0
        %v2147 = vsel %vm359, %v2142, 0
        %2149 = vmatprep.subr.bf16.mxu0 0
        %2150 = vmatpush1.bf16.msra.mxu0 %v2147
        %2151 = vmatprep.subr.bf16.mxu0 0
        %2152 = vmatpush1.bf16.msra.mxu0 0
        %2153 = vmatprep.subr.bf16.mxu0 0
        %2154 = vmatpush1.bf16.msra.mxu0 0
        %2155 = vmatprep.subr.bf16.mxu0 0
        %2156 = vmatpush1.bf16.msra.mxu0 0
        %2157 = vmatprep.subr.bf16.mxu0 0
        %2158 = vmatpush1.bf16.msra.mxu0 0
        %2159 = vmatprep.subr.bf16.mxu0 0
        %2160 = vmatpush1.bf16.msra.mxu0 0
        %2161 = vmatprep.subr.bf16.mxu0 0
        %2162 = vmatpush1.bf16.msra.mxu0 0
        %2163 = vmatprep.subr.bf16.mxu0 0
        %2164 = vmatpush1.bf16.msra.mxu0 0
        %2165 = vmatprep.subr.bf16.mxu0 0
        %2166 = vmatpush1.bf16.msra.mxu0 0
        %2167 = vmatprep.subr.bf16.mxu0 0
        %2168 = vmatpush1.bf16.msra.mxu0 0
        %2169 = vmatprep.subr.bf16.mxu0 0
        %2170 = vmatpush1.bf16.msra.mxu0 0
        %2171 = vmatprep.subr.bf16.mxu0 0
        %2172 = vmatpush1.bf16.msra.mxu0 0
        %2173 = vmatprep.subr.bf16.mxu0 0
        %2174 = vmatpush1.bf16.msra.mxu0 0
        %2175 = vmatprep.subr.bf16.mxu0 0
        %2176 = vmatpush1.bf16.msra.mxu0 0
        %2177 = vmatprep.subr.bf16.mxu0 0
        %2178 = vmatpush1.bf16.msra.mxu0 0
        %2179 = vmatprep.subr.bf16.mxu0 0
        %2180 = vmatpush1.bf16.msra.mxu0 0
        %2181 = vmatprep.mubr.bf16.mxu0 0
        %2182 = vmatmul.mubr.bf16.gmra.mrb[0].mxu0 %v2144
        %v2183 = vpop.f32.mrb[0].mxu0
        %v2184 = vadd.f32 0.0, %v2183
        %v2185 = vpop.f32.mrb[0].mxu0
        %v2186 = vpop.f32.mrb[0].mxu0
        %v2187 = vpop.f32.mrb[0].mxu0
        %2188 = vdwg.mxu0
        %v2189 = vadd.f32 %v2138, %v2184
        %v2190 = vld [vmem:[%s725] sm:$0x3]
        %v2192 = vunpack.c.l.b16 %v2140
        %v2193 = vpack.c.b16 %v2192, %v2192
        %2194 = vrot.lane.b32.xlu0 %v2193, 124
        %v2195 = vpop.permute.xlu0 %2194
        %v2197 = vsel %vm355, %v2195, 0
        %v2200 = vsel %vm359, %v2190, 0
        %2202 = vmatprep.subr.bf16.mxu0 0
        %2203 = vmatpush1.bf16.msra.mxu0 %v2200
        %2204 = vmatprep.subr.bf16.mxu0 0
        %2205 = vmatpush1.bf16.msra.mxu0 0
        %2206 = vmatprep.subr.bf16.mxu0 0
        %2207 = vmatpush1.bf16.msra.mxu0 0
        %2208 = vmatprep.subr.bf16.mxu0 0
        %2209 = vmatpush1.bf16.msra.mxu0 0
        %2210 = vmatprep.subr.bf16.mxu0 0
        %2211 = vmatpush1.bf16.msra.mxu0 0
        %2212 = vmatprep.subr.bf16.mxu0 0
        %2213 = vmatpush1.bf16.msra.mxu0 0
        %2214 = vmatprep.subr.bf16.mxu0 0
        %2215 = vmatpush1.bf16.msra.mxu0 0
        %2216 = vmatprep.subr.bf16.mxu0 0
        %2217 = vmatpush1.bf16.msra.mxu0 0
        %2218 = vmatprep.subr.bf16.mxu0 0
        %2219 = vmatpush1.bf16.msra.mxu0 0
        %2220 = vmatprep.subr.bf16.mxu0 0
        %2221 = vmatpush1.bf16.msra.mxu0 0
        %2222 = vmatprep.subr.bf16.mxu0 0
        %2223 = vmatpush1.bf16.msra.mxu0 0
        %2224 = vmatprep.subr.bf16.mxu0 0
        %2225 = vmatpush1.bf16.msra.mxu0 0
        %2226 = vmatprep.subr.bf16.mxu0 0
        %2227 = vmatpush1.bf16.msra.mxu0 0
        %2228 = vmatprep.subr.bf16.mxu0 0
        %2229 = vmatpush1.bf16.msra.mxu0 0
        %2230 = vmatprep.subr.bf16.mxu0 0
        %2231 = vmatpush1.bf16.msra.mxu0 0
        %2232 = vmatprep.subr.bf16.mxu0 0
        %2233 = vmatpush1.bf16.msra.mxu0 0
        %2234 = vmatprep.mubr.bf16.mxu0 0
        %2235 = vmatmul.mubr.bf16.gmra.mrb[0].mxu0 %v2197
        %v2236 = vpop.f32.mrb[0].mxu0
        %v2237 = vadd.f32 0.0, %v2236
        %v2238 = vpop.f32.mrb[0].mxu0
        %v2239 = vpop.f32.mrb[0].mxu0
        %v2240 = vpop.f32.mrb[0].mxu0
        %2241 = vdwg.mxu0
        %v2242 = vadd.f32 %v2189, %v2237
        %v2243 = vld [vmem:[%s779] sm:$0x3]
        %v2245 = vunpack.c.l.b16 %v2141
        %v2246 = vpack.c.b16 %v2245, %v2192
        %v2248 = vshrl.u32 %v2246, 16
        %v2250 = vshll.u32 %v2246, 16
        %v2252 = vrot.slane %v2250, 1
        %v2253 = vor.u32 %v2248, %v2252
        %v2255 = vsel %vm355, %v2253, 0
        %v2258 = vsel %vm359, %v2243, 0
        %2260 = vmatprep.subr.bf16.mxu0 0
        %2261 = vmatpush1.bf16.msra.mxu0 %v2258
        %2262 = vmatprep.subr.bf16.mxu0 0
        %2263 = vmatpush1.bf16.msra.mxu0 0
        %2264 = vmatprep.subr.bf16.mxu0 0
        %2265 = vmatpush1.bf16.msra.mxu0 0
        %2266 = vmatprep.subr.bf16.mxu0 0
        %2267 = vmatpush1.bf16.msra.mxu0 0
        %2268 = vmatprep.subr.bf16.mxu0 0
        %2269 = vmatpush1.bf16.msra.mxu0 0
        %2270 = vmatprep.subr.bf16.mxu0 0
        %2271 = vmatpush1.bf16.msra.mxu0 0
        %2272 = vmatprep.subr.bf16.mxu0 0
        %2273 = vmatpush1.bf16.msra.mxu0 0
        %2274 = vmatprep.subr.bf16.mxu0 0
        %2275 = vmatpush1.bf16.msra.mxu0 0
        %2276 = vmatprep.subr.bf16.mxu0 0
        %2277 = vmatpush1.bf16.msra.mxu0 0
        %2278 = vmatprep.subr.bf16.mxu0 0
        %2279 = vmatpush1.bf16.msra.mxu0 0
        %2280 = vmatprep.subr.bf16.mxu0 0
        %2281 = vmatpush1.bf16.msra.mxu0 0
        %2282 = vmatprep.subr.bf16.mxu0 0
        %2283 = vmatpush1.bf16.msra.mxu0 0
        %2284 = vmatprep.subr.bf16.mxu0 0
        %2285 = vmatpush1.bf16.msra.mxu0 0
        %2286 = vmatprep.subr.bf16.mxu0 0
        %2287 = vmatpush1.bf16.msra.mxu0 0
        %2288 = vmatprep.subr.bf16.mxu0 0
        %2289 = vmatpush1.bf16.msra.mxu0 0
        %2290 = vmatprep.subr.bf16.mxu0 0
        %2291 = vmatpush1.bf16.msra.mxu0 0
        %2292 = vmatprep.mubr.bf16.mxu0 0
        %2293 = vmatmul.mubr.bf16.gmra.mrb[0].mxu0 %v2255
        %v2294 = vpop.f32.mrb[0].mxu0
        %v2295 = vadd.f32 0.0, %v2294
        %v2296 = vpop.f32.mrb[0].mxu0
        %v2297 = vpop.f32.mrb[0].mxu0
        %v2298 = vpop.f32.mrb[0].mxu0
        %2299 = vdwg.mxu0
        %v2300 = vadd.f32 %v2242, %v2295
        %v2301 = vadd.f32 %v2300, %v842
        %s2302 = scalar_lea.vmem %s300, 24 [#allocation2]
        %2303 = vst [vmem:[%s2302] sm:$0xff] %v2301
        %v2304 = vld [vmem:[%s2139] sm:$0xf]
        %v2305 = vld [vmem:[%s2139 + $0x4] sm:$0x1]
        %v2306 = vld [vmem:[%s338] sm:$0x3]
        %v2307 = vld [vmem:[%s348] sm:$0x3]
        %v2309 = vunpack.c.l.b16 %v2304
        %v2310 = vpack.c.b16 %v2309, %v2309
        %2311 = vrot.lane.b32.xlu0 %v2310, 124
        %v2312 = vpop.permute.xlu0 %2311
        %v2314 = vsel %vm355, %v2312, 0
        %v2317 = vsel %vm359, %v2307, 0
        %2319 = vmatprep.subr.bf16.mxu0 0
        %2320 = vmatpush1.bf16.msra.mxu0 %v2317
        %2321 = vmatprep.subr.bf16.mxu0 0
        %2322 = vmatpush1.bf16.msra.mxu0 0
        %2323 = vmatprep.subr.bf16.mxu0 0
        %2324 = vmatpush1.bf16.msra.mxu0 0
        %2325 = vmatprep.subr.bf16.mxu0 0
        %2326 = vmatpush1.bf16.msra.mxu0 0
        %2327 = vmatprep.subr.bf16.mxu0 0
        %2328 = vmatpush1.bf16.msra.mxu0 0
        %2329 = vmatprep.subr.bf16.mxu0 0
        %2330 = vmatpush1.bf16.msra.mxu0 0
        %2331 = vmatprep.subr.bf16.mxu0 0
        %2332 = vmatpush1.bf16.msra.mxu0 0
        %2333 = vmatprep.subr.bf16.mxu0 0
        %2334 = vmatpush1.bf16.msra.mxu0 0
        %2335 = vmatprep.subr.bf16.mxu0 0
        %2336 = vmatpush1.bf16.msra.mxu0 0
        %2337 = vmatprep.subr.bf16.mxu0 0
        %2338 = vmatpush1.bf16.msra.mxu0 0
        %2339 = vmatprep.subr.bf16.mxu0 0
        %2340 = vmatpush1.bf16.msra.mxu0 0
        %2341 = vmatprep.subr.bf16.mxu0 0
        %2342 = vmatpush1.bf16.msra.mxu0 0
        %2343 = vmatprep.subr.bf16.mxu0 0
        %2344 = vmatpush1.bf16.msra.mxu0 0
        %2345 = vmatprep.subr.bf16.mxu0 0
        %2346 = vmatpush1.bf16.msra.mxu0 0
        %2347 = vmatprep.subr.bf16.mxu0 0
        %2348 = vmatpush1.bf16.msra.mxu0 0
        %2349 = vmatprep.subr.bf16.mxu0 0
        %2350 = vmatpush1.bf16.msra.mxu0 0
        %2351 = vmatprep.mubr.bf16.mxu0 0
        %2352 = vmatmul.mubr.bf16.gmra.mrb[0].mxu0 %v2314
        %v2353 = vpop.f32.mrb[0].mxu0
        %v2354 = vadd.f32 0.0, %v2353
        %v2355 = vpop.f32.mrb[0].mxu0
        %v2356 = vpop.f32.mrb[0].mxu0
        %v2357 = vpop.f32.mrb[0].mxu0
        %2358 = vdwg.mxu0
        %v2360 = vsel %vm355, %v2304, 0
        %v2363 = vsel %vm359, %v2306, 0
        %2365 = vmatprep.subr.bf16.mxu0 0
        %2366 = vmatpush1.bf16.msra.mxu0 %v2363
        %2367 = vmatprep.subr.bf16.mxu0 0
        %2368 = vmatpush1.bf16.msra.mxu0 0
        %2369 = vmatprep.subr.bf16.mxu0 0
        %2370 = vmatpush1.bf16.msra.mxu0 0
        %2371 = vmatprep.subr.bf16.mxu0 0
        %2372 = vmatpush1.bf16.msra.mxu0 0
        %2373 = vmatprep.subr.bf16.mxu0 0
        %2374 = vmatpush1.bf16.msra.mxu0 0
        %2375 = vmatprep.subr.bf16.mxu0 0
        %2376 = vmatpush1.bf16.msra.mxu0 0
        %2377 = vmatprep.subr.bf16.mxu0 0
        %2378 = vmatpush1.bf16.msra.mxu0 0
        %2379 = vmatprep.subr.bf16.mxu0 0
        %2380 = vmatpush1.bf16.msra.mxu0 0
        %2381 = vmatprep.subr.bf16.mxu0 0
        %2382 = vmatpush1.bf16.msra.mxu0 0
        %2383 = vmatprep.subr.bf16.mxu0 0
        %2384 = vmatpush1.bf16.msra.mxu0 0
        %2385 = vmatprep.subr.bf16.mxu0 0
        %2386 = vmatpush1.bf16.msra.mxu0 0
        %2387 = vmatprep.subr.bf16.mxu0 0
        %2388 = vmatpush1.bf16.msra.mxu0 0
        %2389 = vmatprep.subr.bf16.mxu0 0
        %2390 = vmatpush1.bf16.msra.mxu0 0
        %2391 = vmatprep.subr.bf16.mxu0 0
        %2392 = vmatpush1.bf16.msra.mxu0 0
        %2393 = vmatprep.subr.bf16.mxu0 0
        %2394 = vmatpush1.bf16.msra.mxu0 0
        %2395 = vmatprep.subr.bf16.mxu0 0
        %2396 = vmatpush1.bf16.msra.mxu0 0
        %2397 = vmatprep.mubr.bf16.mxu0 0
        %2398 = vmatmul.mubr.bf16.gmra.mrb[0].mxu0 %v2360
        %v2399 = vpop.f32.mrb[0].mxu0
        %v2400 = vadd.f32 %v2354, %v2399
        %v2401 = vpop.f32.mrb[0].mxu0
        %v2402 = vpop.f32.mrb[0].mxu0
        %v2403 = vpop.f32.mrb[0].mxu0
        %2404 = vdwg.mxu0
        %v2405 = vld [vmem:[%s449] sm:$0x3]
        %v2407 = vunpack.c.l.b16 %v2305
        %v2408 = vpack.c.b16 %v2407, %v2309
        %v2410 = vshrl.u32 %v2408, 16
        %v2412 = vshll.u32 %v2408, 16
        %v2414 = vrot.slane %v2412, 1
        %v2415 = vor.u32 %v2410, %v2414
        %v2417 = vsel %vm355, %v2415, 0
        %v2420 = vsel %vm359, %v2405, 0
        %2422 = vmatprep.subr.bf16.mxu0 0
        %2423 = vmatpush1.bf16.msra.mxu0 %v2420
        %2424 = vmatprep.subr.bf16.mxu0 0
        %2425 = vmatpush1.bf16.msra.mxu0 0
        %2426 = vmatprep.subr.bf16.mxu0 0
        %2427 = vmatpush1.bf16.msra.mxu0 0
        %2428 = vmatprep.subr.bf16.mxu0 0
        %2429 = vmatpush1.bf16.msra.mxu0 0
        %2430 = vmatprep.subr.bf16.mxu0 0
        %2431 = vmatpush1.bf16.msra.mxu0 0
        %2432 = vmatprep.subr.bf16.mxu0 0
        %2433 = vmatpush1.bf16.msra.mxu0 0
        %2434 = vmatprep.subr.bf16.mxu0 0
        %2435 = vmatpush1.bf16.msra.mxu0 0
        %2436 = vmatprep.subr.bf16.mxu0 0
        %2437 = vmatpush1.bf16.msra.mxu0 0
        %2438 = vmatprep.subr.bf16.mxu0 0
        %2439 = vmatpush1.bf16.msra.mxu0 0
        %2440 = vmatprep.subr.bf16.mxu0 0
        %2441 = vmatpush1.bf16.msra.mxu0 0
        %2442 = vmatprep.subr.bf16.mxu0 0
        %2443 = vmatpush1.bf16.msra.mxu0 0
        %2444 = vmatprep.subr.bf16.mxu0 0
        %2445 = vmatpush1.bf16.msra.mxu0 0
        %2446 = vmatprep.subr.bf16.mxu0 0
        %2447 = vmatpush1.bf16.msra.mxu0 0
        %2448 = vmatprep.subr.bf16.mxu0 0
        %2449 = vmatpush1.bf16.msra.mxu0 0
        %2450 = vmatprep.subr.bf16.mxu0 0
        %2451 = vmatpush1.bf16.msra.mxu0 0
        %2452 = vmatprep.subr.bf16.mxu0 0
        %2453 = vmatpush1.bf16.msra.mxu0 0
        %2454 = vmatprep.mubr.bf16.mxu0 0
        %2455 = vmatmul.mubr.bf16.gmra.mrb[0].mxu0 %v2417
        %v2456 = vpop.f32.mrb[0].mxu0
        %v2457 = vadd.f32 0.0, %v2456
        %v2458 = vpop.f32.mrb[0].mxu0
        %v2459 = vpop.f32.mrb[0].mxu0
        %v2460 = vpop.f32.mrb[0].mxu0
        %2461 = vdwg.mxu0
        %v2462 = vadd.f32 %v2400, %v2457
        %s2463 = scalar_lea.vmem %s315, 72
        %v2464 = vld [vmem:[%s2463] sm:$0xf]
        %v2465 = vld [vmem:[%s2463 + $0x4] sm:$0x1]
        %v2466 = vld [vmem:[%s511] sm:$0x3]
        %v2468 = vsel %vm355, %v2464, 0
        %v2471 = vsel %vm359, %v2466, 0
        %2473 = vmatprep.subr.bf16.mxu0 0
        %2474 = vmatpush1.bf16.msra.mxu0 %v2471
        %2475 = vmatprep.subr.bf16.mxu0 0
        %2476 = vmatpush1.bf16.msra.mxu0 0
        %2477 = vmatprep.subr.bf16.mxu0 0
        %2478 = vmatpush1.bf16.msra.mxu0 0
        %2479 = vmatprep.subr.bf16.mxu0 0
        %2480 = vmatpush1.bf16.msra.mxu0 0
        %2481 = vmatprep.subr.bf16.mxu0 0
        %2482 = vmatpush1.bf16.msra.mxu0 0
        %2483 = vmatprep.subr.bf16.mxu0 0
        %2484 = vmatpush1.bf16.msra.mxu0 0
        %2485 = vmatprep.subr.bf16.mxu0 0
        %2486 = vmatpush1.bf16.msra.mxu0 0
        %2487 = vmatprep.subr.bf16.mxu0 0
        %2488 = vmatpush1.bf16.msra.mxu0 0
        %2489 = vmatprep.subr.bf16.mxu0 0
        %2490 = vmatpush1.bf16.msra.mxu0 0
        %2491 = vmatprep.subr.bf16.mxu0 0
        %2492 = vmatpush1.bf16.msra.mxu0 0
        %2493 = vmatprep.subr.bf16.mxu0 0
        %2494 = vmatpush1.bf16.msra.mxu0 0
        %2495 = vmatprep.subr.bf16.mxu0 0
        %2496 = vmatpush1.bf16.msra.mxu0 0
        %2497 = vmatprep.subr.bf16.mxu0 0
        %2498 = vmatpush1.bf16.msra.mxu0 0
        %2499 = vmatprep.subr.bf16.mxu0 0
        %2500 = vmatpush1.bf16.msra.mxu0 0
        %2501 = vmatprep.subr.bf16.mxu0 0
        %2502 = vmatpush1.bf16.msra.mxu0 0
        %2503 = vmatprep.subr.bf16.mxu0 0
        %2504 = vmatpush1.bf16.msra.mxu0 0
        %2505 = vmatprep.mubr.bf16.mxu0 0
        %2506 = vmatmul.mubr.bf16.gmra.mrb[0].mxu0 %v2468
        %v2507 = vpop.f32.mrb[0].mxu0
        %v2508 = vadd.f32 0.0, %v2507
        %v2509 = vpop.f32.mrb[0].mxu0
        %v2510 = vpop.f32.mrb[0].mxu0
        %v2511 = vpop.f32.mrb[0].mxu0
        %2512 = vdwg.mxu0
        %v2513 = vadd.f32 %v2462, %v2508
        %v2514 = vld [vmem:[%s560] sm:$0x3]
        %v2516 = vunpack.c.l.b16 %v2464
        %v2517 = vpack.c.b16 %v2516, %v2516
        %2518 = vrot.lane.b32.xlu0 %v2517, 124
        %v2519 = vpop.permute.xlu0 %2518
        %v2521 = vsel %vm355, %v2519, 0
        %v2524 = vsel %vm359, %v2514, 0
        %2526 = vmatprep.subr.bf16.mxu0 0
        %2527 = vmatpush1.bf16.msra.mxu0 %v2524
        %2528 = vmatprep.subr.bf16.mxu0 0
        %2529 = vmatpush1.bf16.msra.mxu0 0
        %2530 = vmatprep.subr.bf16.mxu0 0
        %2531 = vmatpush1.bf16.msra.mxu0 0
        %2532 = vmatprep.subr.bf16.mxu0 0
        %2533 = vmatpush1.bf16.msra.mxu0 0
        %2534 = vmatprep.subr.bf16.mxu0 0
        %2535 = vmatpush1.bf16.msra.mxu0 0
        %2536 = vmatprep.subr.bf16.mxu0 0
        %2537 = vmatpush1.bf16.msra.mxu0 0
        %2538 = vmatprep.subr.bf16.mxu0 0
        %2539 = vmatpush1.bf16.msra.mxu0 0
        %2540 = vmatprep.subr.bf16.mxu0 0
        %2541 = vmatpush1.bf16.msra.mxu0 0
        %2542 = vmatprep.subr.bf16.mxu0 0
        %2543 = vmatpush1.bf16.msra.mxu0 0
        %2544 = vmatprep.subr.bf16.mxu0 0
        %2545 = vmatpush1.bf16.msra.mxu0 0
        %2546 = vmatprep.subr.bf16.mxu0 0
        %2547 = vmatpush1.bf16.msra.mxu0 0
        %2548 = vmatprep.subr.bf16.mxu0 0
        %2549 = vmatpush1.bf16.msra.mxu0 0
        %2550 = vmatprep.subr.bf16.mxu0 0
        %2551 = vmatpush1.bf16.msra.mxu0 0
        %2552 = vmatprep.subr.bf16.mxu0 0
        %2553 = vmatpush1.bf16.msra.mxu0 0
        %2554 = vmatprep.subr.bf16.mxu0 0
        %2555 = vmatpush1.bf16.msra.mxu0 0
        %2556 = vmatprep.subr.bf16.mxu0 0
        %2557 = vmatpush1.bf16.msra.mxu0 0
        %2558 = vmatprep.mubr.bf16.mxu0 0
        %2559 = vmatmul.mubr.bf16.gmra.mrb[0].mxu0 %v2521
        %v2560 = vpop.f32.mrb[0].mxu0
        %v2561 = vadd.f32 0.0, %v2560
        %v2562 = vpop.f32.mrb[0].mxu0
        %v2563 = vpop.f32.mrb[0].mxu0
        %v2564 = vpop.f32.mrb[0].mxu0
        %2565 = vdwg.mxu0
        %v2566 = vadd.f32 %v2513, %v2561
        %v2567 = vld [vmem:[%s614] sm:$0x3]
        %v2569 = vunpack.c.l.b16 %v2465
        %v2570 = vpack.c.b16 %v2569, %v2516
        %v2572 = vshrl.u32 %v2570, 16
        %v2574 = vshll.u32 %v2570, 16
        %v2576 = vrot.slane %v2574, 1
        %v2577 = vor.u32 %v2572, %v2576
        %v2579 = vsel %vm355, %v2577, 0
        %v2582 = vsel %vm359, %v2567, 0
        %2584 = vmatprep.subr.bf16.mxu0 0
        %2585 = vmatpush1.bf16.msra.mxu0 %v2582
        %2586 = vmatprep.subr.bf16.mxu0 0
        %2587 = vmatpush1.bf16.msra.mxu0 0
        %2588 = vmatprep.subr.bf16.mxu0 0
        %2589 = vmatpush1.bf16.msra.mxu0 0
        %2590 = vmatprep.subr.bf16.mxu0 0
        %2591 = vmatpush1.bf16.msra.mxu0 0
        %2592 = vmatprep.subr.bf16.mxu0 0
        %2593 = vmatpush1.bf16.msra.mxu0 0
        %2594 = vmatprep.subr.bf16.mxu0 0
        %2595 = vmatpush1.bf16.msra.mxu0 0
        %2596 = vmatprep.subr.bf16.mxu0 0
        %2597 = vmatpush1.bf16.msra.mxu0 0
        %2598 = vmatprep.subr.bf16.mxu0 0
        %2599 = vmatpush1.bf16.msra.mxu0 0
        %2600 = vmatprep.subr.bf16.mxu0 0
        %2601 = vmatpush1.bf16.msra.mxu0 0
        %2602 = vmatprep.subr.bf16.mxu0 0
        %2603 = vmatpush1.bf16.msra.mxu0 0
        %2604 = vmatprep.subr.bf16.mxu0 0
        %2605 = vmatpush1.bf16.msra.mxu0 0
        %2606 = vmatprep.subr.bf16.mxu0 0
        %2607 = vmatpush1.bf16.msra.mxu0 0
        %2608 = vmatprep.subr.bf16.mxu0 0
        %2609 = vmatpush1.bf16.msra.mxu0 0
        %2610 = vmatprep.subr.bf16.mxu0 0
        %2611 = vmatpush1.bf16.msra.mxu0 0
        %2612 = vmatprep.subr.bf16.mxu0 0
        %2613 = vmatpush1.bf16.msra.mxu0 0
        %2614 = vmatprep.subr.bf16.mxu0 0
        %2615 = vmatpush1.bf16.msra.mxu0 0
        %2616 = vmatprep.mubr.bf16.mxu0 0
        %2617 = vmatmul.mubr.bf16.gmra.mrb[0].mxu0 %v2579
        %v2618 = vpop.f32.mrb[0].mxu0
        %v2619 = vadd.f32 0.0, %v2618
        %v2620 = vpop.f32.mrb[0].mxu0
        %v2621 = vpop.f32.mrb[0].mxu0
        %v2622 = vpop.f32.mrb[0].mxu0
        %2623 = vdwg.mxu0
        %v2624 = vadd.f32 %v2566, %v2619
        %s2625 = scalar_lea.vmem %s315, 80
        %v2626 = vld [vmem:[%s2625] sm:$0xf]
        %v2627 = vld [vmem:[%s2625 + $0x4] sm:$0x1]
        %v2628 = vld [vmem:[%s676] sm:$0x3]
        %v2630 = vsel %vm355, %v2626, 0
        %v2633 = vsel %vm359, %v2628, 0
        %2635 = vmatprep.subr.bf16.mxu0 0
        %2636 = vmatpush1.bf16.msra.mxu0 %v2633
        %2637 = vmatprep.subr.bf16.mxu0 0
        %2638 = vmatpush1.bf16.msra.mxu0 0
        %2639 = vmatprep.subr.bf16.mxu0 0
        %2640 = vmatpush1.bf16.msra.mxu0 0
        %2641 = vmatprep.subr.bf16.mxu0 0
        %2642 = vmatpush1.bf16.msra.mxu0 0
        %2643 = vmatprep.subr.bf16.mxu0 0
        %2644 = vmatpush1.bf16.msra.mxu0 0
        %2645 = vmatprep.subr.bf16.mxu0 0
        %2646 = vmatpush1.bf16.msra.mxu0 0
        %2647 = vmatprep.subr.bf16.mxu0 0
        %2648 = vmatpush1.bf16.msra.mxu0 0
        %2649 = vmatprep.subr.bf16.mxu0 0
        %2650 = vmatpush1.bf16.msra.mxu0 0
        %2651 = vmatprep.subr.bf16.mxu0 0
        %2652 = vmatpush1.bf16.msra.mxu0 0
        %2653 = vmatprep.subr.bf16.mxu0 0
        %2654 = vmatpush1.bf16.msra.mxu0 0
        %2655 = vmatprep.subr.bf16.mxu0 0
        %2656 = vmatpush1.bf16.msra.mxu0 0
        %2657 = vmatprep.subr.bf16.mxu0 0
        %2658 = vmatpush1.bf16.msra.mxu0 0
        %2659 = vmatprep.subr.bf16.mxu0 0
        %2660 = vmatpush1.bf16.msra.mxu0 0
        %2661 = vmatprep.subr.bf16.mxu0 0
        %2662 = vmatpush1.bf16.msra.mxu0 0
        %2663 = vmatprep.subr.bf16.mxu0 0
        %2664 = vmatpush1.bf16.msra.mxu0 0
        %2665 = vmatprep.subr.bf16.mxu0 0
        %2666 = vmatpush1.bf16.msra.mxu0 0
        %2667 = vmatprep.mubr.bf16.mxu0 0
        %2668 = vmatmul.mubr.bf16.gmra.mrb[0].mxu0 %v2630
        %v2669 = vpop.f32.mrb[0].mxu0
        %v2670 = vadd.f32 0.0, %v2669
        %v2671 = vpop.f32.mrb[0].mxu0
        %v2672 = vpop.f32.mrb[0].mxu0
        %v2673 = vpop.f32.mrb[0].mxu0
        %2674 = vdwg.mxu0
        %v2675 = vadd.f32 %v2624, %v2670
        %v2676 = vld [vmem:[%s725] sm:$0x3]
        %v2678 = vunpack.c.l.b16 %v2626
        %v2679 = vpack.c.b16 %v2678, %v2678
        %2680 = vrot.lane.b32.xlu0 %v2679, 124
        %v2681 = vpop.permute.xlu0 %2680
        %v2683 = vsel %vm355, %v2681, 0
        %v2686 = vsel %vm359, %v2676, 0
        %2688 = vmatprep.subr.bf16.mxu0 0
        %2689 = vmatpush1.bf16.msra.mxu0 %v2686
        %2690 = vmatprep.subr.bf16.mxu0 0
        %2691 = vmatpush1.bf16.msra.mxu0 0
        %2692 = vmatprep.subr.bf16.mxu0 0
        %2693 = vmatpush1.bf16.msra.mxu0 0
        %2694 = vmatprep.subr.bf16.mxu0 0
        %2695 = vmatpush1.bf16.msra.mxu0 0
        %2696 = vmatprep.subr.bf16.mxu0 0
        %2697 = vmatpush1.bf16.msra.mxu0 0
        %2698 = vmatprep.subr.bf16.mxu0 0
        %2699 = vmatpush1.bf16.msra.mxu0 0
        %2700 = vmatprep.subr.bf16.mxu0 0
        %2701 = vmatpush1.bf16.msra.mxu0 0
        %2702 = vmatprep.subr.bf16.mxu0 0
        %2703 = vmatpush1.bf16.msra.mxu0 0
        %2704 = vmatprep.subr.bf16.mxu0 0
        %2705 = vmatpush1.bf16.msra.mxu0 0
        %2706 = vmatprep.subr.bf16.mxu0 0
        %2707 = vmatpush1.bf16.msra.mxu0 0
        %2708 = vmatprep.subr.bf16.mxu0 0
        %2709 = vmatpush1.bf16.msra.mxu0 0
        %2710 = vmatprep.subr.bf16.mxu0 0
        %2711 = vmatpush1.bf16.msra.mxu0 0
        %2712 = vmatprep.subr.bf16.mxu0 0
        %2713 = vmatpush1.bf16.msra.mxu0 0
        %2714 = vmatprep.subr.bf16.mxu0 0
        %2715 = vmatpush1.bf16.msra.mxu0 0
        %2716 = vmatprep.subr.bf16.mxu0 0
        %2717 = vmatpush1.bf16.msra.mxu0 0
        %2718 = vmatprep.subr.bf16.mxu0 0
        %2719 = vmatpush1.bf16.msra.mxu0 0
        %2720 = vmatprep.mubr.bf16.mxu0 0
        %2721 = vmatmul.mubr.bf16.gmra.mrb[0].mxu0 %v2683
        %v2722 = vpop.f32.mrb[0].mxu0
        %v2723 = vadd.f32 0.0, %v2722
        %v2724 = vpop.f32.mrb[0].mxu0
        %v2725 = vpop.f32.mrb[0].mxu0
        %v2726 = vpop.f32.mrb[0].mxu0
        %2727 = vdwg.mxu0
        %v2728 = vadd.f32 %v2675, %v2723
        %v2729 = vld [vmem:[%s779] sm:$0x3]
        %v2731 = vunpack.c.l.b16 %v2627
        %v2732 = vpack.c.b16 %v2731, %v2678
        %v2734 = vshrl.u32 %v2732, 16
        %v2736 = vshll.u32 %v2732, 16
        %v2738 = vrot.slane %v2736, 1
        %v2739 = vor.u32 %v2734, %v2738
        %v2741 = vsel %vm355, %v2739, 0
        %v2744 = vsel %vm359, %v2729, 0
        %2746 = vmatprep.subr.bf16.mxu0 0
        %2747 = vmatpush1.bf16.msra.mxu0 %v2744
        %2748 = vmatprep.subr.bf16.mxu0 0
        %2749 = vmatpush1.bf16.msra.mxu0 0
        %2750 = vmatprep.subr.bf16.mxu0 0
        %2751 = vmatpush1.bf16.msra.mxu0 0
        %2752 = vmatprep.subr.bf16.mxu0 0
        %2753 = vmatpush1.bf16.msra.mxu0 0
        %2754 = vmatprep.subr.bf16.mxu0 0
        %2755 = vmatpush1.bf16.msra.mxu0 0
        %2756 = vmatprep.subr.bf16.mxu0 0
        %2757 = vmatpush1.bf16.msra.mxu0 0
        %2758 = vmatprep.subr.bf16.mxu0 0
        %2759 = vmatpush1.bf16.msra.mxu0 0
        %2760 = vmatprep.subr.bf16.mxu0 0
        %2761 = vmatpush1.bf16.msra.mxu0 0
        %2762 = vmatprep.subr.bf16.mxu0 0
        %2763 = vmatpush1.bf16.msra.mxu0 0
        %2764 = vmatprep.subr.bf16.mxu0 0
        %2765 = vmatpush1.bf16.msra.mxu0 0
        %2766 = vmatprep.subr.bf16.mxu0 0
        %2767 = vmatpush1.bf16.msra.mxu0 0
        %2768 = vmatprep.subr.bf16.mxu0 0
        %2769 = vmatpush1.bf16.msra.mxu0 0
        %2770 = vmatprep.subr.bf16.mxu0 0
        %2771 = vmatpush1.bf16.msra.mxu0 0
        %2772 = vmatprep.subr.bf16.mxu0 0
        %2773 = vmatpush1.bf16.msra.mxu0 0
        %2774 = vmatprep.subr.bf16.mxu0 0
        %2775 = vmatpush1.bf16.msra.mxu0 0
        %2776 = vmatprep.subr.bf16.mxu0 0
        %2777 = vmatpush1.bf16.msra.mxu0 0
        %2778 = vmatprep.mubr.bf16.mxu0 0
        %2779 = vmatmul.mubr.bf16.gmra.mrb[0].mxu0 %v2741
        %v2780 = vpop.f32.mrb[0].mxu0
        %v2781 = vadd.f32 0.0, %v2780
        %v2782 = vpop.f32.mrb[0].mxu0
        %v2783 = vpop.f32.mrb[0].mxu0
        %v2784 = vpop.f32.mrb[0].mxu0
        %2785 = vdwg.mxu0
        %v2786 = vadd.f32 %v2728, %v2781
        %v2787 = vadd.f32 %v2786, %v842
        %s2788 = scalar_lea.vmem %s300, 32 [#allocation2]
        %2789 = vst [vmem:[%s2788] sm:$0xff] %v2787
        %v2790 = vld [vmem:[%s2625] sm:$0xf]
        %v2791 = vld [vmem:[%s2625 + $0x4] sm:$0x1]
        %v2792 = vld [vmem:[%s338] sm:$0x3]
        %v2793 = vld [vmem:[%s348] sm:$0x3]
        %v2795 = vunpack.c.l.b16 %v2790
        %v2796 = vpack.c.b16 %v2795, %v2795
        %2797 = vrot.lane.b32.xlu0 %v2796, 124
        %v2798 = vpop.permute.xlu0 %2797
        %v2800 = vsel %vm355, %v2798, 0
        %v2803 = vsel %vm359, %v2793, 0
        %2805 = vmatprep.subr.bf16.mxu0 0
        %2806 = vmatpush1.bf16.msra.mxu0 %v2803
        %2807 = vmatprep.subr.bf16.mxu0 0
        %2808 = vmatpush1.bf16.msra.mxu0 0
        %2809 = vmatprep.subr.bf16.mxu0 0
        %2810 = vmatpush1.bf16.msra.mxu0 0
        %2811 = vmatprep.subr.bf16.mxu0 0
        %2812 = vmatpush1.bf16.msra.mxu0 0
        %2813 = vmatprep.subr.bf16.mxu0 0
        %2814 = vmatpush1.bf16.msra.mxu0 0
        %2815 = vmatprep.subr.bf16.mxu0 0
        %2816 = vmatpush1.bf16.msra.mxu0 0
        %2817 = vmatprep.subr.bf16.mxu0 0
        %2818 = vmatpush1.bf16.msra.mxu0 0
        %2819 = vmatprep.subr.bf16.mxu0 0
        %2820 = vmatpush1.bf16.msra.mxu0 0
        %2821 = vmatprep.subr.bf16.mxu0 0
        %2822 = vmatpush1.bf16.msra.mxu0 0
        %2823 = vmatprep.subr.bf16.mxu0 0
        %2824 = vmatpush1.bf16.msra.mxu0 0
        %2825 = vmatprep.subr.bf16.mxu0 0
        %2826 = vmatpush1.bf16.msra.mxu0 0
        %2827 = vmatprep.subr.bf16.mxu0 0
        %2828 = vmatpush1.bf16.msra.mxu0 0
        %2829 = vmatprep.subr.bf16.mxu0 0
        %2830 = vmatpush1.bf16.msra.mxu0 0
        %2831 = vmatprep.subr.bf16.mxu0 0
        %2832 = vmatpush1.bf16.msra.mxu0 0
        %2833 = vmatprep.subr.bf16.mxu0 0
        %2834 = vmatpush1.bf16.msra.mxu0 0
        %2835 = vmatprep.subr.bf16.mxu0 0
        %2836 = vmatpush1.bf16.msra.mxu0 0
        %2837 = vmatprep.mubr.bf16.mxu0 0
        %2838 = vmatmul.mubr.bf16.gmra.mrb[0].mxu0 %v2800
        %v2839 = vpop.f32.mrb[0].mxu0
        %v2840 = vadd.f32 0.0, %v2839
        %v2841 = vpop.f32.mrb[0].mxu0
        %v2842 = vpop.f32.mrb[0].mxu0
        %v2843 = vpop.f32.mrb[0].mxu0
        %2844 = vdwg.mxu0
        %v2846 = vsel %vm355, %v2790, 0
        %v2849 = vsel %vm359, %v2792, 0
        %2851 = vmatprep.subr.bf16.mxu0 0
        %2852 = vmatpush1.bf16.msra.mxu0 %v2849
        %2853 = vmatprep.subr.bf16.mxu0 0
        %2854 = vmatpush1.bf16.msra.mxu0 0
        %2855 = vmatprep.subr.bf16.mxu0 0
        %2856 = vmatpush1.bf16.msra.mxu0 0
        %2857 = vmatprep.subr.bf16.mxu0 0
        %2858 = vmatpush1.bf16.msra.mxu0 0
        %2859 = vmatprep.subr.bf16.mxu0 0
        %2860 = vmatpush1.bf16.msra.mxu0 0
        %2861 = vmatprep.subr.bf16.mxu0 0
        %2862 = vmatpush1.bf16.msra.mxu0 0
        %2863 = vmatprep.subr.bf16.mxu0 0
        %2864 = vmatpush1.bf16.msra.mxu0 0
        %2865 = vmatprep.subr.bf16.mxu0 0
        %2866 = vmatpush1.bf16.msra.mxu0 0
        %2867 = vmatprep.subr.bf16.mxu0 0
        %2868 = vmatpush1.bf16.msra.mxu0 0
        %2869 = vmatprep.subr.bf16.mxu0 0
        %2870 = vmatpush1.bf16.msra.mxu0 0
        %2871 = vmatprep.subr.bf16.mxu0 0
        %2872 = vmatpush1.bf16.msra.mxu0 0
        %2873 = vmatprep.subr.bf16.mxu0 0
        %2874 = vmatpush1.bf16.msra.mxu0 0
        %2875 = vmatprep.subr.bf16.mxu0 0
        %2876 = vmatpush1.bf16.msra.mxu0 0
        %2877 = vmatprep.subr.bf16.mxu0 0
        %2878 = vmatpush1.bf16.msra.mxu0 0
        %2879 = vmatprep.subr.bf16.mxu0 0
        %2880 = vmatpush1.bf16.msra.mxu0 0
        %2881 = vmatprep.subr.bf16.mxu0 0
        %2882 = vmatpush1.bf16.msra.mxu0 0
        %2883 = vmatprep.mubr.bf16.mxu0 0
        %2884 = vmatmul.mubr.bf16.gmra.mrb[0].mxu0 %v2846
        %v2885 = vpop.f32.mrb[0].mxu0
        %v2886 = vadd.f32 %v2840, %v2885
        %v2887 = vpop.f32.mrb[0].mxu0
        %v2888 = vpop.f32.mrb[0].mxu0
        %v2889 = vpop.f32.mrb[0].mxu0
        %2890 = vdwg.mxu0
        %v2891 = vld [vmem:[%s449] sm:$0x3]
        %v2893 = vunpack.c.l.b16 %v2791
        %v2894 = vpack.c.b16 %v2893, %v2795
        %v2896 = vshrl.u32 %v2894, 16
        %v2898 = vshll.u32 %v2894, 16
        %v2900 = vrot.slane %v2898, 1
        %v2901 = vor.u32 %v2896, %v2900
        %v2903 = vsel %vm355, %v2901, 0
        %v2906 = vsel %vm359, %v2891, 0
        %2908 = vmatprep.subr.bf16.mxu0 0
        %2909 = vmatpush1.bf16.msra.mxu0 %v2906
        %2910 = vmatprep.subr.bf16.mxu0 0
        %2911 = vmatpush1.bf16.msra.mxu0 0
        %2912 = vmatprep.subr.bf16.mxu0 0
        %2913 = vmatpush1.bf16.msra.mxu0 0
        %2914 = vmatprep.subr.bf16.mxu0 0
        %2915 = vmatpush1.bf16.msra.mxu0 0
        %2916 = vmatprep.subr.bf16.mxu0 0
        %2917 = vmatpush1.bf16.msra.mxu0 0
        %2918 = vmatprep.subr.bf16.mxu0 0
        %2919 = vmatpush1.bf16.msra.mxu0 0
        %2920 = vmatprep.subr.bf16.mxu0 0
        %2921 = vmatpush1.bf16.msra.mxu0 0
        %2922 = vmatprep.subr.bf16.mxu0 0
        %2923 = vmatpush1.bf16.msra.mxu0 0
        %2924 = vmatprep.subr.bf16.mxu0 0
        %2925 = vmatpush1.bf16.msra.mxu0 0
        %2926 = vmatprep.subr.bf16.mxu0 0
        %2927 = vmatpush1.bf16.msra.mxu0 0
        %2928 = vmatprep.subr.bf16.mxu0 0
        %2929 = vmatpush1.bf16.msra.mxu0 0
        %2930 = vmatprep.subr.bf16.mxu0 0
        %2931 = vmatpush1.bf16.msra.mxu0 0
        %2932 = vmatprep.subr.bf16.mxu0 0
        %2933 = vmatpush1.bf16.msra.mxu0 0
        %2934 = vmatprep.subr.bf16.mxu0 0
        %2935 = vmatpush1.bf16.msra.mxu0 0
        %2936 = vmatprep.subr.bf16.mxu0 0
        %2937 = vmatpush1.bf16.msra.mxu0 0
        %2938 = vmatprep.subr.bf16.mxu0 0
        %2939 = vmatpush1.bf16.msra.mxu0 0
        %2940 = vmatprep.mubr.bf16.mxu0 0
        %2941 = vmatmul.mubr.bf16.gmra.mrb[0].mxu0 %v2903
        %v2942 = vpop.f32.mrb[0].mxu0
        %v2943 = vadd.f32 0.0, %v2942
        %v2944 = vpop.f32.mrb[0].mxu0
        %v2945 = vpop.f32.mrb[0].mxu0
        %v2946 = vpop.f32.mrb[0].mxu0
        %2947 = vdwg.mxu0
        %v2948 = vadd.f32 %v2886, %v2943
        %s2949 = scalar_lea.vmem %s315, 88
        %v2950 = vld [vmem:[%s2949] sm:$0xf]
        %v2951 = vld [vmem:[%s2949 + $0x4] sm:$0x1]
        %v2952 = vld [vmem:[%s511] sm:$0x3]
        %v2954 = vsel %vm355, %v2950, 0
        %v2957 = vsel %vm359, %v2952, 0
        %2959 = vmatprep.subr.bf16.mxu0 0
        %2960 = vmatpush1.bf16.msra.mxu0 %v2957
        %2961 = vmatprep.subr.bf16.mxu0 0
        %2962 = vmatpush1.bf16.msra.mxu0 0
        %2963 = vmatprep.subr.bf16.mxu0 0
        %2964 = vmatpush1.bf16.msra.mxu0 0
        %2965 = vmatprep.subr.bf16.mxu0 0
        %2966 = vmatpush1.bf16.msra.mxu0 0
        %2967 = vmatprep.subr.bf16.mxu0 0
        %2968 = vmatpush1.bf16.msra.mxu0 0
        %2969 = vmatprep.subr.bf16.mxu0 0
        %2970 = vmatpush1.bf16.msra.mxu0 0
        %2971 = vmatprep.subr.bf16.mxu0 0
        %2972 = vmatpush1.bf16.msra.mxu0 0
        %2973 = vmatprep.subr.bf16.mxu0 0
        %2974 = vmatpush1.bf16.msra.mxu0 0
        %2975 = vmatprep.subr.bf16.mxu0 0
        %2976 = vmatpush1.bf16.msra.mxu0 0
        %2977 = vmatprep.subr.bf16.mxu0 0
        %2978 = vmatpush1.bf16.msra.mxu0 0
        %2979 = vmatprep.subr.bf16.mxu0 0
        %2980 = vmatpush1.bf16.msra.mxu0 0
        %2981 = vmatprep.subr.bf16.mxu0 0
        %2982 = vmatpush1.bf16.msra.mxu0 0
        %2983 = vmatprep.subr.bf16.mxu0 0
        %2984 = vmatpush1.bf16.msra.mxu0 0
        %2985 = vmatprep.subr.bf16.mxu0 0
        %2986 = vmatpush1.bf16.msra.mxu0 0
        %2987 = vmatprep.subr.bf16.mxu0 0
        %2988 = vmatpush1.bf16.msra.mxu0 0
        %2989 = vmatprep.subr.bf16.mxu0 0
        %2990 = vmatpush1.bf16.msra.mxu0 0
        %2991 = vmatprep.mubr.bf16.mxu0 0
        %2992 = vmatmul.mubr.bf16.gmra.mrb[0].mxu0 %v2954
        %v2993 = vpop.f32.mrb[0].mxu0
        %v2994 = vadd.f32 0.0, %v2993
        %v2995 = vpop.f32.mrb[0].mxu0
        %v2996 = vpop.f32.mrb[0].mxu0
        %v2997 = vpop.f32.mrb[0].mxu0
        %2998 = vdwg.mxu0
        %v2999 = vadd.f32 %v2948, %v2994
        %v3000 = vld [vmem:[%s560] sm:$0x3]
        %v3002 = vunpack.c.l.b16 %v2950
        %v3003 = vpack.c.b16 %v3002, %v3002
        %3004 = vrot.lane.b32.xlu0 %v3003, 124
        %v3005 = vpop.permute.xlu0 %3004
        %v3007 = vsel %vm355, %v3005, 0
        %v3010 = vsel %vm359, %v3000, 0
        %3012 = vmatprep.subr.bf16.mxu0 0
        %3013 = vmatpush1.bf16.msra.mxu0 %v3010
        %3014 = vmatprep.subr.bf16.mxu0 0
        %3015 = vmatpush1.bf16.msra.mxu0 0
        %3016 = vmatprep.subr.bf16.mxu0 0
        %3017 = vmatpush1.bf16.msra.mxu0 0
        %3018 = vmatprep.subr.bf16.mxu0 0
        %3019 = vmatpush1.bf16.msra.mxu0 0
        %3020 = vmatprep.subr.bf16.mxu0 0
        %3021 = vmatpush1.bf16.msra.mxu0 0
        %3022 = vmatprep.subr.bf16.mxu0 0
        %3023 = vmatpush1.bf16.msra.mxu0 0
        %3024 = vmatprep.subr.bf16.mxu0 0
        %3025 = vmatpush1.bf16.msra.mxu0 0
        %3026 = vmatprep.subr.bf16.mxu0 0
        %3027 = vmatpush1.bf16.msra.mxu0 0
        %3028 = vmatprep.subr.bf16.mxu0 0
        %3029 = vmatpush1.bf16.msra.mxu0 0
        %3030 = vmatprep.subr.bf16.mxu0 0
        %3031 = vmatpush1.bf16.msra.mxu0 0
        %3032 = vmatprep.subr.bf16.mxu0 0
        %3033 = vmatpush1.bf16.msra.mxu0 0
        %3034 = vmatprep.subr.bf16.mxu0 0
        %3035 = vmatpush1.bf16.msra.mxu0 0
        %3036 = vmatprep.subr.bf16.mxu0 0
        %3037 = vmatpush1.bf16.msra.mxu0 0
        %3038 = vmatprep.subr.bf16.mxu0 0
        %3039 = vmatpush1.bf16.msra.mxu0 0
        %3040 = vmatprep.subr.bf16.mxu0 0
        %3041 = vmatpush1.bf16.msra.mxu0 0
        %3042 = vmatprep.subr.bf16.mxu0 0
        %3043 = vmatpush1.bf16.msra.mxu0 0
        %3044 = vmatprep.mubr.bf16.mxu0 0
        %3045 = vmatmul.mubr.bf16.gmra.mrb[0].mxu0 %v3007
        %v3046 = vpop.f32.mrb[0].mxu0
        %v3047 = vadd.f32 0.0, %v3046
        %v3048 = vpop.f32.mrb[0].mxu0
        %v3049 = vpop.f32.mrb[0].mxu0
        %v3050 = vpop.f32.mrb[0].mxu0
        %3051 = vdwg.mxu0
        %v3052 = vadd.f32 %v2999, %v3047
        %v3053 = vld [vmem:[%s614] sm:$0x3]
        %v3055 = vunpack.c.l.b16 %v2951
        %v3056 = vpack.c.b16 %v3055, %v3002
        %v3058 = vshrl.u32 %v3056, 16
        %v3060 = vshll.u32 %v3056, 16
        %v3062 = vrot.slane %v3060, 1
        %v3063 = vor.u32 %v3058, %v3062
        %v3065 = vsel %vm355, %v3063, 0
        %v3068 = vsel %vm359, %v3053, 0
        %3070 = vmatprep.subr.bf16.mxu0 0
        %3071 = vmatpush1.bf16.msra.mxu0 %v3068
        %3072 = vmatprep.subr.bf16.mxu0 0
        %3073 = vmatpush1.bf16.msra.mxu0 0
        %3074 = vmatprep.subr.bf16.mxu0 0
        %3075 = vmatpush1.bf16.msra.mxu0 0
        %3076 = vmatprep.subr.bf16.mxu0 0
        %3077 = vmatpush1.bf16.msra.mxu0 0
        %3078 = vmatprep.subr.bf16.mxu0 0
        %3079 = vmatpush1.bf16.msra.mxu0 0
        %3080 = vmatprep.subr.bf16.mxu0 0
        %3081 = vmatpush1.bf16.msra.mxu0 0
        %3082 = vmatprep.subr.bf16.mxu0 0
        %3083 = vmatpush1.bf16.msra.mxu0 0
        %3084 = vmatprep.subr.bf16.mxu0 0
        %3085 = vmatpush1.bf16.msra.mxu0 0
        %3086 = vmatprep.subr.bf16.mxu0 0
        %3087 = vmatpush1.bf16.msra.mxu0 0
        %3088 = vmatprep.subr.bf16.mxu0 0
        %3089 = vmatpush1.bf16.msra.mxu0 0
        %3090 = vmatprep.subr.bf16.mxu0 0
        %3091 = vmatpush1.bf16.msra.mxu0 0
        %3092 = vmatprep.subr.bf16.mxu0 0
        %3093 = vmatpush1.bf16.msra.mxu0 0
        %3094 = vmatprep.subr.bf16.mxu0 0
        %3095 = vmatpush1.bf16.msra.mxu0 0
        %3096 = vmatprep.subr.bf16.mxu0 0
        %3097 = vmatpush1.bf16.msra.mxu0 0
        %3098 = vmatprep.subr.bf16.mxu0 0
        %3099 = vmatpush1.bf16.msra.mxu0 0
        %3100 = vmatprep.subr.bf16.mxu0 0
        %3101 = vmatpush1.bf16.msra.mxu0 0
        %3102 = vmatprep.mubr.bf16.mxu0 0
        %3103 = vmatmul.mubr.bf16.gmra.mrb[0].mxu0 %v3065
        %v3104 = vpop.f32.mrb[0].mxu0
        %v3105 = vadd.f32 0.0, %v3104
        %v3106 = vpop.f32.mrb[0].mxu0
        %v3107 = vpop.f32.mrb[0].mxu0
        %v3108 = vpop.f32.mrb[0].mxu0
        %3109 = vdwg.mxu0
        %v3110 = vadd.f32 %v3052, %v3105
        %s3111 = scalar_lea.vmem %s315, 96
        %v3112 = vld [vmem:[%s3111] sm:$0xf]
        %v3113 = vld [vmem:[%s3111 + $0x4] sm:$0x1]
        %v3114 = vld [vmem:[%s676] sm:$0x3]
        %v3116 = vsel %vm355, %v3112, 0
        %v3119 = vsel %vm359, %v3114, 0
        %3121 = vmatprep.subr.bf16.mxu0 0
        %3122 = vmatpush1.bf16.msra.mxu0 %v3119
        %3123 = vmatprep.subr.bf16.mxu0 0
        %3124 = vmatpush1.bf16.msra.mxu0 0
        %3125 = vmatprep.subr.bf16.mxu0 0
        %3126 = vmatpush1.bf16.msra.mxu0 0
        %3127 = vmatprep.subr.bf16.mxu0 0
        %3128 = vmatpush1.bf16.msra.mxu0 0
        %3129 = vmatprep.subr.bf16.mxu0 0
        %3130 = vmatpush1.bf16.msra.mxu0 0
        %3131 = vmatprep.subr.bf16.mxu0 0
        %3132 = vmatpush1.bf16.msra.mxu0 0
        %3133 = vmatprep.subr.bf16.mxu0 0
        %3134 = vmatpush1.bf16.msra.mxu0 0
        %3135 = vmatprep.subr.bf16.mxu0 0
        %3136 = vmatpush1.bf16.msra.mxu0 0
        %3137 = vmatprep.subr.bf16.mxu0 0
        %3138 = vmatpush1.bf16.msra.mxu0 0
        %3139 = vmatprep.subr.bf16.mxu0 0
        %3140 = vmatpush1.bf16.msra.mxu0 0
        %3141 = vmatprep.subr.bf16.mxu0 0
        %3142 = vmatpush1.bf16.msra.mxu0 0
        %3143 = vmatprep.subr.bf16.mxu0 0
        %3144 = vmatpush1.bf16.msra.mxu0 0
        %3145 = vmatprep.subr.bf16.mxu0 0
        %3146 = vmatpush1.bf16.msra.mxu0 0
        %3147 = vmatprep.subr.bf16.mxu0 0
        %3148 = vmatpush1.bf16.msra.mxu0 0
        %3149 = vmatprep.subr.bf16.mxu0 0
        %3150 = vmatpush1.bf16.msra.mxu0 0
        %3151 = vmatprep.subr.bf16.mxu0 0
        %3152 = vmatpush1.bf16.msra.mxu0 0
        %3153 = vmatprep.mubr.bf16.mxu0 0
        %3154 = vmatmul.mubr.bf16.gmra.mrb[0].mxu0 %v3116
        %v3155 = vpop.f32.mrb[0].mxu0
        %v3156 = vadd.f32 0.0, %v3155
        %v3157 = vpop.f32.mrb[0].mxu0
        %v3158 = vpop.f32.mrb[0].mxu0
        %v3159 = vpop.f32.mrb[0].mxu0
        %3160 = vdwg.mxu0
        %v3161 = vadd.f32 %v3110, %v3156
        %v3162 = vld [vmem:[%s725] sm:$0x3]
        %v3164 = vunpack.c.l.b16 %v3112
        %v3165 = vpack.c.b16 %v3164, %v3164
        %3166 = vrot.lane.b32.xlu0 %v3165, 124
        %v3167 = vpop.permute.xlu0 %3166
        %v3169 = vsel %vm355, %v3167, 0
        %v3172 = vsel %vm359, %v3162, 0
        %3174 = vmatprep.subr.bf16.mxu0 0
        %3175 = vmatpush1.bf16.msra.mxu0 %v3172
        %3176 = vmatprep.subr.bf16.mxu0 0
        %3177 = vmatpush1.bf16.msra.mxu0 0
        %3178 = vmatprep.subr.bf16.mxu0 0
        %3179 = vmatpush1.bf16.msra.mxu0 0
        %3180 = vmatprep.subr.bf16.mxu0 0
        %3181 = vmatpush1.bf16.msra.mxu0 0
        %3182 = vmatprep.subr.bf16.mxu0 0
        %3183 = vmatpush1.bf16.msra.mxu0 0
        %3184 = vmatprep.subr.bf16.mxu0 0
        %3185 = vmatpush1.bf16.msra.mxu0 0
        %3186 = vmatprep.subr.bf16.mxu0 0
        %3187 = vmatpush1.bf16.msra.mxu0 0
        %3188 = vmatprep.subr.bf16.mxu0 0
        %3189 = vmatpush1.bf16.msra.mxu0 0
        %3190 = vmatprep.subr.bf16.mxu0 0
        %3191 = vmatpush1.bf16.msra.mxu0 0
        %3192 = vmatprep.subr.bf16.mxu0 0
        %3193 = vmatpush1.bf16.msra.mxu0 0
        %3194 = vmatprep.subr.bf16.mxu0 0
        %3195 = vmatpush1.bf16.msra.mxu0 0
        %3196 = vmatprep.subr.bf16.mxu0 0
        %3197 = vmatpush1.bf16.msra.mxu0 0
        %3198 = vmatprep.subr.bf16.mxu0 0
        %3199 = vmatpush1.bf16.msra.mxu0 0
        %3200 = vmatprep.subr.bf16.mxu0 0
        %3201 = vmatpush1.bf16.msra.mxu0 0
        %3202 = vmatprep.subr.bf16.mxu0 0
        %3203 = vmatpush1.bf16.msra.mxu0 0
        %3204 = vmatprep.subr.bf16.mxu0 0
        %3205 = vmatpush1.bf16.msra.mxu0 0
        %3206 = vmatprep.mubr.bf16.mxu0 0
        %3207 = vmatmul.mubr.bf16.gmra.mrb[0].mxu0 %v3169
        %v3208 = vpop.f32.mrb[0].mxu0
        %v3209 = vadd.f32 0.0, %v3208
        %v3210 = vpop.f32.mrb[0].mxu0
        %v3211 = vpop.f32.mrb[0].mxu0
        %v3212 = vpop.f32.mrb[0].mxu0
        %3213 = vdwg.mxu0
        %v3214 = vadd.f32 %v3161, %v3209
        %v3215 = vld [vmem:[%s779] sm:$0x3]
        %v3217 = vunpack.c.l.b16 %v3113
        %v3218 = vpack.c.b16 %v3217, %v3164
        %v3220 = vshrl.u32 %v3218, 16
        %v3222 = vshll.u32 %v3218, 16
        %v3224 = vrot.slane %v3222, 1
        %v3225 = vor.u32 %v3220, %v3224
        %v3227 = vsel %vm355, %v3225, 0
        %v3230 = vsel %vm359, %v3215, 0
        %3232 = vmatprep.subr.bf16.mxu0 0
        %3233 = vmatpush1.bf16.msra.mxu0 %v3230
        %3234 = vmatprep.subr.bf16.mxu0 0
        %3235 = vmatpush1.bf16.msra.mxu0 0
        %3236 = vmatprep.subr.bf16.mxu0 0
        %3237 = vmatpush1.bf16.msra.mxu0 0
        %3238 = vmatprep.subr.bf16.mxu0 0
        %3239 = vmatpush1.bf16.msra.mxu0 0
        %3240 = vmatprep.subr.bf16.mxu0 0
        %3241 = vmatpush1.bf16.msra.mxu0 0
        %3242 = vmatprep.subr.bf16.mxu0 0
        %3243 = vmatpush1.bf16.msra.mxu0 0
        %3244 = vmatprep.subr.bf16.mxu0 0
        %3245 = vmatpush1.bf16.msra.mxu0 0
        %3246 = vmatprep.subr.bf16.mxu0 0
        %3247 = vmatpush1.bf16.msra.mxu0 0
        %3248 = vmatprep.subr.bf16.mxu0 0
        %3249 = vmatpush1.bf16.msra.mxu0 0
        %3250 = vmatprep.subr.bf16.mxu0 0
        %3251 = vmatpush1.bf16.msra.mxu0 0
        %3252 = vmatprep.subr.bf16.mxu0 0
        %3253 = vmatpush1.bf16.msra.mxu0 0
        %3254 = vmatprep.subr.bf16.mxu0 0
        %3255 = vmatpush1.bf16.msra.mxu0 0
        %3256 = vmatprep.subr.bf16.mxu0 0
        %3257 = vmatpush1.bf16.msra.mxu0 0
        %3258 = vmatprep.subr.bf16.mxu0 0
        %3259 = vmatpush1.bf16.msra.mxu0 0
        %3260 = vmatprep.subr.bf16.mxu0 0
        %3261 = vmatpush1.bf16.msra.mxu0 0
        %3262 = vmatprep.subr.bf16.mxu0 0
        %3263 = vmatpush1.bf16.msra.mxu0 0
        %3264 = vmatprep.mubr.bf16.mxu0 0
        %3265 = vmatmul.mubr.bf16.gmra.mrb[0].mxu0 %v3227
        %v3266 = vpop.f32.mrb[0].mxu0
        %v3267 = vadd.f32 0.0, %v3266
        %v3268 = vpop.f32.mrb[0].mxu0
        %v3269 = vpop.f32.mrb[0].mxu0
        %v3270 = vpop.f32.mrb[0].mxu0
        %3271 = vdwg.mxu0
        %v3272 = vadd.f32 %v3214, %v3267
        %v3273 = vadd.f32 %v3272, %v842
        %s3274 = scalar_lea.vmem %s300, 40 [#allocation2]
        %3275 = vst [vmem:[%s3274] sm:$0xff] %v3273
        %v3276 = vld [vmem:[%s3111] sm:$0xf]
        %v3277 = vld [vmem:[%s3111 + $0x4] sm:$0x1]
        %v3278 = vld [vmem:[%s338] sm:$0x3]
        %v3279 = vld [vmem:[%s348] sm:$0x3]
        %v3281 = vunpack.c.l.b16 %v3276
        %v3282 = vpack.c.b16 %v3281, %v3281
        %3283 = vrot.lane.b32.xlu0 %v3282, 124
        %v3284 = vpop.permute.xlu0 %3283
        %v3286 = vsel %vm355, %v3284, 0
        %v3289 = vsel %vm359, %v3279, 0
        %3291 = vmatprep.subr.bf16.mxu0 0
        %3292 = vmatpush1.bf16.msra.mxu0 %v3289
        %3293 = vmatprep.subr.bf16.mxu0 0
        %3294 = vmatpush1.bf16.msra.mxu0 0
        %3295 = vmatprep.subr.bf16.mxu0 0
        %3296 = vmatpush1.bf16.msra.mxu0 0
        %3297 = vmatprep.subr.bf16.mxu0 0
        %3298 = vmatpush1.bf16.msra.mxu0 0
        %3299 = vmatprep.subr.bf16.mxu0 0
        %3300 = vmatpush1.bf16.msra.mxu0 0
        %3301 = vmatprep.subr.bf16.mxu0 0
        %3302 = vmatpush1.bf16.msra.mxu0 0
        %3303 = vmatprep.subr.bf16.mxu0 0
        %3304 = vmatpush1.bf16.msra.mxu0 0
        %3305 = vmatprep.subr.bf16.mxu0 0
        %3306 = vmatpush1.bf16.msra.mxu0 0
        %3307 = vmatprep.subr.bf16.mxu0 0
        %3308 = vmatpush1.bf16.msra.mxu0 0
        %3309 = vmatprep.subr.bf16.mxu0 0
        %3310 = vmatpush1.bf16.msra.mxu0 0
        %3311 = vmatprep.subr.bf16.mxu0 0
        %3312 = vmatpush1.bf16.msra.mxu0 0
        %3313 = vmatprep.subr.bf16.mxu0 0
        %3314 = vmatpush1.bf16.msra.mxu0 0
        %3315 = vmatprep.subr.bf16.mxu0 0
        %3316 = vmatpush1.bf16.msra.mxu0 0
        %3317 = vmatprep.subr.bf16.mxu0 0
        %3318 = vmatpush1.bf16.msra.mxu0 0
        %3319 = vmatprep.subr.bf16.mxu0 0
        %3320 = vmatpush1.bf16.msra.mxu0 0
        %3321 = vmatprep.subr.bf16.mxu0 0
        %3322 = vmatpush1.bf16.msra.mxu0 0
        %3323 = vmatprep.mubr.bf16.mxu0 0
        %3324 = vmatmul.mubr.bf16.gmra.mrb[0].mxu0 %v3286
        %v3325 = vpop.f32.mrb[0].mxu0
        %v3326 = vadd.f32 0.0, %v3325
        %v3327 = vpop.f32.mrb[0].mxu0
        %v3328 = vpop.f32.mrb[0].mxu0
        %v3329 = vpop.f32.mrb[0].mxu0
        %3330 = vdwg.mxu0
        %v3332 = vsel %vm355, %v3276, 0
        %v3335 = vsel %vm359, %v3278, 0
        %3337 = vmatprep.subr.bf16.mxu0 0
        %3338 = vmatpush1.bf16.msra.mxu0 %v3335
        %3339 = vmatprep.subr.bf16.mxu0 0
        %3340 = vmatpush1.bf16.msra.mxu0 0
        %3341 = vmatprep.subr.bf16.mxu0 0
        %3342 = vmatpush1.bf16.msra.mxu0 0
        %3343 = vmatprep.subr.bf16.mxu0 0
        %3344 = vmatpush1.bf16.msra.mxu0 0
        %3345 = vmatprep.subr.bf16.mxu0 0
        %3346 = vmatpush1.bf16.msra.mxu0 0
        %3347 = vmatprep.subr.bf16.mxu0 0
        %3348 = vmatpush1.bf16.msra.mxu0 0
        %3349 = vmatprep.subr.bf16.mxu0 0
        %3350 = vmatpush1.bf16.msra.mxu0 0
        %3351 = vmatprep.subr.bf16.mxu0 0
        %3352 = vmatpush1.bf16.msra.mxu0 0
        %3353 = vmatprep.subr.bf16.mxu0 0
        %3354 = vmatpush1.bf16.msra.mxu0 0
        %3355 = vmatprep.subr.bf16.mxu0 0
        %3356 = vmatpush1.bf16.msra.mxu0 0
        %3357 = vmatprep.subr.bf16.mxu0 0
        %3358 = vmatpush1.bf16.msra.mxu0 0
        %3359 = vmatprep.subr.bf16.mxu0 0
        %3360 = vmatpush1.bf16.msra.mxu0 0
        %3361 = vmatprep.subr.bf16.mxu0 0
        %3362 = vmatpush1.bf16.msra.mxu0 0
        %3363 = vmatprep.subr.bf16.mxu0 0
        %3364 = vmatpush1.bf16.msra.mxu0 0
        %3365 = vmatprep.subr.bf16.mxu0 0
        %3366 = vmatpush1.bf16.msra.mxu0 0
        %3367 = vmatprep.subr.bf16.mxu0 0
        %3368 = vmatpush1.bf16.msra.mxu0 0
        %3369 = vmatprep.mubr.bf16.mxu0 0
        %3370 = vmatmul.mubr.bf16.gmra.mrb[0].mxu0 %v3332
        %v3371 = vpop.f32.mrb[0].mxu0
        %v3372 = vadd.f32 %v3326, %v3371
        %v3373 = vpop.f32.mrb[0].mxu0
        %v3374 = vpop.f32.mrb[0].mxu0
        %v3375 = vpop.f32.mrb[0].mxu0
        %3376 = vdwg.mxu0
        %v3377 = vld [vmem:[%s449] sm:$0x3]
        %v3379 = vunpack.c.l.b16 %v3277
        %v3380 = vpack.c.b16 %v3379, %v3281
        %v3382 = vshrl.u32 %v3380, 16
        %v3384 = vshll.u32 %v3380, 16
        %v3386 = vrot.slane %v3384, 1
        %v3387 = vor.u32 %v3382, %v3386
        %v3389 = vsel %vm355, %v3387, 0
        %v3392 = vsel %vm359, %v3377, 0
        %3394 = vmatprep.subr.bf16.mxu0 0
        %3395 = vmatpush1.bf16.msra.mxu0 %v3392
        %3396 = vmatprep.subr.bf16.mxu0 0
        %3397 = vmatpush1.bf16.msra.mxu0 0
        %3398 = vmatprep.subr.bf16.mxu0 0
        %3399 = vmatpush1.bf16.msra.mxu0 0
        %3400 = vmatprep.subr.bf16.mxu0 0
        %3401 = vmatpush1.bf16.msra.mxu0 0
        %3402 = vmatprep.subr.bf16.mxu0 0
        %3403 = vmatpush1.bf16.msra.mxu0 0
        %3404 = vmatprep.subr.bf16.mxu0 0
        %3405 = vmatpush1.bf16.msra.mxu0 0
        %3406 = vmatprep.subr.bf16.mxu0 0
        %3407 = vmatpush1.bf16.msra.mxu0 0
        %3408 = vmatprep.subr.bf16.mxu0 0
        %3409 = vmatpush1.bf16.msra.mxu0 0
        %3410 = vmatprep.subr.bf16.mxu0 0
        %3411 = vmatpush1.bf16.msra.mxu0 0
        %3412 = vmatprep.subr.bf16.mxu0 0
        %3413 = vmatpush1.bf16.msra.mxu0 0
        %3414 = vmatprep.subr.bf16.mxu0 0
        %3415 = vmatpush1.bf16.msra.mxu0 0
        %3416 = vmatprep.subr.bf16.mxu0 0
        %3417 = vmatpush1.bf16.msra.mxu0 0
        %3418 = vmatprep.subr.bf16.mxu0 0
        %3419 = vmatpush1.bf16.msra.mxu0 0
        %3420 = vmatprep.subr.bf16.mxu0 0
        %3421 = vmatpush1.bf16.msra.mxu0 0
        %3422 = vmatprep.subr.bf16.mxu0 0
        %3423 = vmatpush1.bf16.msra.mxu0 0
        %3424 = vmatprep.subr.bf16.mxu0 0
        %3425 = vmatpush1.bf16.msra.mxu0 0
        %3426 = vmatprep.mubr.bf16.mxu0 0
        %3427 = vmatmul.mubr.bf16.gmra.mrb[0].mxu0 %v3389
        %v3428 = vpop.f32.mrb[0].mxu0
        %v3429 = vadd.f32 0.0, %v3428
        %v3430 = vpop.f32.mrb[0].mxu0
        %v3431 = vpop.f32.mrb[0].mxu0
        %v3432 = vpop.f32.mrb[0].mxu0
        %3433 = vdwg.mxu0
        %v3434 = vadd.f32 %v3372, %v3429
        %s3435 = scalar_lea.vmem %s315, 104
        %v3436 = vld [vmem:[%s3435] sm:$0xf]
        %v3437 = vld [vmem:[%s3435 + $0x4] sm:$0x1]
        %v3438 = vld [vmem:[%s511] sm:$0x3]
        %v3440 = vsel %vm355, %v3436, 0
        %v3443 = vsel %vm359, %v3438, 0
        %3445 = vmatprep.subr.bf16.mxu0 0
        %3446 = vmatpush1.bf16.msra.mxu0 %v3443
        %3447 = vmatprep.subr.bf16.mxu0 0
        %3448 = vmatpush1.bf16.msra.mxu0 0
        %3449 = vmatprep.subr.bf16.mxu0 0
        %3450 = vmatpush1.bf16.msra.mxu0 0
        %3451 = vmatprep.subr.bf16.mxu0 0
        %3452 = vmatpush1.bf16.msra.mxu0 0
        %3453 = vmatprep.subr.bf16.mxu0 0
        %3454 = vmatpush1.bf16.msra.mxu0 0
        %3455 = vmatprep.subr.bf16.mxu0 0
        %3456 = vmatpush1.bf16.msra.mxu0 0
        %3457 = vmatprep.subr.bf16.mxu0 0
        %3458 = vmatpush1.bf16.msra.mxu0 0
        %3459 = vmatprep.subr.bf16.mxu0 0
        %3460 = vmatpush1.bf16.msra.mxu0 0
        %3461 = vmatprep.subr.bf16.mxu0 0
        %3462 = vmatpush1.bf16.msra.mxu0 0
        %3463 = vmatprep.subr.bf16.mxu0 0
        %3464 = vmatpush1.bf16.msra.mxu0 0
        %3465 = vmatprep.subr.bf16.mxu0 0
        %3466 = vmatpush1.bf16.msra.mxu0 0
        %3467 = vmatprep.subr.bf16.mxu0 0
        %3468 = vmatpush1.bf16.msra.mxu0 0
        %3469 = vmatprep.subr.bf16.mxu0 0
        %3470 = vmatpush1.bf16.msra.mxu0 0
        %3471 = vmatprep.subr.bf16.mxu0 0
        %3472 = vmatpush1.bf16.msra.mxu0 0
        %3473 = vmatprep.subr.bf16.mxu0 0
        %3474 = vmatpush1.bf16.msra.mxu0 0
        %3475 = vmatprep.subr.bf16.mxu0 0
        %3476 = vmatpush1.bf16.msra.mxu0 0
        %3477 = vmatprep.mubr.bf16.mxu0 0
        %3478 = vmatmul.mubr.bf16.gmra.mrb[0].mxu0 %v3440
        %v3479 = vpop.f32.mrb[0].mxu0
        %v3480 = vadd.f32 0.0, %v3479
        %v3481 = vpop.f32.mrb[0].mxu0
        %v3482 = vpop.f32.mrb[0].mxu0
        %v3483 = vpop.f32.mrb[0].mxu0
        %3484 = vdwg.mxu0
        %v3485 = vadd.f32 %v3434, %v3480
        %v3486 = vld [vmem:[%s560] sm:$0x3]
        %v3488 = vunpack.c.l.b16 %v3436
        %v3489 = vpack.c.b16 %v3488, %v3488
        %3490 = vrot.lane.b32.xlu0 %v3489, 124
        %v3491 = vpop.permute.xlu0 %3490
        %v3493 = vsel %vm355, %v3491, 0
        %v3496 = vsel %vm359, %v3486, 0
        %3498 = vmatprep.subr.bf16.mxu0 0
        %3499 = vmatpush1.bf16.msra.mxu0 %v3496
        %3500 = vmatprep.subr.bf16.mxu0 0
        %3501 = vmatpush1.bf16.msra.mxu0 0
        %3502 = vmatprep.subr.bf16.mxu0 0
        %3503 = vmatpush1.bf16.msra.mxu0 0
        %3504 = vmatprep.subr.bf16.mxu0 0
        %3505 = vmatpush1.bf16.msra.mxu0 0
        %3506 = vmatprep.subr.bf16.mxu0 0
        %3507 = vmatpush1.bf16.msra.mxu0 0
        %3508 = vmatprep.subr.bf16.mxu0 0
        %3509 = vmatpush1.bf16.msra.mxu0 0
        %3510 = vmatprep.subr.bf16.mxu0 0
        %3511 = vmatpush1.bf16.msra.mxu0 0
        %3512 = vmatprep.subr.bf16.mxu0 0
        %3513 = vmatpush1.bf16.msra.mxu0 0
        %3514 = vmatprep.subr.bf16.mxu0 0
        %3515 = vmatpush1.bf16.msra.mxu0 0
        %3516 = vmatprep.subr.bf16.mxu0 0
        %3517 = vmatpush1.bf16.msra.mxu0 0
        %3518 = vmatprep.subr.bf16.mxu0 0
        %3519 = vmatpush1.bf16.msra.mxu0 0
        %3520 = vmatprep.subr.bf16.mxu0 0
        %3521 = vmatpush1.bf16.msra.mxu0 0
        %3522 = vmatprep.subr.bf16.mxu0 0
        %3523 = vmatpush1.bf16.msra.mxu0 0
        %3524 = vmatprep.subr.bf16.mxu0 0
        %3525 = vmatpush1.bf16.msra.mxu0 0
        %3526 = vmatprep.subr.bf16.mxu0 0
        %3527 = vmatpush1.bf16.msra.mxu0 0
        %3528 = vmatprep.subr.bf16.mxu0 0
        %3529 = vmatpush1.bf16.msra.mxu0 0
        %3530 = vmatprep.mubr.bf16.mxu0 0
        %3531 = vmatmul.mubr.bf16.gmra.mrb[0].mxu0 %v3493
        %v3532 = vpop.f32.mrb[0].mxu0
        %v3533 = vadd.f32 0.0, %v3532
        %v3534 = vpop.f32.mrb[0].mxu0
        %v3535 = vpop.f32.mrb[0].mxu0
        %v3536 = vpop.f32.mrb[0].mxu0
        %3537 = vdwg.mxu0
        %v3538 = vadd.f32 %v3485, %v3533
        %v3539 = vld [vmem:[%s614] sm:$0x3]
        %v3541 = vunpack.c.l.b16 %v3437
        %v3542 = vpack.c.b16 %v3541, %v3488
        %v3544 = vshrl.u32 %v3542, 16
        %v3546 = vshll.u32 %v3542, 16
        %v3548 = vrot.slane %v3546, 1
        %v3549 = vor.u32 %v3544, %v3548
        %v3551 = vsel %vm355, %v3549, 0
        %v3554 = vsel %vm359, %v3539, 0
        %3556 = vmatprep.subr.bf16.mxu0 0
        %3557 = vmatpush1.bf16.msra.mxu0 %v3554
        %3558 = vmatprep.subr.bf16.mxu0 0
        %3559 = vmatpush1.bf16.msra.mxu0 0
        %3560 = vmatprep.subr.bf16.mxu0 0
        %3561 = vmatpush1.bf16.msra.mxu0 0
        %3562 = vmatprep.subr.bf16.mxu0 0
        %3563 = vmatpush1.bf16.msra.mxu0 0
        %3564 = vmatprep.subr.bf16.mxu0 0
        %3565 = vmatpush1.bf16.msra.mxu0 0
        %3566 = vmatprep.subr.bf16.mxu0 0
        %3567 = vmatpush1.bf16.msra.mxu0 0
        %3568 = vmatprep.subr.bf16.mxu0 0
        %3569 = vmatpush1.bf16.msra.mxu0 0
        %3570 = vmatprep.subr.bf16.mxu0 0
        %3571 = vmatpush1.bf16.msra.mxu0 0
        %3572 = vmatprep.subr.bf16.mxu0 0
        %3573 = vmatpush1.bf16.msra.mxu0 0
        %3574 = vmatprep.subr.bf16.mxu0 0
        %3575 = vmatpush1.bf16.msra.mxu0 0
        %3576 = vmatprep.subr.bf16.mxu0 0
        %3577 = vmatpush1.bf16.msra.mxu0 0
        %3578 = vmatprep.subr.bf16.mxu0 0
        %3579 = vmatpush1.bf16.msra.mxu0 0
        %3580 = vmatprep.subr.bf16.mxu0 0
        %3581 = vmatpush1.bf16.msra.mxu0 0
        %3582 = vmatprep.subr.bf16.mxu0 0
        %3583 = vmatpush1.bf16.msra.mxu0 0
        %3584 = vmatprep.subr.bf16.mxu0 0
        %3585 = vmatpush1.bf16.msra.mxu0 0
        %3586 = vmatprep.subr.bf16.mxu0 0
        %3587 = vmatpush1.bf16.msra.mxu0 0
        %3588 = vmatprep.mubr.bf16.mxu0 0
        %3589 = vmatmul.mubr.bf16.gmra.mrb[0].mxu0 %v3551
        %v3590 = vpop.f32.mrb[0].mxu0
        %v3591 = vadd.f32 0.0, %v3590
        %v3592 = vpop.f32.mrb[0].mxu0
        %v3593 = vpop.f32.mrb[0].mxu0
        %v3594 = vpop.f32.mrb[0].mxu0
        %3595 = vdwg.mxu0
        %v3596 = vadd.f32 %v3538, %v3591
        %s3597 = scalar_lea.vmem %s315, 112
        %v3598 = vld [vmem:[%s3597] sm:$0xf]
        %v3599 = vld [vmem:[%s3597 + $0x4] sm:$0x1]
        %v3600 = vld [vmem:[%s676] sm:$0x3]
        %v3602 = vsel %vm355, %v3598, 0
        %v3605 = vsel %vm359, %v3600, 0
        %3607 = vmatprep.subr.bf16.mxu0 0
        %3608 = vmatpush1.bf16.msra.mxu0 %v3605
        %3609 = vmatprep.subr.bf16.mxu0 0
        %3610 = vmatpush1.bf16.msra.mxu0 0
        %3611 = vmatprep.subr.bf16.mxu0 0
        %3612 = vmatpush1.bf16.msra.mxu0 0
        %3613 = vmatprep.subr.bf16.mxu0 0
        %3614 = vmatpush1.bf16.msra.mxu0 0
        %3615 = vmatprep.subr.bf16.mxu0 0
        %3616 = vmatpush1.bf16.msra.mxu0 0
        %3617 = vmatprep.subr.bf16.mxu0 0
        %3618 = vmatpush1.bf16.msra.mxu0 0
        %3619 = vmatprep.subr.bf16.mxu0 0
        %3620 = vmatpush1.bf16.msra.mxu0 0
        %3621 = vmatprep.subr.bf16.mxu0 0
        %3622 = vmatpush1.bf16.msra.mxu0 0
        %3623 = vmatprep.subr.bf16.mxu0 0
        %3624 = vmatpush1.bf16.msra.mxu0 0
        %3625 = vmatprep.subr.bf16.mxu0 0
        %3626 = vmatpush1.bf16.msra.mxu0 0
        %3627 = vmatprep.subr.bf16.mxu0 0
        %3628 = vmatpush1.bf16.msra.mxu0 0
        %3629 = vmatprep.subr.bf16.mxu0 0
        %3630 = vmatpush1.bf16.msra.mxu0 0
        %3631 = vmatprep.subr.bf16.mxu0 0
        %3632 = vmatpush1.bf16.msra.mxu0 0
        %3633 = vmatprep.subr.bf16.mxu0 0
        %3634 = vmatpush1.bf16.msra.mxu0 0
        %3635 = vmatprep.subr.bf16.mxu0 0
        %3636 = vmatpush1.bf16.msra.mxu0 0
        %3637 = vmatprep.subr.bf16.mxu0 0
        %3638 = vmatpush1.bf16.msra.mxu0 0
        %3639 = vmatprep.mubr.bf16.mxu0 0
        %3640 = vmatmul.mubr.bf16.gmra.mrb[0].mxu0 %v3602
        %v3641 = vpop.f32.mrb[0].mxu0
        %v3642 = vadd.f32 0.0, %v3641
        %v3643 = vpop.f32.mrb[0].mxu0
        %v3644 = vpop.f32.mrb[0].mxu0
        %v3645 = vpop.f32.mrb[0].mxu0
        %3646 = vdwg.mxu0
        %v3647 = vadd.f32 %v3596, %v3642
        %v3648 = vld [vmem:[%s725] sm:$0x3]
        %v3650 = vunpack.c.l.b16 %v3598
        %v3651 = vpack.c.b16 %v3650, %v3650
        %3652 = vrot.lane.b32.xlu0 %v3651, 124
        %v3653 = vpop.permute.xlu0 %3652
        %v3655 = vsel %vm355, %v3653, 0
        %v3658 = vsel %vm359, %v3648, 0
        %3660 = vmatprep.subr.bf16.mxu0 0
        %3661 = vmatpush1.bf16.msra.mxu0 %v3658
        %3662 = vmatprep.subr.bf16.mxu0 0
        %3663 = vmatpush1.bf16.msra.mxu0 0
        %3664 = vmatprep.subr.bf16.mxu0 0
        %3665 = vmatpush1.bf16.msra.mxu0 0
        %3666 = vmatprep.subr.bf16.mxu0 0
        %3667 = vmatpush1.bf16.msra.mxu0 0
        %3668 = vmatprep.subr.bf16.mxu0 0
        %3669 = vmatpush1.bf16.msra.mxu0 0
        %3670 = vmatprep.subr.bf16.mxu0 0
        %3671 = vmatpush1.bf16.msra.mxu0 0
        %3672 = vmatprep.subr.bf16.mxu0 0
        %3673 = vmatpush1.bf16.msra.mxu0 0
        %3674 = vmatprep.subr.bf16.mxu0 0
        %3675 = vmatpush1.bf16.msra.mxu0 0
        %3676 = vmatprep.subr.bf16.mxu0 0
        %3677 = vmatpush1.bf16.msra.mxu0 0
        %3678 = vmatprep.subr.bf16.mxu0 0
        %3679 = vmatpush1.bf16.msra.mxu0 0
        %3680 = vmatprep.subr.bf16.mxu0 0
        %3681 = vmatpush1.bf16.msra.mxu0 0
        %3682 = vmatprep.subr.bf16.mxu0 0
        %3683 = vmatpush1.bf16.msra.mxu0 0
        %3684 = vmatprep.subr.bf16.mxu0 0
        %3685 = vmatpush1.bf16.msra.mxu0 0
        %3686 = vmatprep.subr.bf16.mxu0 0
        %3687 = vmatpush1.bf16.msra.mxu0 0
        %3688 = vmatprep.subr.bf16.mxu0 0
        %3689 = vmatpush1.bf16.msra.mxu0 0
        %3690 = vmatprep.subr.bf16.mxu0 0
        %3691 = vmatpush1.bf16.msra.mxu0 0
        %3692 = vmatprep.mubr.bf16.mxu0 0
        %3693 = vmatmul.mubr.bf16.gmra.mrb[0].mxu0 %v3655
        %v3694 = vpop.f32.mrb[0].mxu0
        %v3695 = vadd.f32 0.0, %v3694
        %v3696 = vpop.f32.mrb[0].mxu0
        %v3697 = vpop.f32.mrb[0].mxu0
        %v3698 = vpop.f32.mrb[0].mxu0
        %3699 = vdwg.mxu0
        %v3700 = vadd.f32 %v3647, %v3695
        %v3701 = vld [vmem:[%s779] sm:$0x3]
        %v3703 = vunpack.c.l.b16 %v3599
        %v3704 = vpack.c.b16 %v3703, %v3650
        %v3706 = vshrl.u32 %v3704, 16
        %v3708 = vshll.u32 %v3704, 16
        %v3710 = vrot.slane %v3708, 1
        %v3711 = vor.u32 %v3706, %v3710
        %v3713 = vsel %vm355, %v3711, 0
        %v3716 = vsel %vm359, %v3701, 0
        %3718 = vmatprep.subr.bf16.mxu0 0
        %3719 = vmatpush1.bf16.msra.mxu0 %v3716
        %3720 = vmatprep.subr.bf16.mxu0 0
        %3721 = vmatpush1.bf16.msra.mxu0 0
        %3722 = vmatprep.subr.bf16.mxu0 0
        %3723 = vmatpush1.bf16.msra.mxu0 0
        %3724 = vmatprep.subr.bf16.mxu0 0
        %3725 = vmatpush1.bf16.msra.mxu0 0
        %3726 = vmatprep.subr.bf16.mxu0 0
        %3727 = vmatpush1.bf16.msra.mxu0 0
        %3728 = vmatprep.subr.bf16.mxu0 0
        %3729 = vmatpush1.bf16.msra.mxu0 0
        %3730 = vmatprep.subr.bf16.mxu0 0
        %3731 = vmatpush1.bf16.msra.mxu0 0
        %3732 = vmatprep.subr.bf16.mxu0 0
        %3733 = vmatpush1.bf16.msra.mxu0 0
        %3734 = vmatprep.subr.bf16.mxu0 0
        %3735 = vmatpush1.bf16.msra.mxu0 0
        %3736 = vmatprep.subr.bf16.mxu0 0
        %3737 = vmatpush1.bf16.msra.mxu0 0
        %3738 = vmatprep.subr.bf16.mxu0 0
        %3739 = vmatpush1.bf16.msra.mxu0 0
        %3740 = vmatprep.subr.bf16.mxu0 0
        %3741 = vmatpush1.bf16.msra.mxu0 0
        %3742 = vmatprep.subr.bf16.mxu0 0
        %3743 = vmatpush1.bf16.msra.mxu0 0
        %3744 = vmatprep.subr.bf16.mxu0 0
        %3745 = vmatpush1.bf16.msra.mxu0 0
        %3746 = vmatprep.subr.bf16.mxu0 0
        %3747 = vmatpush1.bf16.msra.mxu0 0
        %3748 = vmatprep.subr.bf16.mxu0 0
        %3749 = vmatpush1.bf16.msra.mxu0 0
        %3750 = vmatprep.mubr.bf16.mxu0 0
        %3751 = vmatmul.mubr.bf16.gmra.mrb[0].mxu0 %v3713
        %v3752 = vpop.f32.mrb[0].mxu0
        %v3753 = vadd.f32 0.0, %v3752
        %v3754 = vpop.f32.mrb[0].mxu0
        %v3755 = vpop.f32.mrb[0].mxu0
        %v3756 = vpop.f32.mrb[0].mxu0
        %3757 = vdwg.mxu0
        %v3758 = vadd.f32 %v3700, %v3753
        %v3759 = vadd.f32 %v3758, %v842
        %s3760 = scalar_lea.vmem %s300, 48 [#allocation2]
        %3761 = vst [vmem:[%s3760] sm:$0xff] %v3759
        %v3762 = vld [vmem:[%s3597] sm:$0xf]
        %v3763 = vld [vmem:[%s3597 + $0x4] sm:$0x1]
        %v3764 = vld [vmem:[%s338] sm:$0x3]
        %v3765 = vld [vmem:[%s348] sm:$0x3]
        %v3767 = vunpack.c.l.b16 %v3762
        %v3768 = vpack.c.b16 %v3767, %v3767
        %3769 = vrot.lane.b32.xlu0 %v3768, 124
        %v3770 = vpop.permute.xlu0 %3769
        %v3772 = vsel %vm355, %v3770, 0
        %v3775 = vsel %vm359, %v3765, 0
        %3777 = vmatprep.subr.bf16.mxu0 0
        %3778 = vmatpush1.bf16.msra.mxu0 %v3775
        %3779 = vmatprep.subr.bf16.mxu0 0
        %3780 = vmatpush1.bf16.msra.mxu0 0
        %3781 = vmatprep.subr.bf16.mxu0 0
        %3782 = vmatpush1.bf16.msra.mxu0 0
        %3783 = vmatprep.subr.bf16.mxu0 0
        %3784 = vmatpush1.bf16.msra.mxu0 0
        %3785 = vmatprep.subr.bf16.mxu0 0
        %3786 = vmatpush1.bf16.msra.mxu0 0
        %3787 = vmatprep.subr.bf16.mxu0 0
        %3788 = vmatpush1.bf16.msra.mxu0 0
        %3789 = vmatprep.subr.bf16.mxu0 0
        %3790 = vmatpush1.bf16.msra.mxu0 0
        %3791 = vmatprep.subr.bf16.mxu0 0
        %3792 = vmatpush1.bf16.msra.mxu0 0
        %3793 = vmatprep.subr.bf16.mxu0 0
        %3794 = vmatpush1.bf16.msra.mxu0 0
        %3795 = vmatprep.subr.bf16.mxu0 0
        %3796 = vmatpush1.bf16.msra.mxu0 0
        %3797 = vmatprep.subr.bf16.mxu0 0
        %3798 = vmatpush1.bf16.msra.mxu0 0
        %3799 = vmatprep.subr.bf16.mxu0 0
        %3800 = vmatpush1.bf16.msra.mxu0 0
        %3801 = vmatprep.subr.bf16.mxu0 0
        %3802 = vmatpush1.bf16.msra.mxu0 0
        %3803 = vmatprep.subr.bf16.mxu0 0
        %3804 = vmatpush1.bf16.msra.mxu0 0
        %3805 = vmatprep.subr.bf16.mxu0 0
        %3806 = vmatpush1.bf16.msra.mxu0 0
        %3807 = vmatprep.subr.bf16.mxu0 0
        %3808 = vmatpush1.bf16.msra.mxu0 0
        %3809 = vmatprep.mubr.bf16.mxu0 0
        %3810 = vmatmul.mubr.bf16.gmra.mrb[0].mxu0 %v3772
        %v3811 = vpop.f32.mrb[0].mxu0
        %v3812 = vadd.f32 0.0, %v3811
        %v3813 = vpop.f32.mrb[0].mxu0
        %v3814 = vpop.f32.mrb[0].mxu0
        %v3815 = vpop.f32.mrb[0].mxu0
        %3816 = vdwg.mxu0
        %v3818 = vsel %vm355, %v3762, 0
        %v3821 = vsel %vm359, %v3764, 0
        %3823 = vmatprep.subr.bf16.mxu0 0
        %3824 = vmatpush1.bf16.msra.mxu0 %v3821
        %3825 = vmatprep.subr.bf16.mxu0 0
        %3826 = vmatpush1.bf16.msra.mxu0 0
        %3827 = vmatprep.subr.bf16.mxu0 0
        %3828 = vmatpush1.bf16.msra.mxu0 0
        %3829 = vmatprep.subr.bf16.mxu0 0
        %3830 = vmatpush1.bf16.msra.mxu0 0
        %3831 = vmatprep.subr.bf16.mxu0 0
        %3832 = vmatpush1.bf16.msra.mxu0 0
        %3833 = vmatprep.subr.bf16.mxu0 0
        %3834 = vmatpush1.bf16.msra.mxu0 0
        %3835 = vmatprep.subr.bf16.mxu0 0
        %3836 = vmatpush1.bf16.msra.mxu0 0
        %3837 = vmatprep.subr.bf16.mxu0 0
        %3838 = vmatpush1.bf16.msra.mxu0 0
        %3839 = vmatprep.subr.bf16.mxu0 0
        %3840 = vmatpush1.bf16.msra.mxu0 0
        %3841 = vmatprep.subr.bf16.mxu0 0
        %3842 = vmatpush1.bf16.msra.mxu0 0
        %3843 = vmatprep.subr.bf16.mxu0 0
        %3844 = vmatpush1.bf16.msra.mxu0 0
        %3845 = vmatprep.subr.bf16.mxu0 0
        %3846 = vmatpush1.bf16.msra.mxu0 0
        %3847 = vmatprep.subr.bf16.mxu0 0
        %3848 = vmatpush1.bf16.msra.mxu0 0
        %3849 = vmatprep.subr.bf16.mxu0 0
        %3850 = vmatpush1.bf16.msra.mxu0 0
        %3851 = vmatprep.subr.bf16.mxu0 0
        %3852 = vmatpush1.bf16.msra.mxu0 0
        %3853 = vmatprep.subr.bf16.mxu0 0
        %3854 = vmatpush1.bf16.msra.mxu0 0
        %3855 = vmatprep.mubr.bf16.mxu0 0
        %3856 = vmatmul.mubr.bf16.gmra.mrb[0].mxu0 %v3818
        %v3857 = vpop.f32.mrb[0].mxu0
        %v3858 = vadd.f32 %v3812, %v3857
        %v3859 = vpop.f32.mrb[0].mxu0
        %v3860 = vpop.f32.mrb[0].mxu0
        %v3861 = vpop.f32.mrb[0].mxu0
        %3862 = vdwg.mxu0
        %v3863 = vld [vmem:[%s449] sm:$0x3]
        %v3865 = vunpack.c.l.b16 %v3763
        %v3866 = vpack.c.b16 %v3865, %v3767
        %v3868 = vshrl.u32 %v3866, 16
        %v3870 = vshll.u32 %v3866, 16
        %v3872 = vrot.slane %v3870, 1
        %v3873 = vor.u32 %v3868, %v3872
        %v3875 = vsel %vm355, %v3873, 0
        %v3878 = vsel %vm359, %v3863, 0
        %3880 = vmatprep.subr.bf16.mxu0 0
        %3881 = vmatpush1.bf16.msra.mxu0 %v3878
        %3882 = vmatprep.subr.bf16.mxu0 0
        %3883 = vmatpush1.bf16.msra.mxu0 0
        %3884 = vmatprep.subr.bf16.mxu0 0
        %3885 = vmatpush1.bf16.msra.mxu0 0
        %3886 = vmatprep.subr.bf16.mxu0 0
        %3887 = vmatpush1.bf16.msra.mxu0 0
        %3888 = vmatprep.subr.bf16.mxu0 0
        %3889 = vmatpush1.bf16.msra.mxu0 0
        %3890 = vmatprep.subr.bf16.mxu0 0
        %3891 = vmatpush1.bf16.msra.mxu0 0
        %3892 = vmatprep.subr.bf16.mxu0 0
        %3893 = vmatpush1.bf16.msra.mxu0 0
        %3894 = vmatprep.subr.bf16.mxu0 0
        %3895 = vmatpush1.bf16.msra.mxu0 0
        %3896 = vmatprep.subr.bf16.mxu0 0
        %3897 = vmatpush1.bf16.msra.mxu0 0
        %3898 = vmatprep.subr.bf16.mxu0 0
        %3899 = vmatpush1.bf16.msra.mxu0 0
        %3900 = vmatprep.subr.bf16.mxu0 0
        %3901 = vmatpush1.bf16.msra.mxu0 0
        %3902 = vmatprep.subr.bf16.mxu0 0
        %3903 = vmatpush1.bf16.msra.mxu0 0
        %3904 = vmatprep.subr.bf16.mxu0 0
        %3905 = vmatpush1.bf16.msra.mxu0 0
        %3906 = vmatprep.subr.bf16.mxu0 0
        %3907 = vmatpush1.bf16.msra.mxu0 0
        %3908 = vmatprep.subr.bf16.mxu0 0
        %3909 = vmatpush1.bf16.msra.mxu0 0
        %3910 = vmatprep.subr.bf16.mxu0 0
        %3911 = vmatpush1.bf16.msra.mxu0 0
        %3912 = vmatprep.mubr.bf16.mxu0 0
        %3913 = vmatmul.mubr.bf16.gmra.mrb[0].mxu0 %v3875
        %v3914 = vpop.f32.mrb[0].mxu0
        %v3915 = vadd.f32 0.0, %v3914
        %v3916 = vpop.f32.mrb[0].mxu0
        %v3917 = vpop.f32.mrb[0].mxu0
        %v3918 = vpop.f32.mrb[0].mxu0
        %3919 = vdwg.mxu0
        %v3920 = vadd.f32 %v3858, %v3915
        %s3921 = scalar_lea.vmem %s315, 120
        %v3922 = vld [vmem:[%s3921] sm:$0xf]
        %v3923 = vld [vmem:[%s3921 + $0x4] sm:$0x1]
        %v3924 = vld [vmem:[%s511] sm:$0x3]
        %v3926 = vsel %vm355, %v3922, 0
        %v3929 = vsel %vm359, %v3924, 0
        %3931 = vmatprep.subr.bf16.mxu0 0
        %3932 = vmatpush1.bf16.msra.mxu0 %v3929
        %3933 = vmatprep.subr.bf16.mxu0 0
        %3934 = vmatpush1.bf16.msra.mxu0 0
        %3935 = vmatprep.subr.bf16.mxu0 0
        %3936 = vmatpush1.bf16.msra.mxu0 0
        %3937 = vmatprep.subr.bf16.mxu0 0
        %3938 = vmatpush1.bf16.msra.mxu0 0
        %3939 = vmatprep.subr.bf16.mxu0 0
        %3940 = vmatpush1.bf16.msra.mxu0 0
        %3941 = vmatprep.subr.bf16.mxu0 0
        %3942 = vmatpush1.bf16.msra.mxu0 0
        %3943 = vmatprep.subr.bf16.mxu0 0
        %3944 = vmatpush1.bf16.msra.mxu0 0
        %3945 = vmatprep.subr.bf16.mxu0 0
        %3946 = vmatpush1.bf16.msra.mxu0 0
        %3947 = vmatprep.subr.bf16.mxu0 0
        %3948 = vmatpush1.bf16.msra.mxu0 0
        %3949 = vmatprep.subr.bf16.mxu0 0
        %3950 = vmatpush1.bf16.msra.mxu0 0
        %3951 = vmatprep.subr.bf16.mxu0 0
        %3952 = vmatpush1.bf16.msra.mxu0 0
        %3953 = vmatprep.subr.bf16.mxu0 0
        %3954 = vmatpush1.bf16.msra.mxu0 0
        %3955 = vmatprep.subr.bf16.mxu0 0
        %3956 = vmatpush1.bf16.msra.mxu0 0
        %3957 = vmatprep.subr.bf16.mxu0 0
        %3958 = vmatpush1.bf16.msra.mxu0 0
        %3959 = vmatprep.subr.bf16.mxu0 0
        %3960 = vmatpush1.bf16.msra.mxu0 0
        %3961 = vmatprep.subr.bf16.mxu0 0
        %3962 = vmatpush1.bf16.msra.mxu0 0
        %3963 = vmatprep.mubr.bf16.mxu0 0
        %3964 = vmatmul.mubr.bf16.gmra.mrb[0].mxu0 %v3926
        %v3965 = vpop.f32.mrb[0].mxu0
        %v3966 = vadd.f32 0.0, %v3965
        %v3967 = vpop.f32.mrb[0].mxu0
        %v3968 = vpop.f32.mrb[0].mxu0
        %v3969 = vpop.f32.mrb[0].mxu0
        %3970 = vdwg.mxu0
        %v3971 = vadd.f32 %v3920, %v3966
        %v3972 = vld [vmem:[%s560] sm:$0x3]
        %v3974 = vunpack.c.l.b16 %v3922
        %v3975 = vpack.c.b16 %v3974, %v3974
        %3976 = vrot.lane.b32.xlu0 %v3975, 124
        %v3977 = vpop.permute.xlu0 %3976
        %v3979 = vsel %vm355, %v3977, 0
        %v3982 = vsel %vm359, %v3972, 0
        %3984 = vmatprep.subr.bf16.mxu0 0
        %3985 = vmatpush1.bf16.msra.mxu0 %v3982
        %3986 = vmatprep.subr.bf16.mxu0 0
        %3987 = vmatpush1.bf16.msra.mxu0 0
        %3988 = vmatprep.subr.bf16.mxu0 0
        %3989 = vmatpush1.bf16.msra.mxu0 0
        %3990 = vmatprep.subr.bf16.mxu0 0
        %3991 = vmatpush1.bf16.msra.mxu0 0
        %3992 = vmatprep.subr.bf16.mxu0 0
        %3993 = vmatpush1.bf16.msra.mxu0 0
        %3994 = vmatprep.subr.bf16.mxu0 0
        %3995 = vmatpush1.bf16.msra.mxu0 0
        %3996 = vmatprep.subr.bf16.mxu0 0
        %3997 = vmatpush1.bf16.msra.mxu0 0
        %3998 = vmatprep.subr.bf16.mxu0 0
        %3999 = vmatpush1.bf16.msra.mxu0 0
        %4000 = vmatprep.subr.bf16.mxu0 0
        %4001 = vmatpush1.bf16.msra.mxu0 0
        %4002 = vmatprep.subr.bf16.mxu0 0
        %4003 = vmatpush1.bf16.msra.mxu0 0
        %4004 = vmatprep.subr.bf16.mxu0 0
        %4005 = vmatpush1.bf16.msra.mxu0 0
        %4006 = vmatprep.subr.bf16.mxu0 0
        %4007 = vmatpush1.bf16.msra.mxu0 0
        %4008 = vmatprep.subr.bf16.mxu0 0
        %4009 = vmatpush1.bf16.msra.mxu0 0
        %4010 = vmatprep.subr.bf16.mxu0 0
        %4011 = vmatpush1.bf16.msra.mxu0 0
        %4012 = vmatprep.subr.bf16.mxu0 0
        %4013 = vmatpush1.bf16.msra.mxu0 0
        %4014 = vmatprep.subr.bf16.mxu0 0
        %4015 = vmatpush1.bf16.msra.mxu0 0
        %4016 = vmatprep.mubr.bf16.mxu0 0
        %4017 = vmatmul.mubr.bf16.gmra.mrb[0].mxu0 %v3979
        %v4018 = vpop.f32.mrb[0].mxu0
        %v4019 = vadd.f32 0.0, %v4018
        %v4020 = vpop.f32.mrb[0].mxu0
        %v4021 = vpop.f32.mrb[0].mxu0
        %v4022 = vpop.f32.mrb[0].mxu0
        %4023 = vdwg.mxu0
        %v4024 = vadd.f32 %v3971, %v4019
        %v4025 = vld [vmem:[%s614] sm:$0x3]
        %v4027 = vunpack.c.l.b16 %v3923
        %v4028 = vpack.c.b16 %v4027, %v3974
        %v4030 = vshrl.u32 %v4028, 16
        %v4032 = vshll.u32 %v4028, 16
        %v4034 = vrot.slane %v4032, 1
        %v4035 = vor.u32 %v4030, %v4034
        %v4037 = vsel %vm355, %v4035, 0
        %v4040 = vsel %vm359, %v4025, 0
        %4042 = vmatprep.subr.bf16.mxu0 0
        %4043 = vmatpush1.bf16.msra.mxu0 %v4040
        %4044 = vmatprep.subr.bf16.mxu0 0
        %4045 = vmatpush1.bf16.msra.mxu0 0
        %4046 = vmatprep.subr.bf16.mxu0 0
        %4047 = vmatpush1.bf16.msra.mxu0 0
        %4048 = vmatprep.subr.bf16.mxu0 0
        %4049 = vmatpush1.bf16.msra.mxu0 0
        %4050 = vmatprep.subr.bf16.mxu0 0
        %4051 = vmatpush1.bf16.msra.mxu0 0
        %4052 = vmatprep.subr.bf16.mxu0 0
        %4053 = vmatpush1.bf16.msra.mxu0 0
        %4054 = vmatprep.subr.bf16.mxu0 0
        %4055 = vmatpush1.bf16.msra.mxu0 0
        %4056 = vmatprep.subr.bf16.mxu0 0
        %4057 = vmatpush1.bf16.msra.mxu0 0
        %4058 = vmatprep.subr.bf16.mxu0 0
        %4059 = vmatpush1.bf16.msra.mxu0 0
        %4060 = vmatprep.subr.bf16.mxu0 0
        %4061 = vmatpush1.bf16.msra.mxu0 0
        %4062 = vmatprep.subr.bf16.mxu0 0
        %4063 = vmatpush1.bf16.msra.mxu0 0
        %4064 = vmatprep.subr.bf16.mxu0 0
        %4065 = vmatpush1.bf16.msra.mxu0 0
        %4066 = vmatprep.subr.bf16.mxu0 0
        %4067 = vmatpush1.bf16.msra.mxu0 0
        %4068 = vmatprep.subr.bf16.mxu0 0
        %4069 = vmatpush1.bf16.msra.mxu0 0
        %4070 = vmatprep.subr.bf16.mxu0 0
        %4071 = vmatpush1.bf16.msra.mxu0 0
        %4072 = vmatprep.subr.bf16.mxu0 0
        %4073 = vmatpush1.bf16.msra.mxu0 0
        %4074 = vmatprep.mubr.bf16.mxu0 0
        %4075 = vmatmul.mubr.bf16.gmra.mrb[0].mxu0 %v4037
        %v4076 = vpop.f32.mrb[0].mxu0
        %v4077 = vadd.f32 0.0, %v4076
        %v4078 = vpop.f32.mrb[0].mxu0
        %v4079 = vpop.f32.mrb[0].mxu0
        %v4080 = vpop.f32.mrb[0].mxu0
        %4081 = vdwg.mxu0
        %v4082 = vadd.f32 %v4024, %v4077
        %v4083 = vld [vmem:[%s332] sm:$0xf]
        %v4084 = vld [vmem:[%s332 + $0x4] sm:$0x1]
        %v4085 = vld [vmem:[%s676] sm:$0x3]
        %v4087 = vsel %vm355, %v4083, 0
        %v4090 = vsel %vm359, %v4085, 0
        %4092 = vmatprep.subr.bf16.mxu0 0
        %4093 = vmatpush1.bf16.msra.mxu0 %v4090
        %4094 = vmatprep.subr.bf16.mxu0 0
        %4095 = vmatpush1.bf16.msra.mxu0 0
        %4096 = vmatprep.subr.bf16.mxu0 0
        %4097 = vmatpush1.bf16.msra.mxu0 0
        %4098 = vmatprep.subr.bf16.mxu0 0
        %4099 = vmatpush1.bf16.msra.mxu0 0
        %4100 = vmatprep.subr.bf16.mxu0 0
        %4101 = vmatpush1.bf16.msra.mxu0 0
        %4102 = vmatprep.subr.bf16.mxu0 0
        %4103 = vmatpush1.bf16.msra.mxu0 0
        %4104 = vmatprep.subr.bf16.mxu0 0
        %4105 = vmatpush1.bf16.msra.mxu0 0
        %4106 = vmatprep.subr.bf16.mxu0 0
        %4107 = vmatpush1.bf16.msra.mxu0 0
        %4108 = vmatprep.subr.bf16.mxu0 0
        %4109 = vmatpush1.bf16.msra.mxu0 0
        %4110 = vmatprep.subr.bf16.mxu0 0
        %4111 = vmatpush1.bf16.msra.mxu0 0
        %4112 = vmatprep.subr.bf16.mxu0 0
        %4113 = vmatpush1.bf16.msra.mxu0 0
        %4114 = vmatprep.subr.bf16.mxu0 0
        %4115 = vmatpush1.bf16.msra.mxu0 0
        %4116 = vmatprep.subr.bf16.mxu0 0
        %4117 = vmatpush1.bf16.msra.mxu0 0
        %4118 = vmatprep.subr.bf16.mxu0 0
        %4119 = vmatpush1.bf16.msra.mxu0 0
        %4120 = vmatprep.subr.bf16.mxu0 0
        %4121 = vmatpush1.bf16.msra.mxu0 0
        %4122 = vmatprep.subr.bf16.mxu0 0
        %4123 = vmatpush1.bf16.msra.mxu0 0
        %4124 = vmatprep.mubr.bf16.mxu0 0
        %4125 = vmatmul.mubr.bf16.gmra.mrb[0].mxu0 %v4087
        %v4126 = vpop.f32.mrb[0].mxu0
        %v4127 = vadd.f32 0.0, %v4126
        %v4128 = vpop.f32.mrb[0].mxu0
        %v4129 = vpop.f32.mrb[0].mxu0
        %v4130 = vpop.f32.mrb[0].mxu0
        %4131 = vdwg.mxu0
        %v4132 = vadd.f32 %v4082, %v4127
        %v4133 = vld [vmem:[%s725] sm:$0x3]
        %v4135 = vunpack.c.l.b16 %v4083
        %v4136 = vpack.c.b16 %v4135, %v4135
        %4137 = vrot.lane.b32.xlu0 %v4136, 124
        %v4138 = vpop.permute.xlu0 %4137
        %v4140 = vsel %vm355, %v4138, 0
        %v4143 = vsel %vm359, %v4133, 0
        %4145 = vmatprep.subr.bf16.mxu0 0
        %4146 = vmatpush1.bf16.msra.mxu0 %v4143
        %4147 = vmatprep.subr.bf16.mxu0 0
        %4148 = vmatpush1.bf16.msra.mxu0 0
        %4149 = vmatprep.subr.bf16.mxu0 0
        %4150 = vmatpush1.bf16.msra.mxu0 0
        %4151 = vmatprep.subr.bf16.mxu0 0
        %4152 = vmatpush1.bf16.msra.mxu0 0
        %4153 = vmatprep.subr.bf16.mxu0 0
        %4154 = vmatpush1.bf16.msra.mxu0 0
        %4155 = vmatprep.subr.bf16.mxu0 0
        %4156 = vmatpush1.bf16.msra.mxu0 0
        %4157 = vmatprep.subr.bf16.mxu0 0
        %4158 = vmatpush1.bf16.msra.mxu0 0
        %4159 = vmatprep.subr.bf16.mxu0 0
        %4160 = vmatpush1.bf16.msra.mxu0 0
        %4161 = vmatprep.subr.bf16.mxu0 0
        %4162 = vmatpush1.bf16.msra.mxu0 0
        %4163 = vmatprep.subr.bf16.mxu0 0
        %4164 = vmatpush1.bf16.msra.mxu0 0
        %4165 = vmatprep.subr.bf16.mxu0 0
        %4166 = vmatpush1.bf16.msra.mxu0 0
        %4167 = vmatprep.subr.bf16.mxu0 0
        %4168 = vmatpush1.bf16.msra.mxu0 0
        %4169 = vmatprep.subr.bf16.mxu0 0
        %4170 = vmatpush1.bf16.msra.mxu0 0
        %4171 = vmatprep.subr.bf16.mxu0 0
        %4172 = vmatpush1.bf16.msra.mxu0 0
        %4173 = vmatprep.subr.bf16.mxu0 0
        %4174 = vmatpush1.bf16.msra.mxu0 0
        %4175 = vmatprep.subr.bf16.mxu0 0
        %4176 = vmatpush1.bf16.msra.mxu0 0
        %4177 = vmatprep.mubr.bf16.mxu0 0
        %4178 = vmatmul.mubr.bf16.gmra.mrb[0].mxu0 %v4140
        %v4179 = vpop.f32.mrb[0].mxu0
        %v4180 = vadd.f32 0.0, %v4179
        %v4181 = vpop.f32.mrb[0].mxu0
        %v4182 = vpop.f32.mrb[0].mxu0
        %v4183 = vpop.f32.mrb[0].mxu0
        %4184 = vdwg.mxu0
        %v4185 = vadd.f32 %v4132, %v4180
        %v4186 = vld [vmem:[%s779] sm:$0x3]
        %v4188 = vunpack.c.l.b16 %v4084
        %v4189 = vpack.c.b16 %v4188, %v4135
        %v4191 = vshrl.u32 %v4189, 16
        %v4193 = vshll.u32 %v4189, 16
        %v4195 = vrot.slane %v4193, 1
        %v4196 = vor.u32 %v4191, %v4195
        %v4198 = vsel %vm355, %v4196, 0
        %v4201 = vsel %vm359, %v4186, 0
        %4203 = vmatprep.subr.bf16.mxu0 0
        %4204 = vmatpush1.bf16.msra.mxu0 %v4201
        %4205 = vmatprep.subr.bf16.mxu0 0
        %4206 = vmatpush1.bf16.msra.mxu0 0
        %4207 = vmatprep.subr.bf16.mxu0 0
        %4208 = vmatpush1.bf16.msra.mxu0 0
        %4209 = vmatprep.subr.bf16.mxu0 0
        %4210 = vmatpush1.bf16.msra.mxu0 0
        %4211 = vmatprep.subr.bf16.mxu0 0
        %4212 = vmatpush1.bf16.msra.mxu0 0
        %4213 = vmatprep.subr.bf16.mxu0 0
        %4214 = vmatpush1.bf16.msra.mxu0 0
        %4215 = vmatprep.subr.bf16.mxu0 0
        %4216 = vmatpush1.bf16.msra.mxu0 0
        %4217 = vmatprep.subr.bf16.mxu0 0
        %4218 = vmatpush1.bf16.msra.mxu0 0
        %4219 = vmatprep.subr.bf16.mxu0 0
        %4220 = vmatpush1.bf16.msra.mxu0 0
        %4221 = vmatprep.subr.bf16.mxu0 0
        %4222 = vmatpush1.bf16.msra.mxu0 0
        %4223 = vmatprep.subr.bf16.mxu0 0
        %4224 = vmatpush1.bf16.msra.mxu0 0
        %4225 = vmatprep.subr.bf16.mxu0 0
        %4226 = vmatpush1.bf16.msra.mxu0 0
        %4227 = vmatprep.subr.bf16.mxu0 0
        %4228 = vmatpush1.bf16.msra.mxu0 0
        %4229 = vmatprep.subr.bf16.mxu0 0
        %4230 = vmatpush1.bf16.msra.mxu0 0
        %4231 = vmatprep.subr.bf16.mxu0 0
        %4232 = vmatpush1.bf16.msra.mxu0 0
        %4233 = vmatprep.subr.bf16.mxu0 0
        %4234 = vmatpush1.bf16.msra.mxu0 0
        %4235 = vmatprep.mubr.bf16.mxu0 0
        %4236 = vmatmul.mubr.bf16.gmra.mrb[0].mxu0 %v4198
        %v4237 = vpop.f32.mrb[0].mxu0
        %v4238 = vadd.f32 0.0, %v4237
        %v4239 = vpop.f32.mrb[0].mxu0
        %v4240 = vpop.f32.mrb[0].mxu0
        %v4241 = vpop.f32.mrb[0].mxu0
        %4242 = vdwg.mxu0
        %v4243 = vadd.f32 %v4185, %v4238
        %v4244 = vadd.f32 %v4243, %v842
        %s4245 = scalar_lea.vmem %s300, 56 [#allocation2]
        %4246 = vst [vmem:[%s4245] sm:$0xff] %v4244
        %s4247 = sand.u32 %s161, 1
        %s4248 = scalar_lea.sflag [#allocation3], %s4247
        %s4249 = sand.u32 %s161, 1
        %s4250 = smul.addr %s4249, 64
        %s4251 = scalar_lea.vmem [#allocation2], %s4250
        // Predicated region
        $region37: #{tpu_custom_call.1} parent=35 // pred_check
          %p4252 = pneg %p171
        $region38: #{tpu_custom_call.1} parent=35 // pred_check_branch
          %4254 = sbr.rel (%p4252) target = $region40
        $region39: #{tpu_custom_call.1} parent=35 // pred_region
          %s4255 = smul.u32 8, %s24
          %s4257 = ssub.s32 1024, 1024
          %4258 = vsyncadd %s4248, %s4257
          %s4259 = sadd.s32 %s25, %s4255
          %s4260 = smul.addr %s23, 8
          %s4261 = sadd.s32 %s4259, %s4260
          %s4262 = smul.addr %s4261, 128
          %s4263 = scalar_lea.hbm %s4, %s4262
          %s4264 = sshll.u32 %s4251, 4
          %s4265 = int_to_ptr.vmem [resolvable:$true] %s4264
          %4270 = dma.vmem_to_hbm [thread:$0]  %s4265, 1024, %s4263, %s4248, 128, 128, 8
        $region40: #{tpu_custom_call.1} parent=35 // pred_fallthru
          _
      $region36: #{tpu_custom_call.1} parent=5 // pred_fallthru
        _
      %p4271 = scmp.le.s32.totalorder 2, %s13
      // Predicated region
      $region41: #{tpu_custom_call.1} parent=5 // pred_check
        %p4272 = pneg %p4271
      $region42: #{tpu_custom_call.1} parent=5 // pred_check_branch
        %4274 = sbr.rel (%p4272) target = $region44
      $region43: #{tpu_custom_call.1} parent=5 // pred_region
        %s4275 = ssub.s32 %s13, 2
        // Predicated region
        $region45: #{tpu_custom_call.1} parent=43 // pred_check
          %p4276 = pneg %p177
        $region46: #{tpu_custom_call.1} parent=43 // pred_check_branch
          %4278 = sbr.rel (%p4276) target = $region48
        $region47: #{tpu_custom_call.1} parent=43 // pred_region
          %s4279 = sand.u32 %s162, 1
          %s4280 = scalar_lea.sflag [#allocation3], %s4279
          %s4281 = sand.u32 %s162, 1
          %s4282 = smul.addr %s4281, 64
          %s4283 = scalar_lea.vmem [#allocation2], %s4282
          %4284 = dma.done %s4280, 1024
        $region48: #{tpu_custom_call.1} parent=43 // pred_fallthru
          _
      $region44: #{tpu_custom_call.1} parent=5 // pred_fallthru
        _
    $region6: #{tpu_custom_call.1} parent=1 // loop_footer
      %s17 = sadd.s32 1, %s13
    $region7: #{tpu_custom_call.1} parent=1 // loop_footer_branch
      %12 = sbr.rel target = $region3
    $region8: #{tpu_custom_call.1} parent=1 // loop_exit
      _
    %4285 = vsyncpa [#allocation3], 1
    %s4286 = scalar_lea.sflag [#allocation3], 1
    %4287 = vsyncpa %s4286, 1

</llo_original>
